<compile_context>
chip_gen: v7x
topology: tpu7x:2x2x1
jax: 0.10.0
libtpu: 0.0.40
codegen_flags: <defaults>
</compile_context>

<pallas_src>
import functools

import jax
import jax.numpy as jnp
from jax.experimental import pallas as pl
from jax.experimental.pallas import tpu as pltpu


def _round_up(x, m):
    return (x + m - 1) // m * m


_FC_TK = 2048            # max fc1 K tile (review: 1024-4096; 2048 = 0.5 MB bf16 block)


def _fc_pad(f):
    tk = min(_FC_TK, _round_up(f, 128))
    return _round_up(f, tk)


def _pick_band_rows(HP, W, max_rows=4):
    """Largest pooled-row band <= max_rows that divides HP with 8-aligned blocks."""
    for bp in range(min(max_rows, HP), 0, -1):
        if HP % bp == 0 and (2 * bp * W) % 8 == 0:
            return bp
    # TODO(synk): when HP is prime (e.g. 149 at 300x300) only BP=1 survives;
    # pad HP / allow masked partial output blocks to get bigger bands.
    return HP


# ---------------------------------------------------------------------------
# Kernels
# ---------------------------------------------------------------------------
def _conv_relu_pool_kernel(x_ref, halo_ref, w_ref, b_ref, o_ref,
                           xb_ref, patch_ref, acc_ref, *, W, KH, KW, BP):
    """Fused valid conv(KHxKW) + bias + ReLU + 2x2/2 max-pool for one row band.

    x_ref    : (1, 2*BP*W, Cin)      main input band (flat channels-minor, bf16)
    halo_ref : (1, h_blk, Cin)       next rows of the same image (only the
                                     first (KH-1)*W rows are used)
    w_ref    : (KH*KW*Cin, Cout)     folded im2col weight (resident, f32)
    b_ref    : (1, Cout)             bias (resident, f32)
    o_ref    : (1, BP, WP, Cout)     pooled output rows of this band (bf16)
    xb_ref   : ((2*BP+KH-1)*W, Cin)  stitched band+halo input scratch
    patch_ref: (L, KH*KW*Cin) f32    im2col patch slab
    acc_ref  : (L, Cout) f32         conv output (over-computed to row pitch W)
    """
    cin = x_ref.shape[-1]
    WO = W - KW + 1
    WP = WO // 2
    HOB = 2 * BP                     # conv output rows in this band
    HB = HOB + KH - 1                # input rows needed (band + halo)
    L = (HOB - 1) * W + WO           # flat conv length (wrap columns never read)
    n_main = HOB * W

    # Stitch main band + KH-1 halo rows into one contiguous slab so every conv
    # tap is a flat-row shift of the same buffer.
    xb_ref[0:n_main, :] = x_ref[0]
    xb_ref[n_main:HB * W, :] = halo_ref[0, 0:(KH - 1) * W, :]

    # im2col: KH*KW contiguous slab copies, then ONE deep matmul
    # (K = KH*KW*Cin) instead of 9 accumulator read-modify-write passes.
    for ki in range(KH):
        for kj in range(KW):
            t = ki * KW + kj
            patch_ref[:, t * cin:(t + 1) * cin] = (
                xb_ref[pl.ds(ki * W + kj, L), :].astype(patch_ref.dtype))

    acc_ref[...] = jnp.maximum(
        jnp.dot(patch_ref[...], w_ref[...],
                preferred_element_type=jnp.float32) + b_ref[...], 0.0)

    # 2x2 stride-2 max pool (floor) via strided in-VMEM reads; BP <= 4 so this
    # static unroll stays tiny even at full scale.
    for p in range(BP):
        r0 = (2 * p) * W
        r1 = (2 * p + 1) * W
        a = acc_ref[pl.ds(r0, WP, stride=2), :]
        b = acc_ref[pl.ds(r0 + 1, WP, stride=2), :]
        c = acc_ref[pl.ds(r1, WP, stride=2), :]
        d = acc_ref[pl.ds(r1 + 1, WP, stride=2), :]
        o_ref[0, p] = jnp.maximum(jnp.maximum(a, b),
                                  jnp.maximum(c, d)).astype(o_ref.dtype)


def _mlp_head_kernel(x_ref, w1_ref, b1_ref, w2_ref, b2_ref, o_ref, acc_ref):
    """sigmoid(relu(x @ w1 + b1) @ w2 + b2); fc1 K dim tiled on grid axis 0."""
    k = pl.program_id(0)

    @pl.when(k == 0)
    def _():
        acc_ref[...] = jnp.zeros_like(acc_ref)

    acc_ref[...] += jnp.dot(x_ref[...], w1_ref[...],
                            preferred_element_type=jnp.float32)

    @pl.when(k == pl.num_programs(0) - 1)
    def _():
        h = jnp.maximum(acc_ref[...] + b1_ref[...], 0.0)
        logit = jnp.dot(h, w2_ref[...],
                        preferred_element_type=jnp.float32) + b2_ref[...]
        o_ref[...] = jax.nn.sigmoid(logit).astype(o_ref.dtype)


# ---------------------------------------------------------------------------
# Wrappers
# ---------------------------------------------------------------------------
def conv_relu_pool(x_flat, w_folded, b, *, H, W, KH=3, KW=3, band_rows=None):
    n, hw, cin = x_flat.shape
    assert hw == H * W
    k2cin, cout = w_folded.shape
    assert k2cin == KH * KW * cin
    HO, WO = H - KH + 1, W - KW + 1
    HP, WP = HO // 2, WO // 2

    BP = band_rows if band_rows is not None else _pick_band_rows(HP, W)
    assert HP % BP == 0
    nb = HP // BP
    HOB = 2 * BP
    HB = HOB + KH - 1
    L = (HOB - 1) * W + WO
    n_main = HOB * W
    assert n_main % 8 == 0, n_main

    # Smallest 8-aligned divisor of the main block that covers the KH-1 halo
    # rows (keeps the second halo fetch small).
    halo_rows = (KH - 1) * W
    h_blk = n_main
    for d in range(8, n_main + 1, 8):
        if n_main % d == 0 and d >= halo_rows:
            h_blk = d
            break
    halo_step = n_main // h_blk

    kern = functools.partial(_conv_relu_pool_kernel, W=W, KH=KH, KW=KW, BP=BP)
    isz = x_flat.dtype.itemsize
    flops = int(2 * n * nb * L * k2cin * cout)
    bytes_acc = int(n * hw * cin * isz + n * nb * h_blk * cin * isz
                    + k2cin * cout * 4 + cout * 4
                    + n * HP * WP * cout * isz)

    out = pl.pallas_call(
        kern,
        out_shape=jax.ShapeDtypeStruct((n, HP, WP, cout), x_flat.dtype),
        grid=(n, nb),
        in_specs=[
            # main input band (flat channels-minor rows of this band)
            pl.BlockSpec((1, n_main, cin), lambda i, bnd: (i, bnd, 0)),
            # halo: the first KH-1 image rows *after* the band, fetched from
            # the same array at a shifted block index (last band's halo block
            # is a partial edge block; only its valid head rows are read).
            pl.BlockSpec((1, h_blk, cin),
                         lambda i, bnd: (i, (bnd + 1) * halo_step, 0)),
            pl.BlockSpec((k2cin, cout), lambda i, bnd: (0, 0)),   # resident
            pl.BlockSpec((1, cout), lambda i, bnd: (0, 0)),       # resident
        ],
        out_specs=pl.BlockSpec((1, BP, WP, cout),
                               lambda i, bnd: (i, bnd, 0, 0)),
        scratch_shapes=[
            pltpu.VMEM((HB * W, cin), x_flat.dtype),
            pltpu.VMEM((L, k2cin), jnp.float32),
            pltpu.VMEM((L, cout), jnp.float32),
        ],
        compiler_params=pltpu.CompilerParams(
            dimension_semantics=("parallel", "parallel"),
            vmem_limit_bytes=64 * 1024 * 1024),
        cost_estimate=pl.CostEstimate(flops=flops, transcendentals=0,
                                      bytes_accessed=bytes_acc),
    )(x_flat, x_flat, w_folded, b.reshape(1, cout))
    return out, HP, WP


def mlp_head(x, w1, b1, w2, b2):
    n, f = x.shape
    fw, hid = w1.shape
    assert fw == f, (fw, f)
    nout = w2.shape[1]
    tk = min(_FC_TK, f)
    assert f % tk == 0, (f, tk)
    steps = f // tk
    flops = int(2 * n * f * hid + 2 * n * hid * nout)
    bytes_acc = int(2 * (n * f + f * hid)
                    + 4 * (hid + hid * nout + nout + n * nout))

    return pl.pallas_call(
        _mlp_head_kernel,
        out_shape=jax.ShapeDtypeStruct((n, nout), jnp.float32),
        grid=(steps,),
        in_specs=[
            pl.BlockSpec((n, tk), lambda k: (0, k)),        # stream K tiles of x
            # TODO(synk): consider pipeline_mode=pl.Buffered(3) on this stream.
            pl.BlockSpec((tk, hid), lambda k: (k, 0)),      # stream K tiles of w1
            pl.BlockSpec((1, hid), lambda k: (0, 0)),       # resident
            pl.BlockSpec((hid, nout), lambda k: (0, 0)),    # resident
            pl.BlockSpec((1, nout), lambda k: (0, 0)),      # resident
        ],
        out_specs=pl.BlockSpec((n, nout), lambda k: (0, 0)),
        scratch_shapes=[pltpu.VMEM((n, hid), jnp.float32)],
        compiler_params=pltpu.CompilerParams(
            dimension_semantics=("arbitrary",),
            vmem_limit_bytes=64 * 1024 * 1024),
        cost_estimate=pl.CostEstimate(flops=flops, transcendentals=n,
                                      bytes_accessed=bytes_acc),
    )(x, w1, b1.reshape(1, hid), w2, b2.reshape(1, nout))


def cnn_forward(x_nchw, params):
    n, cin, H, W = x_nchw.shape
    # Single layout change at the input: NCHW -> flat channels-minor, bf16.
    x = jnp.transpose(x_nchw, (0, 2, 3, 1)).reshape(n, H * W, cin)
    x = x.astype(jnp.bfloat16)
    x, hp, wp = conv_relu_pool(x, params["conv1_w"], params["conv1_b"], H=H, W=W)
    x = x.reshape(n, hp * wp, x.shape[-1])
    x, hp, wp = conv_relu_pool(x, params["conv2_w"], params["conv2_b"], H=hp, W=wp)
    # Flatten stays in HWC order (fc1_w rows are pre-permuted to match).
    x = x.reshape(n, -1)
    f, fpad = x.shape[1], params["fc1_w"].shape[0]
    if fpad > f:                     # zero-pad features up to the K-tile multiple
        x = jnp.pad(x, ((0, 0), (0, fpad - f)))
    return mlp_head(x, params["fc1_w"], params["fc1_b"],
                    params["fc2_w"], params["fc2_b"])


# ---------------------------------------------------------------------------
# One-time parameter preparation (PyTorch layout -> kernel layout)
# ---------------------------------------------------------------------------
def prepare_params(tp, *, H, W):
    def conv_w(w):   # (Cout, Cin, KH, KW) -> folded im2col (KH*KW*Cin, Cout), f32
        cout, cin, kh, kw = w.shape
        return (jnp.transpose(w, (2, 3, 1, 0))
                .reshape(kh * kw * cin, cout).astype(jnp.float32))

    kh = kw = tp["conv1_w"].shape[-1]
    ho1, wo1 = H - kh + 1, W - kw + 1
    hp1, wp1 = ho1 // 2, wo1 // 2
    ho2, wo2 = hp1 - kh + 1, wp1 - kw + 1
    hp2, wp2 = ho2 // 2, wo2 // 2
    c2 = tp["conv2_w"].shape[0]
    f = c2 * hp2 * wp2
    assert tp["fc1_w"].shape[1] == f, (tp["fc1_w"].shape, f)

    # Permute fc1 rows from PyTorch's (C,H,W) flatten order to (H,W,C) order,
    # transpose to (F, HID), zero-pad F to the K-tile multiple, cast to bf16.
    o = jnp.arange(f)
    y = o // (wp2 * c2)
    xx = (o % (wp2 * c2)) // c2
    cc = o % c2
    torch_row = cc * (hp2 * wp2) + y * wp2 + xx
    fc1 = jnp.transpose(tp["fc1_w"])[torch_row]          # (F, HID) in HWC order
    fpad = _fc_pad(f)
    fc1 = jnp.pad(fc1, ((0, fpad - f), (0, 0))).astype(jnp.bfloat16)

    return {
        "conv1_w": conv_w(tp["conv1_w"]),
        "conv1_b": tp["conv1_b"].astype(jnp.float32),
        "conv2_w": conv_w(tp["conv2_w"]),
        "conv2_b": tp["conv2_b"].astype(jnp.float32),
        "fc1_w": fc1,
        "fc1_b": tp["fc1_b"].astype(jnp.float32),
        "fc2_w": jnp.transpose(tp["fc2_w"]).astype(jnp.float32),
        "fc2_b": tp["fc2_b"].astype(jnp.float32),
    }


# Pure-jnp f32 reference with PyTorch semantics (uses PyTorch-layout params).
def cnn_forward_ref(x_nchw, tp):
    def conv(x, w, b):
        y = jax.lax.conv_general_dilated(
            x, w, window_strides=(1, 1), padding="VALID",
            dimension_numbers=("NCHW", "OIHW", "NCHW"))
        return y + b[None, :, None, None]

    def pool(x):
        n, c, h, w = x.shape
        hp, wp = h // 2, w // 2
        v = x[:, :, :2 * hp, :2 * wp].reshape(n, c, hp, 2, wp, 2)
        return v.max(axis=(3, 5))

    x = pool(jnp.maximum(conv(x_nchw, tp["conv1_w"], tp["conv1_b"]), 0.0))
    x = pool(jnp.maximum(conv(x, tp["conv2_w"], tp["conv2_b"]), 0.0))
    x = x.reshape(x.shape[0], -1)                       # nn.Flatten (NCHW order)
    h = jnp.maximum(x @ tp["fc1_w"].T + tp["fc1_b"], 0.0)
    return jax.nn.sigmoid(h @ tp["fc2_w"].T + tp["fc2_b"])


# ---------------------------------------------------------------------------
# Main
# ---------------------------------------------------------------------------
if __name__ == "__main__":
    # Small shapes consistent with the module (full module: 300x300 in,
    # fc1 in = 32*73*73):  18 -> conv3 -> 16 -> pool -> 8 -> conv3 -> 6 -> pool -> 3
    # so fc1 in = 32*3*3 = 288 (zero-padded to the 384-wide fc1 K tile here).
    N, CIN, H, W = 2, 3, 18, 18
    C1, C2, HID = 16, 32, 128
    F = C2 * 3 * 3

    keys = jax.random.split(jax.random.PRNGKey(0), 9)
    torch_params = {
        "conv1_w": 0.2 * jax.random.normal(keys[0], (C1, CIN, 3, 3), jnp.float32),
        "conv1_b": 0.2 * jax.random.normal(keys[1], (C1,), jnp.float32),
        "conv2_w": 0.2 * jax.random.normal(keys[2], (C2, C1, 3, 3), jnp.float32),
        "conv2_b": 0.2 * jax.random.normal(keys[3], (C2,), jnp.float32),
        "fc1_w": 0.05 * jax.random.normal(keys[4], (HID, F), jnp.float32),
        "fc1_b": 0.05 * jax.random.normal(keys[5], (HID,), jnp.float32),
        "fc2_w": 0.05 * jax.random.normal(keys[6], (1, HID), jnp.float32),
        "fc2_b": 0.05 * jax.random.normal(keys[7], (1,), jnp.float32),
    }
    x = jax.random.normal(keys[8], (N, CIN, H, W), jnp.float32)

    params = prepare_params(torch_params, H=H, W=W)

    out = jax.jit(cnn_forward)(x, params)
    out = jax.block_until_ready(out)

    ref = cnn_forward_ref(x, torch_params)
    assert out.shape == (N, 1), out.shape
    assert bool(jnp.all(jnp.isfinite(out)))
    # bf16 activation / fc1-weight path: compare against the f32 reference
    # with a bf16-appropriate tolerance.
    assert jnp.allclose(out, ref, rtol=2e-2, atol=2e-2), (out, ref)

    print("KERNEL_OK")
</pallas_src>

<mosaic_0001>
module attributes {stable_mosaic.version = 11 : i64} {
  func.func @_conv_relu_pool_kernel(%arg0: i32, %arg1: i32, %arg2: memref<1x48x16xbf16, #tpu.memory_space<vmem>>, %arg3: memref<1x16x16xbf16, #tpu.memory_space<vmem>>, %arg4: memref<144x32xf32, #tpu.memory_space<vmem>>, %arg5: memref<1x32xf32, #tpu.memory_space<vmem>>, %arg6: memref<1x3x3x32xbf16, #tpu.memory_space<vmem>>, %arg7: memref<64x16xbf16, #tpu.memory_space<vmem>>, %arg8: memref<46x144xf32, #tpu.memory_space<vmem>>, %arg9: memref<46x32xf32, #tpu.memory_space<vmem>>) attributes {dimension_semantics = [#tpu.dimension_semantics<parallel>, #tpu.dimension_semantics<parallel>], iteration_bounds = array<i64: 2, 1>, scalar_prefetch = 0 : i64, scratch_operands = 3 : i64, tpu.core_type = #tpu.core_type<tc>, window_params = [{transform_indices = @transform_0, window_bounds = array<i64: 1, 48, 16>}, {transform_indices = @transform_1, window_bounds = array<i64: 1, 16, 16>}, {pipeline_mode = #tpu.pipeline_mode<synchronous>, transform_indices = @transform_2, window_bounds = array<i64: 144, 32>}, {pipeline_mode = #tpu.pipeline_mode<synchronous>, transform_indices = @transform_3, window_bounds = array<i64: 1, 32>}, {transform_indices = @transform_4, window_bounds = array<i64: 1, 3, 3, 32>}]} {
    %c0 = arith.constant 0 : index
    %c0_0 = arith.constant 0 : index
    %c0_1 = arith.constant 0 : index
    %0 = vector.load %arg2[%c0, %c0_0, %c0_1] : memref<1x48x16xbf16, #tpu.memory_space<vmem>>, vector<1x48x16xbf16>
    %1 = vector.shape_cast %0 : vector<1x48x16xbf16> to vector<48x16xbf16>
    %c0_2 = arith.constant 0 : index
    %c0_3 = arith.constant 0 : index
    %2 = vector.load %arg7[%c0_2, %c0_3] : memref<64x16xbf16, #tpu.memory_space<vmem>>, vector<48x16xbf16>
    tpu.vector_store %arg7[%c0_2, %c0_3], %1 {strides = array<i32>} : memref<64x16xbf16, #tpu.memory_space<vmem>>, vector<48x16xbf16>,
    %c0_4 = arith.constant 0 : index
    %c0_5 = arith.constant 0 : index
    %c0_6 = arith.constant 0 : index
    %3 = vector.load %arg3[%c0_4, %c0_5, %c0_6] : memref<1x16x16xbf16, #tpu.memory_space<vmem>>, vector<1x16x16xbf16>
    %4 = vector.shape_cast %3 : vector<1x16x16xbf16> to vector<16x16xbf16>
    %c48 = arith.constant 48 : index
    %c0_7 = arith.constant 0 : index
    %5 = vector.load %arg7[%c48, %c0_7] : memref<64x16xbf16, #tpu.memory_space<vmem>>, vector<16x16xbf16>
    tpu.vector_store %arg7[%c48, %c0_7], %4 {strides = array<i32>} : memref<64x16xbf16, #tpu.memory_space<vmem>>, vector<16x16xbf16>,
    %c0_8 = arith.constant 0 : index
    %c0_9 = arith.constant 0 : index
    %6 = vector.load %arg7[%c0_8, %c0_9] : memref<64x16xbf16, #tpu.memory_space<vmem>>, vector<46x16xbf16>
    %7 = arith.extf %6 : vector<46x16xbf16> to vector<46x16xf32>
    %c0_10 = arith.constant 0 : index
    %c0_11 = arith.constant 0 : index
    %8 = vector.load %arg8[%c0_10, %c0_11] : memref<46x144xf32, #tpu.memory_space<vmem>>, vector<46x16xf32>
    tpu.vector_store %arg8[%c0_10, %c0_11], %7 {strides = array<i32>} : memref<46x144xf32, #tpu.memory_space<vmem>>, vector<46x16xf32>,
    %c1 = arith.constant 1 : index
    %c0_12 = arith.constant 0 : index
    %9 = vector.load %arg7[%c1, %c0_12] : memref<64x16xbf16, #tpu.memory_space<vmem>>, vector<46x16xbf16>
    %10 = arith.extf %9 : vector<46x16xbf16> to vector<46x16xf32>
    %c0_13 = arith.constant 0 : index
    %c16 = arith.constant 16 : index
    %11 = vector.load %arg8[%c0_13, %c16] : memref<46x144xf32, #tpu.memory_space<vmem>>, vector<46x16xf32>
    tpu.vector_store %arg8[%c0_13, %c16], %10 {strides = array<i32>} : memref<46x144xf32, #tpu.memory_space<vmem>>, vector<46x16xf32>,
    %c2 = arith.constant 2 : index
    %c0_14 = arith.constant 0 : index
    %12 = vector.load %arg7[%c2, %c0_14] : memref<64x16xbf16, #tpu.memory_space<vmem>>, vector<46x16xbf16>
    %13 = arith.extf %12 : vector<46x16xbf16> to vector<46x16xf32>
    %c0_15 = arith.constant 0 : index
    %c32 = arith.constant 32 : index
    %14 = vector.load %arg8[%c0_15, %c32] : memref<46x144xf32, #tpu.memory_space<vmem>>, vector<46x16xf32>
    tpu.vector_store %arg8[%c0_15, %c32], %13 {strides = array<i32>} : memref<46x144xf32, #tpu.memory_space<vmem>>, vector<46x16xf32>,
    %c8 = arith.constant 8 : index
    %c0_16 = arith.constant 0 : index
    %15 = vector.load %arg7[%c8, %c0_16] : memref<64x16xbf16, #tpu.memory_space<vmem>>, vector<46x16xbf16>
    %16 = arith.extf %15 : vector<46x16xbf16> to vector<46x16xf32>
    %c0_17 = arith.constant 0 : index
    %c48_18 = arith.constant 48 : index
    %17 = vector.load %arg8[%c0_17, %c48_18] : memref<46x144xf32, #tpu.memory_space<vmem>>, vector<46x16xf32>
    tpu.vector_store %arg8[%c0_17, %c48_18], %16 {strides = array<i32>} : memref<46x144xf32, #tpu.memory_space<vmem>>, vector<46x16xf32>,
    %c9 = arith.constant 9 : index
    %c0_19 = arith.constant 0 : index
    %18 = vector.load %arg7[%c9, %c0_19] : memref<64x16xbf16, #tpu.memory_space<vmem>>, vector<46x16xbf16>
    %19 = arith.extf %18 : vector<46x16xbf16> to vector<46x16xf32>
    %c0_20 = arith.constant 0 : index
    %c64 = arith.constant 64 : index
    %20 = vector.load %arg8[%c0_20, %c64] : memref<46x144xf32, #tpu.memory_space<vmem>>, vector<46x16xf32>
    tpu.vector_store %arg8[%c0_20, %c64], %19 {strides = array<i32>} : memref<46x144xf32, #tpu.memory_space<vmem>>, vector<46x16xf32>,
    %c10 = arith.constant 10 : index
    %c0_21 = arith.constant 0 : index
    %21 = vector.load %arg7[%c10, %c0_21] : memref<64x16xbf16, #tpu.memory_space<vmem>>, vector<46x16xbf16>
    %22 = arith.extf %21 : vector<46x16xbf16> to vector<46x16xf32>
    %c0_22 = arith.constant 0 : index
    %c80 = arith.constant 80 : index
    %23 = vector.load %arg8[%c0_22, %c80] : memref<46x144xf32, #tpu.memory_space<vmem>>, vector<46x16xf32>
    tpu.vector_store %arg8[%c0_22, %c80], %22 {strides = array<i32>} : memref<46x144xf32, #tpu.memory_space<vmem>>, vector<46x16xf32>,
    %c16_23 = arith.constant 16 : index
    %c0_24 = arith.constant 0 : index
    %24 = vector.load %arg7[%c16_23, %c0_24] : memref<64x16xbf16, #tpu.memory_space<vmem>>, vector<46x16xbf16>
    %25 = arith.extf %24 : vector<46x16xbf16> to vector<46x16xf32>
    %c0_25 = arith.constant 0 : index
    %c96 = arith.constant 96 : index
    %26 = vector.load %arg8[%c0_25, %c96] : memref<46x144xf32, #tpu.memory_space<vmem>>, vector<46x16xf32>
    tpu.vector_store %arg8[%c0_25, %c96], %25 {strides = array<i32>} : memref<46x144xf32, #tpu.memory_space<vmem>>, vector<46x16xf32>,
    %c17 = arith.constant 17 : index
    %c0_26 = arith.constant 0 : index
    %27 = vector.load %arg7[%c17, %c0_26] : memref<64x16xbf16, #tpu.memory_space<vmem>>, vector<46x16xbf16>
    %28 = arith.extf %27 : vector<46x16xbf16> to vector<46x16xf32>
    %c0_27 = arith.constant 0 : index
    %c112 = arith.constant 112 : index
    %29 = vector.load %arg8[%c0_27, %c112] : memref<46x144xf32, #tpu.memory_space<vmem>>, vector<46x16xf32>
    tpu.vector_store %arg8[%c0_27, %c112], %28 {strides = array<i32>} : memref<46x144xf32, #tpu.memory_space<vmem>>, vector<46x16xf32>,
    %c18 = arith.constant 18 : index
    %c0_28 = arith.constant 0 : index
    %30 = vector.load %arg7[%c18, %c0_28] : memref<64x16xbf16, #tpu.memory_space<vmem>>, vector<46x16xbf16>
    %31 = arith.extf %30 : vector<46x16xbf16> to vector<46x16xf32>
    %c0_29 = arith.constant 0 : index
    %c128 = arith.constant 128 : index
    %32 = vector.load %arg8[%c0_29, %c128] : memref<46x144xf32, #tpu.memory_space<vmem>>, vector<46x16xf32>
    tpu.vector_store %arg8[%c0_29, %c128], %31 {strides = array<i32>} : memref<46x144xf32, #tpu.memory_space<vmem>>, vector<46x16xf32>,
    %c0_30 = arith.constant 0 : index
    %c0_31 = arith.constant 0 : index
    %33 = vector.load %arg8[%c0_30, %c0_31] : memref<46x144xf32, #tpu.memory_space<vmem>>, vector<46x144xf32>
    %c0_32 = arith.constant 0 : index
    %c0_33 = arith.constant 0 : index
    %34 = vector.load %arg4[%c0_32, %c0_33] : memref<144x32xf32, #tpu.memory_space<vmem>>, vector<144x32xf32>
    %cst = arith.constant dense<0.000000e+00> : vector<46x32xf32>
    %35 = tpu.matmul %33, %34, %cst {dimension_numbers = #tpu.dot_dimension_numbers<[1], [0], [0], [1], [0, 0, 1, 1], [], []>} : vector<46x144xf32>, vector<144x32xf32>, vector<46x32xf32> -> vector<46x32xf32>
    %c0_34 = arith.constant 0 : index
    %c0_35 = arith.constant 0 : index
    %36 = vector.load %arg5[%c0_34, %c0_35] : memref<1x32xf32, #tpu.memory_space<vmem>>, vector<1x32xf32>
    %37 = vector.broadcast %36 : vector<1x32xf32> to vector<46x32xf32>
    %38 = arith.addf %35, %37 : vector<46x32xf32>
    %cst_36 = arith.constant 0.000000e+00 : f32
    %39 = vector.broadcast %cst_36 : f32 to vector<46x32xf32>
    %40 = arith.maximumf %38, %39 : vector<46x32xf32>
    %c0_37 = arith.constant 0 : index
    %c0_38 = arith.constant 0 : index
    %41 = vector.load %arg9[%c0_37, %c0_38] : memref<46x32xf32, #tpu.memory_space<vmem>>, vector<46x32xf32>
    tpu.vector_store %arg9[%c0_37, %c0_38], %40 {strides = array<i32>} : memref<46x32xf32, #tpu.memory_space<vmem>>, vector<46x32xf32>,
    %c0_39 = arith.constant 0 : index
    %c0_40 = arith.constant 0 : index
    %42 = tpu.strided_load %arg9[%c0_39, %c0_40] {strides = array<i32: 2, 1>} : memref<46x32xf32, #tpu.memory_space<vmem>>, vector<3x32xf32>
    %c1_41 = arith.constant 1 : index
    %c0_42 = arith.constant 0 : index
    %43 = tpu.strided_load %arg9[%c1_41, %c0_42] {strides = array<i32: 2, 1>} : memref<46x32xf32, #tpu.memory_space<vmem>>, vector<3x32xf32>
    %c8_43 = arith.constant 8 : index
    %c0_44 = arith.constant 0 : index
    %44 = tpu.strided_load %arg9[%c8_43, %c0_44] {strides = array<i32: 2, 1>} : memref<46x32xf32, #tpu.memory_space<vmem>>, vector<3x32xf32>
    %c9_45 = arith.constant 9 : index
    %c0_46 = arith.constant 0 : index
    %45 = tpu.strided_load %arg9[%c9_45, %c0_46] {strides = array<i32: 2, 1>} : memref<46x32xf32, #tpu.memory_space<vmem>>, vector<3x32xf32>
    %46 = arith.maximumf %42, %43 : vector<3x32xf32>
    %47 = arith.maximumf %44, %45 : vector<3x32xf32>
    %48 = arith.maximumf %46, %47 : vector<3x32xf32>
    %49 = arith.truncf %48 : vector<3x32xf32> to vector<3x32xbf16>
    %c0_47 = arith.constant 0 : index
    %c0_48 = arith.constant 0 : index
    %c0_49 = arith.constant 0 : index
    %c0_50 = arith.constant 0 : index
    %50 = vector.load %arg6[%c0_47, %c0_48, %c0_49, %c0_50] : memref<1x3x3x32xbf16, #tpu.memory_space<vmem>>, vector<1x1x3x32xbf16>
    %51 = vector.shape_cast %50 : vector<1x1x3x32xbf16> to vector<3x32xbf16>
    %52 = vector.shape_cast %49 : vector<3x32xbf16> to vector<1x1x3x32xbf16>
    tpu.vector_store %arg6[%c0_47, %c0_48, %c0_49, %c0_50], %52 {strides = array<i32>} : memref<1x3x3x32xbf16, #tpu.memory_space<vmem>>, vector<1x1x3x32xbf16>,
    %c16_51 = arith.constant 16 : index
    %c0_52 = arith.constant 0 : index
    %53 = tpu.strided_load %arg9[%c16_51, %c0_52] {strides = array<i32: 2, 1>} : memref<46x32xf32, #tpu.memory_space<vmem>>, vector<3x32xf32>
    %c17_53 = arith.constant 17 : index
    %c0_54 = arith.constant 0 : index
    %54 = tpu.strided_load %arg9[%c17_53, %c0_54] {strides = array<i32: 2, 1>} : memref<46x32xf32, #tpu.memory_space<vmem>>, vector<3x32xf32>
    %c24 = arith.constant 24 : index
    %c0_55 = arith.constant 0 : index
    %55 = tpu.strided_load %arg9[%c24, %c0_55] {strides = array<i32: 2, 1>} : memref<46x32xf32, #tpu.memory_space<vmem>>, vector<3x32xf32>
    %c25 = arith.constant 25 : index
    %c0_56 = arith.constant 0 : index
    %56 = tpu.strided_load %arg9[%c25, %c0_56] {strides = array<i32: 2, 1>} : memref<46x32xf32, #tpu.memory_space<vmem>>, vector<3x32xf32>
    %57 = arith.maximumf %53, %54 : vector<3x32xf32>
    %58 = arith.maximumf %55, %56 : vector<3x32xf32>
    %59 = arith.maximumf %57, %58 : vector<3x32xf32>
    %60 = arith.truncf %59 : vector<3x32xf32> to vector<3x32xbf16>
    %c0_57 = arith.constant 0 : index
    %c1_58 = arith.constant 1 : index
    %c0_59 = arith.constant 0 : index
    %c0_60 = arith.constant 0 : index
    %61 = vector.load %arg6[%c0_57, %c1_58, %c0_59, %c0_60] : memref<1x3x3x32xbf16, #tpu.memory_space<vmem>>, vector<1x1x3x32xbf16>
    %62 = vector.shape_cast %61 : vector<1x1x3x32xbf16> to vector<3x32xbf16>
    %63 = vector.shape_cast %60 : vector<3x32xbf16> to vector<1x1x3x32xbf16>
    tpu.vector_store %arg6[%c0_57, %c1_58, %c0_59, %c0_60], %63 {strides = array<i32>} : memref<1x3x3x32xbf16, #tpu.memory_space<vmem>>, vector<1x1x3x32xbf16>,
    %c32_61 = arith.constant 32 : index
    %c0_62 = arith.constant 0 : index
    %64 = tpu.strided_load %arg9[%c32_61, %c0_62] {strides = array<i32: 2, 1>} : memref<46x32xf32, #tpu.memory_space<vmem>>, vector<3x32xf32>
    %c33 = arith.constant 33 : index
    %c0_63 = arith.constant 0 : index
    %65 = tpu.strided_load %arg9[%c33, %c0_63] {strides = array<i32: 2, 1>} : memref<46x32xf32, #tpu.memory_space<vmem>>, vector<3x32xf32>
    %c40 = arith.constant 40 : index
    %c0_64 = arith.constant 0 : index
    %66 = tpu.strided_load %arg9[%c40, %c0_64] {strides = array<i32: 2, 1>} : memref<46x32xf32, #tpu.memory_space<vmem>>, vector<3x32xf32>
    %c41 = arith.constant 41 : index
    %c0_65 = arith.constant 0 : index
    %67 = tpu.strided_load %arg9[%c41, %c0_65] {strides = array<i32: 2, 1>} : memref<46x32xf32, #tpu.memory_space<vmem>>, vector<3x32xf32>
    %68 = arith.maximumf %64, %65 : vector<3x32xf32>
    %69 = arith.maximumf %66, %67 : vector<3x32xf32>
    %70 = arith.maximumf %68, %69 : vector<3x32xf32>
    %71 = arith.truncf %70 : vector<3x32xf32> to vector<3x32xbf16>
    %c0_66 = arith.constant 0 : index
    %c2_67 = arith.constant 2 : index
    %c0_68 = arith.constant 0 : index
    %c0_69 = arith.constant 0 : index
    %72 = vector.load %arg6[%c0_66, %c2_67, %c0_68, %c0_69] : memref<1x3x3x32xbf16, #tpu.memory_space<vmem>>, vector<1x1x3x32xbf16>
    %73 = vector.shape_cast %72 : vector<1x1x3x32xbf16> to vector<3x32xbf16>
    %74 = vector.shape_cast %71 : vector<3x32xbf16> to vector<1x1x3x32xbf16>
    tpu.vector_store %arg6[%c0_66, %c2_67, %c0_68, %c0_69], %74 {strides = array<i32>} : memref<1x3x3x32xbf16, #tpu.memory_space<vmem>>, vector<1x1x3x32xbf16>,
    return
  }
  func.func @transform_0(%arg0: i32, %arg1: i32) -> (i32, i32, i32) {
    %c0_i32 = arith.constant 0 : i32
    %c0_i32_0 = arith.constant 0 : i32
    return %arg0, %arg1, %c0_i32 : i32, i32, i32
  }
  func.func @transform_1(%arg0: i32, %arg1: i32) -> (i32, i32, i32) {
    %c1_i32 = arith.constant 1 : i32
    %0 = arith.addi %arg1, %c1_i32 : i32
    %c3_i32 = arith.constant 3 : i32
    %1 = arith.muli %0, %c3_i32 : i32
    %c0_i32 = arith.constant 0 : i32
    %c0_i32_0 = arith.constant 0 : i32
    return %arg0, %1, %c0_i32 : i32, i32, i32
  }
  func.func @transform_2(%arg0: i32, %arg1: i32) -> (i32, i32) {
    %c0_i32 = arith.constant 0 : i32
    %c0_i32_0 = arith.constant 0 : i32
    %c0_i32_1 = arith.constant 0 : i32
    return %c0_i32, %c0_i32_0 : i32, i32
  }
  func.func @transform_3(%arg0: i32, %arg1: i32) -> (i32, i32) {
    %c0_i32 = arith.constant 0 : i32
    %c0_i32_0 = arith.constant 0 : i32
    %c0_i32_1 = arith.constant 0 : i32
    return %c0_i32, %c0_i32_0 : i32, i32
  }
  func.func @transform_4(%arg0: i32, %arg1: i32) -> (i32, i32, i32, i32) {
    %c0_i32 = arith.constant 0 : i32
    %c0_i32_0 = arith.constant 0 : i32
    %c0_i32_1 = arith.constant 0 : i32
    return %arg0, %arg1, %c0_i32, %c0_i32_0 : i32, i32, i32, i32
  }
}

module attributes {stable_mosaic.version = 11 : i64} {
  func.func @_conv_relu_pool_kernel(%arg0: i32, %arg1: i32, %arg2: memref<1x144x3xbf16, #tpu.memory_space<vmem>>, %arg3: memref<1x48x3xbf16, #tpu.memory_space<vmem>>, %arg4: memref<27x16xf32, #tpu.memory_space<vmem>>, %arg5: memref<1x16xf32, #tpu.memory_space<vmem>>, %arg6: memref<1x4x8x16xbf16, #tpu.memory_space<vmem>>, %arg7: memref<180x3xbf16, #tpu.memory_space<vmem>>, %arg8: memref<142x27xf32, #tpu.memory_space<vmem>>, %arg9: memref<142x16xf32, #tpu.memory_space<vmem>>) attributes {dimension_semantics = [#tpu.dimension_semantics<parallel>, #tpu.dimension_semantics<parallel>], iteration_bounds = array<i64: 2, 2>, scalar_prefetch = 0 : i64, scratch_operands = 3 : i64, tpu.core_type = #tpu.core_type<tc>, window_params = [{transform_indices = @transform_0, window_bounds = array<i64: 1, 144, 3>}, {transform_indices = @transform_1, window_bounds = array<i64: 1, 48, 3>}, {pipeline_mode = #tpu.pipeline_mode<synchronous>, transform_indices = @transform_2, window_bounds = array<i64: 27, 16>}, {pipeline_mode = #tpu.pipeline_mode<synchronous>, transform_indices = @transform_3, window_bounds = array<i64: 1, 16>}, {transform_indices = @transform_4, window_bounds = array<i64: 1, 4, 8, 16>}]} {
    %c0 = arith.constant 0 : index
    %c0_0 = arith.constant 0 : index
    %c0_1 = arith.constant 0 : index
    %0 = vector.load %arg2[%c0, %c0_0, %c0_1] : memref<1x144x3xbf16, #tpu.memory_space<vmem>>, vector<1x144x3xbf16>
    %1 = vector.shape_cast %0 : vector<1x144x3xbf16> to vector<144x3xbf16>
    %c0_2 = arith.constant 0 : index
    %c0_3 = arith.constant 0 : index
    %2 = vector.load %arg7[%c0_2, %c0_3] : memref<180x3xbf16, #tpu.memory_space<vmem>>, vector<144x3xbf16>
    tpu.vector_store %arg7[%c0_2, %c0_3], %1 {strides = array<i32>} : memref<180x3xbf16, #tpu.memory_space<vmem>>, vector<144x3xbf16>,
    %c0_4 = arith.constant 0 : index
    %c0_5 = arith.constant 0 : index
    %c0_6 = arith.constant 0 : index
    %3 = vector.load %arg3[%c0_4, %c0_5, %c0_6] : memref<1x48x3xbf16, #tpu.memory_space<vmem>>, vector<1x36x3xbf16>
    %4 = vector.shape_cast %3 : vector<1x36x3xbf16> to vector<36x3xbf16>
    %c144 = arith.constant 144 : index
    %c0_7 = arith.constant 0 : index
    %5 = vector.load %arg7[%c144, %c0_7] : memref<180x3xbf16, #tpu.memory_space<vmem>>, vector<36x3xbf16>
    tpu.vector_store %arg7[%c144, %c0_7], %4 {strides = array<i32>} : memref<180x3xbf16, #tpu.memory_space<vmem>>, vector<36x3xbf16>,
    %c0_8 = arith.constant 0 : index
    %c0_9 = arith.constant 0 : index
    %6 = vector.load %arg7[%c0_8, %c0_9] : memref<180x3xbf16, #tpu.memory_space<vmem>>, vector<142x3xbf16>
    %7 = arith.extf %6 : vector<142x3xbf16> to vector<142x3xf32>
    %c0_10 = arith.constant 0 : index
    %c0_11 = arith.constant 0 : index
    %8 = vector.load %arg8[%c0_10, %c0_11] : memref<142x27xf32, #tpu.memory_space<vmem>>, vector<142x3xf32>
    tpu.vector_store %arg8[%c0_10, %c0_11], %7 {strides = array<i32>} : memref<142x27xf32, #tpu.memory_space<vmem>>, vector<142x3xf32>,
    %c1 = arith.constant 1 : index
    %c0_12 = arith.constant 0 : index
    %9 = vector.load %arg7[%c1, %c0_12] : memref<180x3xbf16, #tpu.memory_space<vmem>>, vector<142x3xbf16>
    %10 = arith.extf %9 : vector<142x3xbf16> to vector<142x3xf32>
    %c0_13 = arith.constant 0 : index
    %c3 = arith.constant 3 : index
    %11 = vector.load %arg8[%c0_13, %c3] : memref<142x27xf32, #tpu.memory_space<vmem>>, vector<142x3xf32>
    tpu.vector_store %arg8[%c0_13, %c3], %10 {strides = array<i32>} : memref<142x27xf32, #tpu.memory_space<vmem>>, vector<142x3xf32>,
    %c2 = arith.constant 2 : index
    %c0_14 = arith.constant 0 : index
    %12 = vector.load %arg7[%c2, %c0_14] : memref<180x3xbf16, #tpu.memory_space<vmem>>, vector<142x3xbf16>
    %13 = arith.extf %12 : vector<142x3xbf16> to vector<142x3xf32>
    %c0_15 = arith.constant 0 : index
    %c6 = arith.constant 6 : index
    %14 = vector.load %arg8[%c0_15, %c6] : memref<142x27xf32, #tpu.memory_space<vmem>>, vector<142x3xf32>
    tpu.vector_store %arg8[%c0_15, %c6], %13 {strides = array<i32>} : memref<142x27xf32, #tpu.memory_space<vmem>>, vector<142x3xf32>,
    %c18 = arith.constant 18 : index
    %c0_16 = arith.constant 0 : index
    %15 = vector.load %arg7[%c18, %c0_16] : memref<180x3xbf16, #tpu.memory_space<vmem>>, vector<142x3xbf16>
    %16 = arith.extf %15 : vector<142x3xbf16> to vector<142x3xf32>
    %c0_17 = arith.constant 0 : index
    %c9 = arith.constant 9 : index
    %17 = vector.load %arg8[%c0_17, %c9] : memref<142x27xf32, #tpu.memory_space<vmem>>, vector<142x3xf32>
    tpu.vector_store %arg8[%c0_17, %c9], %16 {strides = array<i32>} : memref<142x27xf32, #tpu.memory_space<vmem>>, vector<142x3xf32>,
    %c19 = arith.constant 19 : index
    %c0_18 = arith.constant 0 : index
    %18 = vector.load %arg7[%c19, %c0_18] : memref<180x3xbf16, #tpu.memory_space<vmem>>, vector<142x3xbf16>
    %19 = arith.extf %18 : vector<142x3xbf16> to vector<142x3xf32>
    %c0_19 = arith.constant 0 : index
    %c12 = arith.constant 12 : index
    %20 = vector.load %arg8[%c0_19, %c12] : memref<142x27xf32, #tpu.memory_space<vmem>>, vector<142x3xf32>
    tpu.vector_store %arg8[%c0_19, %c12], %19 {strides = array<i32>} : memref<142x27xf32, #tpu.memory_space<vmem>>, vector<142x3xf32>,
    %c20 = arith.constant 20 : index
    %c0_20 = arith.constant 0 : index
    %21 = vector.load %arg7[%c20, %c0_20] : memref<180x3xbf16, #tpu.memory_space<vmem>>, vector<142x3xbf16>
    %22 = arith.extf %21 : vector<142x3xbf16> to vector<142x3xf32>
    %c0_21 = arith.constant 0 : index
    %c15 = arith.constant 15 : index
    %23 = vector.load %arg8[%c0_21, %c15] : memref<142x27xf32, #tpu.memory_space<vmem>>, vector<142x3xf32>
    tpu.vector_store %arg8[%c0_21, %c15], %22 {strides = array<i32>} : memref<142x27xf32, #tpu.memory_space<vmem>>, vector<142x3xf32>,
    %c36 = arith.constant 36 : index
    %c0_22 = arith.constant 0 : index
    %24 = vector.load %arg7[%c36, %c0_22] : memref<180x3xbf16, #tpu.memory_space<vmem>>, vector<142x3xbf16>
    %25 = arith.extf %24 : vector<142x3xbf16> to vector<142x3xf32>
    %c0_23 = arith.constant 0 : index
    %c18_24 = arith.constant 18 : index
    %26 = vector.load %arg8[%c0_23, %c18_24] : memref<142x27xf32, #tpu.memory_space<vmem>>, vector<142x3xf32>
    tpu.vector_store %arg8[%c0_23, %c18_24], %25 {strides = array<i32>} : memref<142x27xf32, #tpu.memory_space<vmem>>, vector<142x3xf32>,
    %c37 = arith.constant 37 : index
    %c0_25 = arith.constant 0 : index
    %27 = vector.load %arg7[%c37, %c0_25] : memref<180x3xbf16, #tpu.memory_space<vmem>>, vector<142x3xbf16>
    %28 = arith.extf %27 : vector<142x3xbf16> to vector<142x3xf32>
    %c0_26 = arith.constant 0 : index
    %c21 = arith.constant 21 : index
    %29 = vector.load %arg8[%c0_26, %c21] : memref<142x27xf32, #tpu.memory_space<vmem>>, vector<142x3xf32>
    tpu.vector_store %arg8[%c0_26, %c21], %28 {strides = array<i32>} : memref<142x27xf32, #tpu.memory_space<vmem>>, vector<142x3xf32>,
    %c38 = arith.constant 38 : index
    %c0_27 = arith.constant 0 : index
    %30 = vector.load %arg7[%c38, %c0_27] : memref<180x3xbf16, #tpu.memory_space<vmem>>, vector<142x3xbf16>
    %31 = arith.extf %30 : vector<142x3xbf16> to vector<142x3xf32>
    %c0_28 = arith.constant 0 : index
    %c24 = arith.constant 24 : index
    %32 = vector.load %arg8[%c0_28, %c24] : memref<142x27xf32, #tpu.memory_space<vmem>>, vector<142x3xf32>
    tpu.vector_store %arg8[%c0_28, %c24], %31 {strides = array<i32>} : memref<142x27xf32, #tpu.memory_space<vmem>>, vector<142x3xf32>,
    %c0_29 = arith.constant 0 : index
    %c0_30 = arith.constant 0 : index
    %33 = vector.load %arg8[%c0_29, %c0_30] : memref<142x27xf32, #tpu.memory_space<vmem>>, vector<142x27xf32>
    %c0_31 = arith.constant 0 : index
    %c0_32 = arith.constant 0 : index
    %34 = vector.load %arg4[%c0_31, %c0_32] : memref<27x16xf32, #tpu.memory_space<vmem>>, vector<27x16xf32>
    %cst = arith.constant dense<0.000000e+00> : vector<142x16xf32>
    %35 = tpu.matmul %33, %34, %cst {dimension_numbers = #tpu.dot_dimension_numbers<[1], [0], [0], [1], [0, 0, 1, 1], [], []>} : vector<142x27xf32>, vector<27x16xf32>, vector<142x16xf32> -> vector<142x16xf32>
    %c0_33 = arith.constant 0 : index
    %c0_34 = arith.constant 0 : index
    %36 = vector.load %arg5[%c0_33, %c0_34] : memref<1x16xf32, #tpu.memory_space<vmem>>, vector<1x16xf32>
    %37 = vector.broadcast %36 : vector<1x16xf32> to vector<142x16xf32>
    %38 = arith.addf %35, %37 : vector<142x16xf32>
    %cst_35 = arith.constant 0.000000e+00 : f32
    %39 = vector.broadcast %cst_35 : f32 to vector<142x16xf32>
    %40 = arith.maximumf %38, %39 : vector<142x16xf32>
    %c0_36 = arith.constant 0 : index
    %c0_37 = arith.constant 0 : index
    %41 = vector.load %arg9[%c0_36, %c0_37] : memref<142x16xf32, #tpu.memory_space<vmem>>, vector<142x16xf32>
    tpu.vector_store %arg9[%c0_36, %c0_37], %40 {strides = array<i32>} : memref<142x16xf32, #tpu.memory_space<vmem>>, vector<142x16xf32>,
    %c0_38 = arith.constant 0 : index
    %c0_39 = arith.constant 0 : index
    %42 = tpu.strided_load %arg9[%c0_38, %c0_39] {strides = array<i32: 2, 1>} : memref<142x16xf32, #tpu.memory_space<vmem>>, vector<8x16xf32>
    %c1_40 = arith.constant 1 : index
    %c0_41 = arith.constant 0 : index
    %43 = tpu.strided_load %arg9[%c1_40, %c0_41] {strides = array<i32: 2, 1>} : memref<142x16xf32, #tpu.memory_space<vmem>>, vector<8x16xf32>
    %c18_42 = arith.constant 18 : index
    %c0_43 = arith.constant 0 : index
    %44 = tpu.strided_load %arg9[%c18_42, %c0_43] {strides = array<i32: 2, 1>} : memref<142x16xf32, #tpu.memory_space<vmem>>, vector<8x16xf32>
    %c19_44 = arith.constant 19 : index
    %c0_45 = arith.constant 0 : index
    %45 = tpu.strided_load %arg9[%c19_44, %c0_45] {strides = array<i32: 2, 1>} : memref<142x16xf32, #tpu.memory_space<vmem>>, vector<8x16xf32>
    %46 = arith.maximumf %42, %43 : vector<8x16xf32>
    %47 = arith.maximumf %44, %45 : vector<8x16xf32>
    %48 = arith.maximumf %46, %47 : vector<8x16xf32>
    %49 = arith.truncf %48 : vector<8x16xf32> to vector<8x16xbf16>
    %c0_46 = arith.constant 0 : index
    %c0_47 = arith.constant 0 : index
    %c0_48 = arith.constant 0 : index
    %c0_49 = arith.constant 0 : index
    %50 = vector.load %arg6[%c0_46, %c0_47, %c0_48, %c0_49] : memref<1x4x8x16xbf16, #tpu.memory_space<vmem>>, vector<1x1x8x16xbf16>
    %51 = vector.shape_cast %50 : vector<1x1x8x16xbf16> to vector<8x16xbf16>
    %52 = vector.shape_cast %49 : vector<8x16xbf16> to vector<1x1x8x16xbf16>
    tpu.vector_store %arg6[%c0_46, %c0_47, %c0_48, %c0_49], %52 {strides = array<i32>} : memref<1x4x8x16xbf16, #tpu.memory_space<vmem>>, vector<1x1x8x16xbf16>,
    %c36_50 = arith.constant 36 : index
    %c0_51 = arith.constant 0 : index
    %53 = tpu.strided_load %arg9[%c36_50, %c0_51] {strides = array<i32: 2, 1>} : memref<142x16xf32, #tpu.memory_space<vmem>>, vector<8x16xf32>
    %c37_52 = arith.constant 37 : index
    %c0_53 = arith.constant 0 : index
    %54 = tpu.strided_load %arg9[%c37_52, %c0_53] {strides = array<i32: 2, 1>} : memref<142x16xf32, #tpu.memory_space<vmem>>, vector<8x16xf32>
    %c54 = arith.constant 54 : index
    %c0_54 = arith.constant 0 : index
    %55 = tpu.strided_load %arg9[%c54, %c0_54] {strides = array<i32: 2, 1>} : memref<142x16xf32, #tpu.memory_space<vmem>>, vector<8x16xf32>
    %c55 = arith.constant 55 : index
    %c0_55 = arith.constant 0 : index
    %56 = tpu.strided_load %arg9[%c55, %c0_55] {strides = array<i32: 2, 1>} : memref<142x16xf32, #tpu.memory_space<vmem>>, vector<8x16xf32>
    %57 = arith.maximumf %53, %54 : vector<8x16xf32>
    %58 = arith.maximumf %55, %56 : vector<8x16xf32>
    %59 = arith.maximumf %57, %58 : vector<8x16xf32>
    %60 = arith.truncf %59 : vector<8x16xf32> to vector<8x16xbf16>
    %c0_56 = arith.constant 0 : index
    %c1_57 = arith.constant 1 : index
    %c0_58 = arith.constant 0 : index
    %c0_59 = arith.constant 0 : index
    %61 = vector.load %arg6[%c0_56, %c1_57, %c0_58, %c0_59] : memref<1x4x8x16xbf16, #tpu.memory_space<vmem>>, vector<1x1x8x16xbf16>
    %62 = vector.shape_cast %61 : vector<1x1x8x16xbf16> to vector<8x16xbf16>
    %63 = vector.shape_cast %60 : vector<8x16xbf16> to vector<1x1x8x16xbf16>
    tpu.vector_store %arg6[%c0_56, %c1_57, %c0_58, %c0_59], %63 {strides = array<i32>} : memref<1x4x8x16xbf16, #tpu.memory_space<vmem>>, vector<1x1x8x16xbf16>,
    %c72 = arith.constant 72 : index
    %c0_60 = arith.constant 0 : index
    %64 = tpu.strided_load %arg9[%c72, %c0_60] {strides = array<i32: 2, 1>} : memref<142x16xf32, #tpu.memory_space<vmem>>, vector<8x16xf32>
    %c73 = arith.constant 73 : index
    %c0_61 = arith.constant 0 : index
    %65 = tpu.strided_load %arg9[%c73, %c0_61] {strides = array<i32: 2, 1>} : memref<142x16xf32, #tpu.memory_space<vmem>>, vector<8x16xf32>
    %c90 = arith.constant 90 : index
    %c0_62 = arith.constant 0 : index
    %66 = tpu.strided_load %arg9[%c90, %c0_62] {strides = array<i32: 2, 1>} : memref<142x16xf32, #tpu.memory_space<vmem>>, vector<8x16xf32>
    %c91 = arith.constant 91 : index
    %c0_63 = arith.constant 0 : index
    %67 = tpu.strided_load %arg9[%c91, %c0_63] {strides = array<i32: 2, 1>} : memref<142x16xf32, #tpu.memory_space<vmem>>, vector<8x16xf32>
    %68 = arith.maximumf %64, %65 : vector<8x16xf32>
    %69 = arith.maximumf %66, %67 : vector<8x16xf32>
    %70 = arith.maximumf %68, %69 : vector<8x16xf32>
    %71 = arith.truncf %70 : vector<8x16xf32> to vector<8x16xbf16>
    %c0_64 = arith.constant 0 : index
    %c2_65 = arith.constant 2 : index
    %c0_66 = arith.constant 0 : index
    %c0_67 = arith.constant 0 : index
    %72 = vector.load %arg6[%c0_64, %c2_65, %c0_66, %c0_67] : memref<1x4x8x16xbf16, #tpu.memory_space<vmem>>, vector<1x1x8x16xbf16>
    %73 = vector.shape_cast %72 : vector<1x1x8x16xbf16> to vector<8x16xbf16>
    %74 = vector.shape_cast %71 : vector<8x16xbf16> to vector<1x1x8x16xbf16>
    tpu.vector_store %arg6[%c0_64, %c2_65, %c0_66, %c0_67], %74 {strides = array<i32>} : memref<1x4x8x16xbf16, #tpu.memory_space<vmem>>, vector<1x1x8x16xbf16>,
    %c108 = arith.constant 108 : index
    %c0_68 = arith.constant 0 : index
    %75 = tpu.strided_load %arg9[%c108, %c0_68] {strides = array<i32: 2, 1>} : memref<142x16xf32, #tpu.memory_space<vmem>>, vector<8x16xf32>
    %c109 = arith.constant 109 : index
    %c0_69 = arith.constant 0 : index
    %76 = tpu.strided_load %arg9[%c109, %c0_69] {strides = array<i32: 2, 1>} : memref<142x16xf32, #tpu.memory_space<vmem>>, vector<8x16xf32>
    %c126 = arith.constant 126 : index
    %c0_70 = arith.constant 0 : index
    %77 = tpu.strided_load %arg9[%c126, %c0_70] {strides = array<i32: 2, 1>} : memref<142x16xf32, #tpu.memory_space<vmem>>, vector<8x16xf32>
    %c127 = arith.constant 127 : index
    %c0_71 = arith.constant 0 : index
    %78 = tpu.strided_load %arg9[%c127, %c0_71] {strides = array<i32: 2, 1>} : memref<142x16xf32, #tpu.memory_space<vmem>>, vector<8x16xf32>
    %79 = arith.maximumf %75, %76 : vector<8x16xf32>
    %80 = arith.maximumf %77, %78 : vector<8x16xf32>
    %81 = arith.maximumf %79, %80 : vector<8x16xf32>
    %82 = arith.truncf %81 : vector<8x16xf32> to vector<8x16xbf16>
    %c0_72 = arith.constant 0 : index
    %c3_73 = arith.constant 3 : index
    %c0_74 = arith.constant 0 : index
    %c0_75 = arith.constant 0 : index
    %83 = vector.load %arg6[%c0_72, %c3_73, %c0_74, %c0_75] : memref<1x4x8x16xbf16, #tpu.memory_space<vmem>>, vector<1x1x8x16xbf16>
    %84 = vector.shape_cast %83 : vector<1x1x8x16xbf16> to vector<8x16xbf16>
    %85 = vector.shape_cast %82 : vector<8x16xbf16> to vector<1x1x8x16xbf16>
    tpu.vector_store %arg6[%c0_72, %c3_73, %c0_74, %c0_75], %85 {strides = array<i32>} : memref<1x4x8x16xbf16, #tpu.memory_space<vmem>>, vector<1x1x8x16xbf16>,
    return
  }
  func.func @transform_0(%arg0: i32, %arg1: i32) -> (i32, i32, i32) {
    %c0_i32 = arith.constant 0 : i32
    %c0_i32_0 = arith.constant 0 : i32
    return %arg0, %arg1, %c0_i32 : i32, i32, i32
  }
  func.func @transform_1(%arg0: i32, %arg1: i32) -> (i32, i32, i32) {
    %c1_i32 = arith.constant 1 : i32
    %0 = arith.addi %arg1, %c1_i32 : i32
    %c3_i32 = arith.constant 3 : i32
    %1 = arith.muli %0, %c3_i32 : i32
    %c0_i32 = arith.constant 0 : i32
    %c0_i32_0 = arith.constant 0 : i32
    return %arg0, %1, %c0_i32 : i32, i32, i32
  }
  func.func @transform_2(%arg0: i32, %arg1: i32) -> (i32, i32) {
    %c0_i32 = arith.constant 0 : i32
    %c0_i32_0 = arith.constant 0 : i32
    %c0_i32_1 = arith.constant 0 : i32
    return %c0_i32, %c0_i32_0 : i32, i32
  }
  func.func @transform_3(%arg0: i32, %arg1: i32) -> (i32, i32) {
    %c0_i32 = arith.constant 0 : i32
    %c0_i32_0 = arith.constant 0 : i32
    %c0_i32_1 = arith.constant 0 : i32
    return %c0_i32, %c0_i32_0 : i32, i32
  }
  func.func @transform_4(%arg0: i32, %arg1: i32) -> (i32, i32, i32, i32) {
    %c0_i32 = arith.constant 0 : i32
    %c0_i32_0 = arith.constant 0 : i32
    %c0_i32_1 = arith.constant 0 : i32
    return %arg0, %arg1, %c0_i32, %c0_i32_0 : i32, i32, i32, i32
  }
}

module attributes {stable_mosaic.version = 11 : i64} {
  func.func @_mlp_head_kernel(%arg0: i32, %arg1: memref<2x384xbf16, #tpu.memory_space<vmem>>, %arg2: memref<384x128xbf16, #tpu.memory_space<vmem>>, %arg3: memref<1x128xf32, #tpu.memory_space<vmem>>, %arg4: memref<128x1xf32, #tpu.memory_space<vmem>>, %arg5: memref<1x1xf32, #tpu.memory_space<vmem>>, %arg6: memref<2x1xf32, #tpu.memory_space<vmem>>, %arg7: memref<2x128xf32, #tpu.memory_space<vmem>>) attributes {dimension_semantics = [#tpu.dimension_semantics<arbitrary>], iteration_bounds = array<i64: 1>, scalar_prefetch = 0 : i64, scratch_operands = 1 : i64, tpu.core_type = #tpu.core_type<tc>, window_params = [{transform_indices = @transform_0, window_bounds = array<i64: 2, 384>}, {transform_indices = @transform_1, window_bounds = array<i64: 384, 128>}, {pipeline_mode = #tpu.pipeline_mode<synchronous>, transform_indices = @transform_2, window_bounds = array<i64: 1, 128>}, {pipeline_mode = #tpu.pipeline_mode<synchronous>, transform_indices = @transform_3, window_bounds = array<i64: 128, 1>}, {pipeline_mode = #tpu.pipeline_mode<synchronous>, transform_indices = @transform_4, window_bounds = array<i64: 1, 1>}, {pipeline_mode = #tpu.pipeline_mode<synchronous>, transform_indices = @transform_5, window_bounds = array<i64: 2, 1>}]} {
    %c0_i32 = arith.constant 0 : i32
    %0 = arith.cmpi eq, %arg0, %c0_i32 : i32
    %1 = arith.extui %0 : i1 to i32
    %c0_i32_0 = arith.constant 0 : i32
    %2 = arith.cmpi ne, %1, %c0_i32_0 : i32
    scf.if %2 {
      %cst_10 = arith.constant 0.000000e+00 : f32
      %12 = vector.broadcast %cst_10 : f32 to vector<2x128xf32>
      %c0_11 = arith.constant 0 : index
      %c0_12 = arith.constant 0 : index
      %13 = vector.load %arg7[%c0_11, %c0_12] : memref<2x128xf32, #tpu.memory_space<vmem>>, vector<2x128xf32>
      tpu.vector_store %arg7[%c0_11, %c0_12], %12 {strides = array<i32>} : memref<2x128xf32, #tpu.memory_space<vmem>>, vector<2x128xf32>,
    } else {
    }
    %c0 = arith.constant 0 : index
    %c0_1 = arith.constant 0 : index
    %3 = vector.load %arg7[%c0, %c0_1] : memref<2x128xf32, #tpu.memory_space<vmem>>, vector<2x128xf32>
    %c0_2 = arith.constant 0 : index
    %c0_3 = arith.constant 0 : index
    %4 = vector.load %arg1[%c0_2, %c0_3] : memref<2x384xbf16, #tpu.memory_space<vmem>>, vector<2x384xbf16>
    %c0_4 = arith.constant 0 : index
    %c0_5 = arith.constant 0 : index
    %5 = vector.load %arg2[%c0_4, %c0_5] : memref<384x128xbf16, #tpu.memory_space<vmem>>, vector<384x128xbf16>
    %cst = arith.constant dense<0.000000e+00> : vector<2x128xf32>
    %6 = tpu.matmul %4, %5, %cst {dimension_numbers = #tpu.dot_dimension_numbers<[1], [0], [0], [1], [0, 0, 1, 1], [], []>} : vector<2x384xbf16>, vector<384x128xbf16>, vector<2x128xf32> -> vector<2x128xf32>
    %7 = arith.addf %3, %6 : vector<2x128xf32>
    %c0_6 = arith.constant 0 : index
    %c0_7 = arith.constant 0 : index
    %8 = vector.load %arg7[%c0_6, %c0_7] : memref<2x128xf32, #tpu.memory_space<vmem>>, vector<2x128xf32>
    tpu.vector_store %arg7[%c0_6, %c0_7], %7 {strides = array<i32>} : memref<2x128xf32, #tpu.memory_space<vmem>>, vector<2x128xf32>,
    %c0_i32_8 = arith.constant 0 : i32
    %9 = arith.cmpi eq, %arg0, %c0_i32_8 : i32
    %10 = arith.extui %9 : i1 to i32
    %c0_i32_9 = arith.constant 0 : i32
    %11 = arith.cmpi ne, %10, %c0_i32_9 : i32
    scf.if %11 {
      %c0_10 = arith.constant 0 : index
      %c0_11 = arith.constant 0 : index
      %12 = vector.load %arg7[%c0_10, %c0_11] : memref<2x128xf32, #tpu.memory_space<vmem>>, vector<2x128xf32>
      %c0_12 = arith.constant 0 : index
      %c0_13 = arith.constant 0 : index
      %13 = vector.load %arg3[%c0_12, %c0_13] : memref<1x128xf32, #tpu.memory_space<vmem>>, vector<1x128xf32>
      %14 = vector.broadcast %13 : vector<1x128xf32> to vector<2x128xf32>
      %15 = arith.addf %12, %14 : vector<2x128xf32>
      %cst_14 = arith.constant 0.000000e+00 : f32
      %16 = vector.broadcast %cst_14 : f32 to vector<2x128xf32>
      %17 = arith.maximumf %15, %16 : vector<2x128xf32>
      %c0_15 = arith.constant 0 : index
      %c0_16 = arith.constant 0 : index
      %18 = vector.load %arg4[%c0_15, %c0_16] : memref<128x1xf32, #tpu.memory_space<vmem>>, vector<128x1xf32>
      %cst_17 = arith.constant dense<0.000000e+00> : vector<2x1xf32>
      %19 = tpu.matmul %17, %18, %cst_17 {dimension_numbers = #tpu.dot_dimension_numbers<[1], [0], [0], [1], [0, 0, 1, 1], [], []>} : vector<2x128xf32>, vector<128x1xf32>, vector<2x1xf32> -> vector<2x1xf32>
      %c0_18 = arith.constant 0 : index
      %c0_19 = arith.constant 0 : index
      %20 = vector.load %arg5[%c0_18, %c0_19] : memref<1x1xf32, #tpu.memory_space<vmem>>, vector<1x1xf32>
      %21 = vector.broadcast %20 : vector<1x1xf32> to vector<2x1xf32>
      %22 = arith.addf %19, %21 : vector<2x1xf32>
      %23 = arith.negf %22 : vector<2x1xf32>
      %24 = math.exp %23 : vector<2x1xf32>
      %cst_20 = arith.constant 1.000000e+00 : f32
      %25 = vector.broadcast %cst_20 : f32 to vector<2x1xf32>
      %26 = arith.addf %25, %24 : vector<2x1xf32>
      %27 = arith.divf %25, %26 : vector<2x1xf32>
      %c0_21 = arith.constant 0 : index
      %c0_22 = arith.constant 0 : index
      %28 = vector.load %arg6[%c0_21, %c0_22] : memref<2x1xf32, #tpu.memory_space<vmem>>, vector<2x1xf32>
      tpu.vector_store %arg6[%c0_21, %c0_22], %27 {strides = array<i32>} : memref<2x1xf32, #tpu.memory_space<vmem>>, vector<2x1xf32>,
    } else {
    }
    return
  }
  func.func @transform_0(%arg0: i32) -> (i32, i32) {
    %c0_i32 = arith.constant 0 : i32
    %c0_i32_0 = arith.constant 0 : i32
    return %c0_i32, %arg0 : i32, i32
  }
  func.func @transform_1(%arg0: i32) -> (i32, i32) {
    %c0_i32 = arith.constant 0 : i32
    %c0_i32_0 = arith.constant 0 : i32
    return %arg0, %c0_i32 : i32, i32
  }
  func.func @transform_2(%arg0: i32) -> (i32, i32) {
    %c0_i32 = arith.constant 0 : i32
    %c0_i32_0 = arith.constant 0 : i32
    %c0_i32_1 = arith.constant 0 : i32
    return %c0_i32, %c0_i32_0 : i32, i32
  }
  func.func @transform_3(%arg0: i32) -> (i32, i32) {
    %c0_i32 = arith.constant 0 : i32
    %c0_i32_0 = arith.constant 0 : i32
    %c0_i32_1 = arith.constant 0 : i32
    return %c0_i32, %c0_i32_0 : i32, i32
  }
  func.func @transform_4(%arg0: i32) -> (i32, i32) {
    %c0_i32 = arith.constant 0 : i32
    %c0_i32_0 = arith.constant 0 : i32
    %c0_i32_1 = arith.constant 0 : i32
    return %c0_i32, %c0_i32_0 : i32, i32
  }
  func.func @transform_5(%arg0: i32) -> (i32, i32) {
    %c0_i32 = arith.constant 0 : i32
    %c0_i32_0 = arith.constant 0 : i32
    %c0_i32_1 = arith.constant 0 : i32
    return %c0_i32, %c0_i32_0 : i32, i32
  }
}

</mosaic_0001>

<llo_original>
// kernel: cnn_forward.5
$region0: #{cnn_forward.5}
  #allocation0 [shape = 'u32[]', space=smem, size = 0x4, offset = 0x4, fixed_abs, tag = 'smem constant byte address 0x4 - core index']
  #allocation1 [shape = 'u32[144,128]{1,0:T(1,128)}', space=vmem, size = 0x12000, scoped, tag = 'internal scratch']
  #allocation2 [shape = 'f32[2,128]{1,0:T(2,128)}', space=vmem, size = 0x400, scoped, tag = 'scratch operand']
  #allocation3 [shape = 'f32[1,1]{1,0:T(1,128)S(1)}', space=vmem, size = 0x200, scoped, tag = 'scoped memory for cnn_forward.5']
  %s0 = inlined_call_operand.hbm [shape: bf16[2,384], index: 0, kind: input, shape index: {}]
  %s1 = inlined_call_operand.hbm [shape: bf16[384,128], index: 1, kind: input, shape index: {}]
  %s2 = inlined_call_operand.hbm [shape: f32[1,128], index: 2, kind: input, shape index: {}]
  %s3 = inlined_call_operand.hbm [shape: f32[128,1], index: 3, kind: input, shape index: {}]
  %s4 = inlined_call_operand.<no memory space> [shape: f32[1,1], index: 4, kind: input, shape index: {}]
  %s5 = inlined_call_operand.hbm [shape: f32[2,1], index: 5, kind: output, shape index: {}]
  %s6 = sld [smem:[#allocation0]]
  $region54: #{cnn_forward.5} parent=0
    _
  %s8 = ssub.s32 1, %s6
  %s9 = scalar_select 0, %s8, %s6
  %v10 = vstv %s4
  %11 = vst [vmem:[#allocation3] sm:$0x1] %v10
  $region1: #{cnn_forward.5} parent=0
    #allocation4 [shape = 'u8[1536]{0}', space=vmem, size = 0x800, scoped, tag = 'input window, operand 0, single buffered']
    #allocation5 [shape = 's32[1]{0}', space=sflag, size = 0x4, scoped, tag = 'scoped memory for cnn_forward.5']
    #allocation6 [shape = 's32[1]{0}', space=sflag, size = 0x4, scoped, tag = 'scoped memory for cnn_forward.5']
    #allocation7 [shape = 'u8[98304]{0}', space=vmem, size = 0x18000, scoped, tag = 'input window, operand 1, single buffered']
    #allocation8 [shape = 's32[1]{0}', space=sflag, size = 0x4, scoped, tag = 'scoped memory for cnn_forward.5']
    #allocation9 [shape = 'u8[512]{0}', space=vmem, size = 0x400, scoped, tag = 'input window, operand 2, single buffered']
    #allocation10 [shape = 'u8[65536]{0}', space=vmem, size = 0x10000, scoped, tag = 'input window, operand 3, single buffered']
    #allocation11 [shape = 's32[1]{0}', space=sflag, size = 0x4, scoped, tag = 'scoped memory for cnn_forward.5']
    #allocation12 [shape = 'u8[1024]{0}', space=vmem, size = 0x400, scoped, tag = 'output window, operand 0, single buffered']
    %12 = vsyncpa [#allocation5], 0
    %13 = vsyncpa [#allocation8], 0
    %14 = vsyncpa [#allocation11], 0
    %15 = vsyncpa [#allocation6], 0
    // Predicated region
    $region2: #{cnn_forward.5} parent=1 // pred_check
      _
    $region3: #{cnn_forward.5} parent=1 // pred_check_branch
      %17 = sbr.rel (0) target = $region5
    $region4: #{cnn_forward.5} parent=1 // pred_region
      %s19 = ssub.s32 48, 48
      %20 = vsyncadd [#allocation5], %s19
      %s22 = sshll.u32 [#allocation4], 4
      %s23 = int_to_ptr.vmem [resolvable:$true] %s22
      %25 = dma.hbm_to_vmem [thread:$0]  %s0, 48, %s23, [#allocation5]
    $region5: #{cnn_forward.5} parent=1 // pred_fallthru
      _
    // Predicated region
    $region6: #{cnn_forward.5} parent=1 // pred_check
      _
    $region7: #{cnn_forward.5} parent=1 // pred_check_branch
      %27 = sbr.rel (0) target = $region9
    $region8: #{cnn_forward.5} parent=1 // pred_region
      %s29 = ssub.s32 3072, 3072
      %30 = vsyncadd [#allocation8], %s29
      %s31 = sshll.u32 [#allocation7], 4
      %s32 = int_to_ptr.vmem [resolvable:$true] %s31
      %37 = dma.hbm_to_vmem [thread:$0]  %s1, 3072, %s32, [#allocation8], 64, 64, 4
    $region9: #{cnn_forward.5} parent=1 // pred_fallthru
      _
    // Predicated region
    $region10: #{cnn_forward.5} parent=1 // pred_check
      _
    $region11: #{cnn_forward.5} parent=1 // pred_check_branch
      %39 = sbr.rel (0) target = $region13
    $region12: #{cnn_forward.5} parent=1 // pred_region
      %s41 = ssub.s32 16, 16
      %42 = vsyncadd [#allocation8], %s41
      %s44 = sshll.u32 [#allocation9], 4
      %s45 = int_to_ptr.vmem [resolvable:$true] %s44
      %47 = dma.hbm_to_vmem [thread:$0]  %s2, 16, %s45, [#allocation8]
    $region13: #{cnn_forward.5} parent=1 // pred_fallthru
      _
    // Predicated region
    $region14: #{cnn_forward.5} parent=1 // pred_check
      _
    $region15: #{cnn_forward.5} parent=1 // pred_check_branch
      %49 = sbr.rel (0) target = $region17
    $region16: #{cnn_forward.5} parent=1 // pred_region
      %s51 = ssub.s32 2048, 2048
      %52 = vsyncadd [#allocation11], %s51
      %s53 = sshll.u32 [#allocation10], 4
      %s54 = int_to_ptr.vmem [resolvable:$true] %s53
      %59 = dma.hbm_to_vmem [thread:$0]  %s3, 2048, %s54, [#allocation11], 128, 128, 8
    $region17: #{cnn_forward.5} parent=1 // pred_fallthru
      _
    // Predicated region
    $region18: #{cnn_forward.5} parent=1 // pred_check
      _
    $region19: #{cnn_forward.5} parent=1 // pred_check_branch
      %61 = sbr.rel (0) target = $region21
    $region20: #{cnn_forward.5} parent=1 // pred_region
      _
    $region21: #{cnn_forward.5} parent=1 // pred_fallthru
      _
    // Predicated region
    $region22: #{cnn_forward.5} parent=1 // pred_check
      _
    $region23: #{cnn_forward.5} parent=1 // pred_check_branch
      %63 = sbr.rel (0) target = $region25
    $region24: #{cnn_forward.5} parent=1 // pred_region
      %64 = dma.done [#allocation5], 48
    $region25: #{cnn_forward.5} parent=1 // pred_fallthru
      _
    // Predicated region
    $region26: #{cnn_forward.5} parent=1 // pred_check
      _
    $region27: #{cnn_forward.5} parent=1 // pred_check_branch
      %66 = sbr.rel (0) target = $region29
    $region28: #{cnn_forward.5} parent=1 // pred_region
      %67 = dma.done [#allocation8], 3072
    $region29: #{cnn_forward.5} parent=1 // pred_fallthru
      _
    // Predicated region
    $region30: #{cnn_forward.5} parent=1 // pred_check
      _
    $region31: #{cnn_forward.5} parent=1 // pred_check_branch
      %69 = sbr.rel (0) target = $region33
    $region32: #{cnn_forward.5} parent=1 // pred_region
      %70 = dma.done [#allocation8], 16
    $region33: #{cnn_forward.5} parent=1 // pred_fallthru
      _
    // Predicated region
    $region34: #{cnn_forward.5} parent=1 // pred_check
      _
    $region35: #{cnn_forward.5} parent=1 // pred_check_branch
      %72 = sbr.rel (0) target = $region37
    $region36: #{cnn_forward.5} parent=1 // pred_region
      %73 = dma.done [#allocation11], 2048
    $region37: #{cnn_forward.5} parent=1 // pred_fallthru
      _
    %p75 = scmp.eq.s32.totalorder 0, 0
    // Predicated region
    $region38: #{cnn_forward.5} parent=1 // pred_check
      %p76 = pneg %p75
    $region39: #{cnn_forward.5} parent=1 // pred_check_branch
      %78 = sbr.rel (%p76) target = $region41
    $region40: #{cnn_forward.5} parent=1 // pred_region
      %79 = vst [vmem:[#allocation2] sm:$0x3] 0.0
    $region41: #{cnn_forward.5} parent=1 // pred_fallthru
      _
    %v80 = vld [vmem:[#allocation2] sm:$0x3]
    %v81 = vld [vmem:[#allocation4] sm:$0x7]
    %v82 = vld [vmem:[#allocation7] sm:$0xf]
    %v83 = vld [vmem:[#allocation7 + $0x4] sm:$0xf]
    %v84 = vld [vmem:[#allocation7 + $0x8] sm:$0xf]
    %v85 = vld [vmem:[#allocation7 + $0xc] sm:$0xf]
    %v86 = vld [vmem:[#allocation7 + $0x10] sm:$0xf]
    %v87 = vld [vmem:[#allocation7 + $0x14] sm:$0xf]
    %v88 = vld [vmem:[#allocation7 + $0x18] sm:$0xf]
    %v89 = vld [vmem:[#allocation7 + $0x1c] sm:$0xf]
    %v90 = vld [vmem:[#allocation7 + $0x20] sm:$0xf]
    %v91 = vld [vmem:[#allocation7 + $0x24] sm:$0xf]
    %v92 = vld [vmem:[#allocation7 + $0x28] sm:$0xf]
    %v93 = vld [vmem:[#allocation7 + $0x2c] sm:$0xf]
    %v94 = vld [vmem:[#allocation7 + $0x30] sm:$0xf]
    %v95 = vld [vmem:[#allocation7 + $0x34] sm:$0xf]
    %v96 = vld [vmem:[#allocation7 + $0x38] sm:$0xf]
    %v97 = vld [vmem:[#allocation7 + $0x3c] sm:$0xf]
    %v98 = vld [vmem:[#allocation7 + $0x40] sm:$0xf]
    %v99 = vld [vmem:[#allocation7 + $0x44] sm:$0xf]
    %v100 = vld [vmem:[#allocation7 + $0x48] sm:$0xf]
    %v101 = vld [vmem:[#allocation7 + $0x4c] sm:$0xf]
    %v102 = vld [vmem:[#allocation7 + $0x50] sm:$0xf]
    %v103 = vld [vmem:[#allocation7 + $0x54] sm:$0xf]
    %v104 = vld [vmem:[#allocation7 + $0x58] sm:$0xf]
    %v105 = vld [vmem:[#allocation7 + $0x5c] sm:$0xf]
    %v106 = vld [vmem:[#allocation7 + $0x60] sm:$0xf]
    %v107 = vld [vmem:[#allocation7 + $0x64] sm:$0xf]
    %v108 = vld [vmem:[#allocation7 + $0x68] sm:$0xf]
    %v109 = vld [vmem:[#allocation7 + $0x6c] sm:$0xf]
    %v110 = vld [vmem:[#allocation7 + $0x70] sm:$0xf]
    %v111 = vld [vmem:[#allocation7 + $0x74] sm:$0xf]
    %v112 = vld [vmem:[#allocation7 + $0x78] sm:$0xf]
    %v113 = vld [vmem:[#allocation7 + $0x7c] sm:$0xf]
    %v114 = vld [vmem:[#allocation7 + $0x80] sm:$0xf]
    %v115 = vld [vmem:[#allocation7 + $0x84] sm:$0xf]
    %v116 = vld [vmem:[#allocation7 + $0x88] sm:$0xf]
    %v117 = vld [vmem:[#allocation7 + $0x8c] sm:$0xf]
    %v118 = vld [vmem:[#allocation7 + $0x90] sm:$0xf]
    %v119 = vld [vmem:[#allocation7 + $0x94] sm:$0xf]
    %v120 = vld [vmem:[#allocation7 + $0x98] sm:$0xf]
    %v121 = vld [vmem:[#allocation7 + $0x9c] sm:$0xf]
    %v122 = vld [vmem:[#allocation7 + $0xa0] sm:$0xf]
    %v123 = vld [vmem:[#allocation7 + $0xa4] sm:$0xf]
    %v124 = vld [vmem:[#allocation7 + $0xa8] sm:$0xf]
    %v125 = vld [vmem:[#allocation7 + $0xac] sm:$0xf]
    %v126 = vld [vmem:[#allocation7 + $0xb0] sm:$0xf]
    %v127 = vld [vmem:[#allocation7 + $0xb4] sm:$0xf]
    %v128 = vld [vmem:[#allocation7 + $0xb8] sm:$0xf]
    %v129 = vld [vmem:[#allocation7 + $0xbc] sm:$0xf]
    %v132 = vunpack.c.l.s4 1966171168
    %v133 = vunpack.c.0.s8 %v132
    %v134 = vlaneseq
    %v135 = vshrl.u32 %v134, 7
    %v136 = vsub.s32 %v133, %v135
    %v137 = vrot.slane %v81, %v136
    %v138 = vcombine.high %v137, %v137
    %v140 = vunpack.c.l.s4 1966171168
    %v141 = vunpack.c.0.s8 %v140
    %v142 = vlaneseq
    %v143 = vshrl.u32 %v142, 7
    %v144 = vsub.s32 %v141, %v143
    %v145 = vrot.slane %v137, %v144
    %v147 = vunpack.c.l.s4 1966171168
    %v148 = vunpack.c.0.s8 %v147
    %v149 = vlaneseq
    %v150 = vshrl.u32 %v149, 7
    %v151 = vsub.s32 %v148, %v150
    %v152 = vrot.slane %v138, %v151
    %v153 = vcombine.high %v145, %v145
    %v205 = vunpack.c.l.b16 %v82
    %v206 = vunpack.c.l.b16 %v83
    %v207 = vunpack.c.l.b16 %v84
    %v208 = vunpack.c.l.b16 %v85
    %v209 = vunpack.c.l.b16 %v86
    %v210 = vunpack.c.l.b16 %v87
    %v211 = vunpack.c.l.b16 %v88
    %v212 = vunpack.c.l.b16 %v89
    %v213 = vunpack.c.l.b16 %v90
    %v214 = vunpack.c.l.b16 %v91
    %v215 = vunpack.c.l.b16 %v92
    %v216 = vunpack.c.l.b16 %v93
    %v217 = vunpack.c.l.b16 %v94
    %v218 = vunpack.c.l.b16 %v95
    %v219 = vunpack.c.l.b16 %v96
    %v220 = vunpack.c.l.b16 %v97
    %v221 = vunpack.c.l.b16 %v98
    %v222 = vunpack.c.l.b16 %v99
    %v223 = vunpack.c.l.b16 %v100
    %v224 = vunpack.c.l.b16 %v101
    %v225 = vunpack.c.l.b16 %v102
    %v226 = vunpack.c.l.b16 %v103
    %v227 = vunpack.c.l.b16 %v104
    %v228 = vunpack.c.l.b16 %v105
    %v229 = vunpack.c.l.b16 %v106
    %v230 = vunpack.c.l.b16 %v107
    %v231 = vunpack.c.l.b16 %v108
    %v232 = vunpack.c.l.b16 %v109
    %v233 = vunpack.c.l.b16 %v110
    %v234 = vunpack.c.l.b16 %v111
    %v235 = vunpack.c.l.b16 %v112
    %v236 = vunpack.c.l.b16 %v113
    %v237 = vunpack.c.l.b16 %v114
    %v238 = vunpack.c.l.b16 %v115
    %v239 = vunpack.c.l.b16 %v116
    %v240 = vunpack.c.l.b16 %v117
    %v241 = vunpack.c.l.b16 %v118
    %v242 = vunpack.c.l.b16 %v119
    %v243 = vunpack.c.l.b16 %v120
    %v244 = vunpack.c.l.b16 %v121
    %v245 = vunpack.c.l.b16 %v122
    %v246 = vunpack.c.l.b16 %v123
    %v247 = vunpack.c.l.b16 %v124
    %v248 = vunpack.c.l.b16 %v125
    %v249 = vunpack.c.l.b16 %v126
    %v250 = vunpack.c.l.b16 %v127
    %v251 = vunpack.c.l.b16 %v128
    %v252 = vunpack.c.l.b16 %v129
    %v253 = vpack.c.b16 %v206, %v205
    %v254 = vpack.c.b16 %v208, %v207
    %v255 = vpack.c.b16 %v210, %v209
    %v256 = vpack.c.b16 %v212, %v211
    %v257 = vpack.c.b16 %v214, %v213
    %v258 = vpack.c.b16 %v216, %v215
    %v259 = vpack.c.b16 %v218, %v217
    %v260 = vpack.c.b16 %v220, %v219
    %v261 = vpack.c.b16 %v222, %v221
    %v262 = vpack.c.b16 %v224, %v223
    %v263 = vpack.c.b16 %v226, %v225
    %v264 = vpack.c.b16 %v228, %v227
    %v265 = vpack.c.b16 %v230, %v229
    %v266 = vpack.c.b16 %v232, %v231
    %v267 = vpack.c.b16 %v234, %v233
    %v268 = vpack.c.b16 %v236, %v235
    %v269 = vpack.c.b16 %v238, %v237
    %v270 = vpack.c.b16 %v240, %v239
    %v271 = vpack.c.b16 %v242, %v241
    %v272 = vpack.c.b16 %v244, %v243
    %v273 = vpack.c.b16 %v246, %v245
    %v274 = vpack.c.b16 %v248, %v247
    %v275 = vpack.c.b16 %v250, %v249
    %v276 = vpack.c.b16 %v252, %v251
    %301 = vmatprep.subr.bf16.mxu0 0
    %302 = vmatpush1.bf16.msra.mxu0 %v253
    %303 = vmatprep.subr.bf16.mxu0 0
    %304 = vmatpush1.bf16.msra.mxu0 %v254
    %305 = vmatprep.subr.bf16.mxu0 0
    %306 = vmatpush1.bf16.msra.mxu0 %v255
    %307 = vmatprep.subr.bf16.mxu0 0
    %308 = vmatpush1.bf16.msra.mxu0 %v256
    %309 = vmatprep.subr.bf16.mxu0 0
    %310 = vmatpush1.bf16.msra.mxu0 %v257
    %311 = vmatprep.subr.bf16.mxu0 0
    %312 = vmatpush1.bf16.msra.mxu0 %v258
    %313 = vmatprep.subr.bf16.mxu0 0
    %314 = vmatpush1.bf16.msra.mxu0 %v259
    %315 = vmatprep.subr.bf16.mxu0 0
    %316 = vmatpush1.bf16.msra.mxu0 %v260
    %317 = vmatprep.subr.bf16.mxu0 0
    %318 = vmatpush1.bf16.msra.mxu0 %v261
    %319 = vmatprep.subr.bf16.mxu0 0
    %320 = vmatpush1.bf16.msra.mxu0 %v262
    %321 = vmatprep.subr.bf16.mxu0 0
    %322 = vmatpush1.bf16.msra.mxu0 %v263
    %323 = vmatprep.subr.bf16.mxu0 0
    %324 = vmatpush1.bf16.msra.mxu0 %v264
    %325 = vmatprep.subr.bf16.mxu0 0
    %326 = vmatpush1.bf16.msra.mxu0 %v265
    %327 = vmatprep.subr.bf16.mxu0 0
    %328 = vmatpush1.bf16.msra.mxu0 %v266
    %329 = vmatprep.subr.bf16.mxu0 0
    %330 = vmatpush1.bf16.msra.mxu0 %v267
    %331 = vmatprep.subr.bf16.mxu0 0
    %332 = vmatpush1.bf16.msra.mxu0 %v268
    %333 = vmatprep.mubr.bf16.mxu0 %v152
    %334 = vmatmul.mubr.bf16.gmra.mrb[0].mxu0 %v145
    %v335 = vpop.f32.mrb[0].mxu0
    %v336 = vadd.f32 0.0, %v335
    %v337 = vpop.f32.mrb[0].mxu0
    %v338 = vpop.f32.mrb[0].mxu0
    %v339 = vpop.f32.mrb[0].mxu0
    %340 = vdwg.mxu0
    %341 = vmatprep.subr.bf16.mxu0 0
    %342 = vmatpush1.bf16.msra.mxu0 %v269
    %343 = vmatprep.subr.bf16.mxu0 0
    %344 = vmatpush1.bf16.msra.mxu0 %v270
    %345 = vmatprep.subr.bf16.mxu0 0
    %346 = vmatpush1.bf16.msra.mxu0 %v271
    %347 = vmatprep.subr.bf16.mxu0 0
    %348 = vmatpush1.bf16.msra.mxu0 %v272
    %349 = vmatprep.subr.bf16.mxu0 0
    %350 = vmatpush1.bf16.msra.mxu0 %v273
    %351 = vmatprep.subr.bf16.mxu0 0
    %352 = vmatpush1.bf16.msra.mxu0 %v274
    %353 = vmatprep.subr.bf16.mxu0 0
    %354 = vmatpush1.bf16.msra.mxu0 %v275
    %355 = vmatprep.subr.bf16.mxu0 0
    %356 = vmatpush1.bf16.msra.mxu0 %v276
    %357 = vmatprep.subr.bf16.mxu0 0
    %358 = vmatpush1.bf16.msra.mxu0 0
    %359 = vmatprep.subr.bf16.mxu0 0
    %360 = vmatpush1.bf16.msra.mxu0 0
    %361 = vmatprep.subr.bf16.mxu0 0
    %362 = vmatpush1.bf16.msra.mxu0 0
    %363 = vmatprep.subr.bf16.mxu0 0
    %364 = vmatpush1.bf16.msra.mxu0 0
    %365 = vmatprep.subr.bf16.mxu0 0
    %366 = vmatpush1.bf16.msra.mxu0 0
    %367 = vmatprep.subr.bf16.mxu0 0
    %368 = vmatpush1.bf16.msra.mxu0 0
    %369 = vmatprep.subr.bf16.mxu0 0
    %370 = vmatpush1.bf16.msra.mxu0 0
    %371 = vmatprep.subr.bf16.mxu0 0
    %372 = vmatpush1.bf16.msra.mxu0 0
    %373 = vmatprep.mubr.bf16.mxu0 0
    %374 = vmatmul.mubr.bf16.gmra.mrb[0].mxu0 %v153
    %v375 = vpop.f32.mrb[0].mxu0
    %v376 = vadd.f32 %v336, %v375
    %v377 = vpop.f32.mrb[0].mxu0
    %v378 = vpop.f32.mrb[0].mxu0
    %v379 = vpop.f32.mrb[0].mxu0
    %380 = vdwg.mxu0
    %v381 = vadd.f32 %v80, %v376
    %382 = vst [vmem:[#allocation2] sm:$0x3] %v381
    // Predicated region
    $region42: #{cnn_forward.5} parent=1 // pred_check
      %p383 = pneg %p75
    $region43: #{cnn_forward.5} parent=1 // pred_check_branch
      %385 = sbr.rel (%p383) target = $region45
    $region44: #{cnn_forward.5} parent=1 // pred_region
      %v386 = vld [vmem:[#allocation2] sm:$0x3]
      %v387 = vld [vmem:[#allocation9] sm:$0x1]
      %v389 = vlaneseq
      %v390 = vshrl.u32 %v389, 7
      %v391 = vsub.s32 0, %v390
      %v392 = vrot.slane %v387, %v391
      %v394 = vadd.f32 %v386, %v392
      %v395 = vmax.f32 %v394, 0.0
      %v396 = vld [vmem:[#allocation10] sm:$0xff]
      %v397 = vld [vmem:[#allocation10 + $0x8] sm:$0xff]
      %v398 = vld [vmem:[#allocation10 + $0x10] sm:$0xff]
      %v399 = vld [vmem:[#allocation10 + $0x18] sm:$0xff]
      %v400 = vld [vmem:[#allocation10 + $0x20] sm:$0xff]
      %v401 = vld [vmem:[#allocation10 + $0x28] sm:$0xff]
      %v402 = vld [vmem:[#allocation10 + $0x30] sm:$0xff]
      %v403 = vld [vmem:[#allocation10 + $0x38] sm:$0xff]
      %v404 = vld [vmem:[#allocation10 + $0x40] sm:$0xff]
      %v405 = vld [vmem:[#allocation10 + $0x48] sm:$0xff]
      %v406 = vld [vmem:[#allocation10 + $0x50] sm:$0xff]
      %v407 = vld [vmem:[#allocation10 + $0x58] sm:$0xff]
      %v408 = vld [vmem:[#allocation10 + $0x60] sm:$0xff]
      %v409 = vld [vmem:[#allocation10 + $0x68] sm:$0xff]
      %v410 = vld [vmem:[#allocation10 + $0x70] sm:$0xff]
      %v411 = vld [vmem:[#allocation10 + $0x78] sm:$0xff]
      %v412 = vld [vmem:[#allocation3] sm:$0x1]
      %v414 = vlaneseq
      %v415 = vshrl.u32 %v414, 7
      %v416 = vsub.s32 0, %v415
      %v417 = vrot.slane %v412, %v416
      %419 = vmatprep.subr.mxu0 0.0
      %420 = vmatpush1.msra.mxu0 %v396
      %421 = vmatprep.subr.mxu0 0.0
      %422 = vmatpush1.msra.mxu0 %v397
      %423 = vmatprep.subr.mxu0 0.0
      %424 = vmatpush1.msra.mxu0 %v398
      %425 = vmatprep.subr.mxu0 0.0
      %426 = vmatpush1.msra.mxu0 %v399
      %427 = vmatprep.subr.mxu0 0.0
      %428 = vmatpush1.msra.mxu0 %v400
      %429 = vmatprep.subr.mxu0 0.0
      %430 = vmatpush1.msra.mxu0 %v401
      %431 = vmatprep.subr.mxu0 0.0
      %432 = vmatpush1.msra.mxu0 %v402
      %433 = vmatprep.subr.mxu0 0.0
      %434 = vmatpush1.msra.mxu0 %v403
      %435 = vmatprep.subr.mxu0 0.0
      %436 = vmatpush1.msra.mxu0 %v404
      %437 = vmatprep.subr.mxu0 0.0
      %438 = vmatpush1.msra.mxu0 %v405
      %439 = vmatprep.subr.mxu0 0.0
      %440 = vmatpush1.msra.mxu0 %v406
      %441 = vmatprep.subr.mxu0 0.0
      %442 = vmatpush1.msra.mxu0 %v407
      %443 = vmatprep.subr.mxu0 0.0
      %444 = vmatpush1.msra.mxu0 %v408
      %445 = vmatprep.subr.mxu0 0.0
      %446 = vmatpush1.msra.mxu0 %v409
      %447 = vmatprep.subr.mxu0 0.0
      %448 = vmatpush1.msra.mxu0 %v410
      %449 = vmatprep.subr.mxu0 0.0
      %450 = vmatpush1.msra.mxu0 %v411
      %451 = vmatprep.subr.mxu0 0.0
      %452 = vmatpush1.msra.mxu0 0.0
      %453 = vmatprep.subr.mxu0 0.0
      %454 = vmatpush1.msra.mxu0 0.0
      %455 = vmatprep.subr.mxu0 0.0
      %456 = vmatpush1.msra.mxu0 0.0
      %457 = vmatprep.subr.mxu0 0.0
      %458 = vmatpush1.msra.mxu0 0.0
      %459 = vmatprep.subr.mxu0 0.0
      %460 = vmatpush1.msra.mxu0 0.0
      %461 = vmatprep.subr.mxu0 0.0
      %462 = vmatpush1.msra.mxu0 0.0
      %463 = vmatprep.subr.mxu0 0.0
      %464 = vmatpush1.msra.mxu0 0.0
      %465 = vmatprep.subr.mxu0 0.0
      %466 = vmatpush1.msra.mxu0 0.0
      %467 = vmatprep.subr.mxu0 0.0
      %468 = vmatpush1.msra.mxu0 0.0
      %469 = vmatprep.subr.mxu0 0.0
      %470 = vmatpush1.msra.mxu0 0.0
      %471 = vmatprep.subr.mxu0 0.0
      %472 = vmatpush1.msra.mxu0 0.0
      %473 = vmatprep.subr.mxu0 0.0
      %474 = vmatpush1.msra.mxu0 0.0
      %475 = vmatprep.subr.mxu0 0.0
      %476 = vmatpush1.msra.mxu0 0.0
      %477 = vmatprep.subr.mxu0 0.0
      %478 = vmatpush1.msra.mxu0 0.0
      %479 = vmatprep.subr.mxu0 0.0
      %480 = vmatpush1.msra.mxu0 0.0
      %481 = vmatprep.subr.mxu0 0.0
      %482 = vmatpush1.msra.mxu0 0.0
      %483 = vmatprep.mubr.f32.mxu0 0.0
      %484 = vmatmul.mubr.f32.gmra.mrb[0].mxu0 %v395
      %v485 = vpop.f32.mrb[0].mxu0
      %v486 = vadd.f32 %v417, %v485
      %v487 = vpop.f32.mrb[0].mxu0
      %488 = vdwg.mxu0
      %v489 = vxor.u32 %v486, 2147483648
      %v490 = vmul.f32 %v489, 1.442695
      %v491 = vpow.pop %v490
      %v492 = vadd.f32 %v491, 1.0
      %v493 = vrcp.pop %v492
      %v494 = vmul.f32 1.0, %v493
      %vm495 = vcmask 1024
      %496 = vst.msk [vmem:[#allocation12] sm:$0x3] %vm495, %v494
    $region45: #{cnn_forward.5} parent=1 // pred_fallthru
      _
    // Predicated region
    $region46: #{cnn_forward.5} parent=1 // pred_check
      _
    $region47: #{cnn_forward.5} parent=1 // pred_check_branch
      %498 = sbr.rel (0) target = $region49
    $region48: #{cnn_forward.5} parent=1 // pred_region
      %s500 = ssub.s32 32, 32
      %501 = vsyncadd [#allocation6], %s500
      %s503 = sshll.u32 [#allocation12], 4
      %s504 = int_to_ptr.vmem [resolvable:$true] %s503
      %506 = dma.vmem_to_hbm [thread:$0]  %s504, 32, %s5, [#allocation6]
    $region49: #{cnn_forward.5} parent=1 // pred_fallthru
      _
    // Predicated region
    $region50: #{cnn_forward.5} parent=1 // pred_check
      _
    $region51: #{cnn_forward.5} parent=1 // pred_check_branch
      %508 = sbr.rel (0) target = $region53
    $region52: #{cnn_forward.5} parent=1 // pred_region
      %509 = dma.done [#allocation6], 32
    $region53: #{cnn_forward.5} parent=1 // pred_fallthru
      _
    %510 = vsyncpa [#allocation5], 1
    %511 = vsyncpa [#allocation8], 1
    %512 = vsyncpa [#allocation11], 1
    %513 = vsyncpa [#allocation6], 1

// kernel: cnn_forward.4
$region0: #{cnn_forward.4}
  #allocation0 [shape = 'u32[]', space=smem, size = 0x4, offset = 0x4, fixed_abs, tag = 'smem constant byte address 0x4 - core index']
  #allocation1 [shape = 'u32[144,128]{1,0:T(1,128)}', space=vmem, size = 0x12000, scoped, tag = 'internal scratch']
  #allocation2 [shape = 'bf16[64,16]{1,0:T(16,128)(2,1)}', space=vmem, size = 0x4000, scoped, tag = 'scratch operand']
  #allocation3 [shape = 'f32[46,144]{1,0:T(8,128)}', space=vmem, size = 0xc000, scoped, tag = 'scratch operand']
  #allocation4 [shape = 'f32[46,32]{1,0:T(8,128)}', space=vmem, size = 0x6000, scoped, tag = 'scratch operand']
  %s0 = inlined_call_operand.hbm [shape: bf16[2,64,16], index: 0, kind: input, shape index: {}, may-alias: {0,1}]
  %s1 = inlined_call_operand.hbm [shape: bf16[2,64,16], index: 1, kind: input, shape index: {}, may-alias: {0,1}]
  %s2 = inlined_call_operand.hbm [shape: f32[144,32], index: 2, kind: input, shape index: {}]
  %s3 = inlined_call_operand.hbm [shape: f32[1,32], index: 3, kind: input, shape index: {}]
  %s4 = inlined_call_operand.hbm [shape: bf16[2,3,3,32], index: 4, kind: output, shape index: {}]
  %s5 = sld [smem:[#allocation0]]
  $region65: #{cnn_forward.4} parent=0
    _
  %s7 = ssub.s32 1, %s5
  %s8 = scalar_select 0, %s7, %s5
  $region1: #{cnn_forward.4} parent=0
    #allocation5 [shape = 'u8[24576]{0}', space=vmem, size = 0x6000, scoped, tag = 'input window, operand 0']
    #allocation6 [shape = 's32[2]{0}', space=sflag, size = 0x8, scoped, tag = 'scoped memory for cnn_forward.4']
    #allocation7 [shape = 's32[2]{0}', space=sflag, size = 0x8, scoped, tag = 'scoped memory for cnn_forward.4']
    #allocation8 [shape = 'u8[8192]{0}', space=vmem, size = 0x2000, scoped, tag = 'input window, operand 1']
    #allocation9 [shape = 's32[2]{0}', space=sflag, size = 0x8, scoped, tag = 'scoped memory for cnn_forward.4']
    #allocation10 [shape = 'u8[73728]{0}', space=vmem, size = 0x12000, scoped, tag = 'input window, operand 2, single buffered']
    #allocation11 [shape = 'u8[512]{0}', space=vmem, size = 0x400, scoped, tag = 'input window, operand 3, single buffered']
    #allocation12 [shape = 's32[1]{0}', space=sflag, size = 0x4, scoped, tag = 'scoped memory for cnn_forward.4']
    #allocation13 [shape = 'u8[6144]{0}', space=vmem, size = 0x1800, scoped, tag = 'output window, operand 0']
    %9 = vsyncpa [#allocation6], 0
    %s10 = scalar_lea.sflag [#allocation6], 1
    %11 = vsyncpa %s10, 0
    %12 = vsyncpa [#allocation9], 0
    %s13 = scalar_lea.sflag [#allocation9], 1
    %14 = vsyncpa %s13, 0
    %15 = vsyncpa [#allocation12], 0
    %16 = vsyncpa [#allocation7], 0
    %s17 = scalar_lea.sflag [#allocation7], 1
    %18 = vsyncpa %s17, 0
    loop: start=0, step=1, limit=4
    $region2: #{cnn_forward.4} parent=1 // loop_pre_header
      _
    $region3: #{cnn_forward.4} parent=1 // loop_header
      %s20 = sphi 0, %s24
      %p21 = scmp.ge.s32.totalorder %s20, 4
      %s27 = sphi 0, %s39
      %s28 = sphi 0, %s35
      %s29 = sphi 0, %s27
      %s30 = sphi 0, %s28
      %s31 = sphi 0, %s29
      %s32 = sphi 0, %s30
      %s44 = sphi 0, %s46
      %s47 = sphi 0, %s44
      %s48 = sphi 0, %s47
      %s64 = sphi 0, %s48
      %s76 = sphi 0, %s78
      %s79 = sphi 0, %s76
      %s80 = sphi 0, %s79
      %s96 = sphi 0, %s80
      %s100 = sphi 0, %s100
      %s102 = sphi 0, %s100
      %s103 = sphi 0, %s102
      %s117 = sphi 0, %s103
      %s121 = sphi 0, %s121
      %s123 = sphi 0, %s121
      %s124 = sphi 0, %s123
      %s138 = sphi 0, %s124
      %s146 = sphi 0, %s148
      %s149 = sphi 0, %s146
      %s150 = sphi 0, %s149
      %s166 = sphi 0, %s150
    $region4: #{cnn_forward.4} parent=1 // loop_header_branch
      %23 = sbr.rel (%p21) target = $region8
    $region5: #{cnn_forward.4} parent=1 // loop_body
      %s25 = ssub.s32 %s20, 1
      %s26 = ssub.s32 %s20, 2
      %s33 = sadd.s32 1, %s28
      %p34 = scmp.ge.s32.totalorder %s33, 1
      %s35 = scalar_select %p34, 0, %s33
      %s36 = sadd.s32 1, %s27
      %s37 = scalar_select %p34, %s36, %s27
      %p38 = scmp.ge.s32.totalorder %s37, 2
      %s39 = scalar_select %p38, 0, %s37
      %s40 = ssub.s32 %s27, %s39
      %s41 = ssub.s32 %s28, %s35
      %s42 = sor.u32 %s40, %s41
      %p43 = scmp.eq.s32.totalorder %s42, 0
      %s45 = sadd.s32 %s44, 1
      %s46 = scalar_select %p43, %s44, %s45
      %p49 = pneg %p43
      %p50 = scmp.eq.s32.totalorder %s20, 1
      %p51 = por %p49, %p50
      %p52 = scmp.ne.s32.totalorder %s44, %s47
      %p53 = scmp.eq.s32.totalorder %s20, 0
      %p54 = por %p52, %p53
      %p55 = scmp.ne.s32.totalorder %s44, %s47
      %p56 = scmp.eq.s32.totalorder %s25, 1
      %p57 = por %p55, %p56
      %p58 = scmp.ne.s32.totalorder %s47, %s48
      %p59 = scmp.eq.s32.totalorder %s25, 0
      %p60 = por %p58, %p59
      %p61 = scmp.ne.s32.totalorder %s47, %s48
      %p62 = scmp.eq.s32.totalorder %s26, 1
      %p63 = por %p61, %p62
      %p65 = scmp.ne.s32.totalorder %s48, %s64
      %p66 = scmp.eq.s32.totalorder %s26, 0
      %p67 = por %p65, %p66
      %s68 = sadd.s32 %s28, 1
      %s69 = smul.u32 %s68, 3
      %s70 = sadd.s32 %s35, 1
      %s71 = smul.u32 %s70, 3
      %s72 = ssub.s32 %s27, %s39
      %s73 = ssub.s32 %s69, %s71
      %s74 = sor.u32 %s72, %s73
      %p75 = scmp.eq.s32.totalorder %s74, 0
      %s77 = sadd.s32 %s76, 1
      %s78 = scalar_select %p75, %s76, %s77
      %p81 = pneg %p75
      %p82 = scmp.eq.s32.totalorder %s20, 1
      %p83 = por %p81, %p82
      %p84 = scmp.ne.s32.totalorder %s76, %s79
      %p85 = scmp.eq.s32.totalorder %s20, 0
      %p86 = por %p84, %p85
      %p87 = scmp.ne.s32.totalorder %s76, %s79
      %p88 = scmp.eq.s32.totalorder %s25, 1
      %p89 = por %p87, %p88
      %p90 = scmp.ne.s32.totalorder %s79, %s80
      %p91 = scmp.eq.s32.totalorder %s25, 0
      %p92 = por %p90, %p91
      %p93 = scmp.ne.s32.totalorder %s79, %s80
      %p94 = scmp.eq.s32.totalorder %s26, 1
      %p95 = por %p93, %p94
      %p97 = scmp.ne.s32.totalorder %s80, %s96
      %p98 = scmp.eq.s32.totalorder %s26, 0
      %p99 = por %p97, %p98
      %s101 = sadd.s32 %s100, 1
      %p104 = scmp.eq.s32.totalorder %s20, 1
      %p105 = scmp.ne.s32.totalorder %s100, %s102
      %p106 = scmp.eq.s32.totalorder %s20, 0
      %p107 = por %p105, %p106
      %p108 = scmp.ne.s32.totalorder %s100, %s102
      %p109 = scmp.eq.s32.totalorder %s25, 1
      %p110 = por %p108, %p109
      %p111 = scmp.ne.s32.totalorder %s102, %s103
      %p112 = scmp.eq.s32.totalorder %s25, 0
      %p113 = por %p111, %p112
      %p114 = scmp.ne.s32.totalorder %s102, %s103
      %p115 = scmp.eq.s32.totalorder %s26, 1
      %p116 = por %p114, %p115
      %p118 = scmp.ne.s32.totalorder %s103, %s117
      %p119 = scmp.eq.s32.totalorder %s26, 0
      %p120 = por %p118, %p119
      %s122 = sadd.s32 %s121, 1
      %p125 = scmp.eq.s32.totalorder %s20, 1
      %p126 = scmp.ne.s32.totalorder %s121, %s123
      %p127 = scmp.eq.s32.totalorder %s20, 0
      %p128 = por %p126, %p127
      %p129 = scmp.ne.s32.totalorder %s121, %s123
      %p130 = scmp.eq.s32.totalorder %s25, 1
      %p131 = por %p129, %p130
      %p132 = scmp.ne.s32.totalorder %s123, %s124
      %p133 = scmp.eq.s32.totalorder %s25, 0
      %p134 = por %p132, %p133
      %p135 = scmp.ne.s32.totalorder %s123, %s124
      %p136 = scmp.eq.s32.totalorder %s26, 1
      %p137 = por %p135, %p136
      %p139 = scmp.ne.s32.totalorder %s124, %s138
      %p140 = scmp.eq.s32.totalorder %s26, 0
      %p141 = por %p139, %p140
      %s142 = ssub.s32 %s27, %s39
      %s143 = ssub.s32 %s28, %s35
      %s144 = sor.u32 %s142, %s143
      %p145 = scmp.eq.s32.totalorder %s144, 0
      %s147 = sadd.s32 %s146, 1
      %s148 = scalar_select %p145, %s146, %s147
      %p151 = pneg %p145
      %p152 = scmp.eq.s32.totalorder %s20, 1
      %p153 = por %p151, %p152
      %p154 = scmp.ne.s32.totalorder %s146, %s149
      %p155 = scmp.eq.s32.totalorder %s20, 0
      %p156 = por %p154, %p155
      %p157 = scmp.ne.s32.totalorder %s146, %s149
      %p158 = scmp.eq.s32.totalorder %s25, 1
      %p159 = por %p157, %p158
      %p160 = scmp.ne.s32.totalorder %s149, %s150
      %p161 = scmp.eq.s32.totalorder %s25, 0
      %p162 = por %p160, %p161
      %p163 = scmp.ne.s32.totalorder %s149, %s150
      %p164 = scmp.eq.s32.totalorder %s26, 1
      %p165 = por %p163, %p164
      %p167 = scmp.ne.s32.totalorder %s150, %s166
      %p168 = scmp.eq.s32.totalorder %s26, 0
      %p169 = por %p167, %p168
      %p170 = scmp.le.s32.totalorder 1, %s20
      %p171 = scmp.lt.s32.totalorder %s20, 3
      %p172 = pnand %p170, %p171
      %p173 = pneg %p172
      // Predicated region
      $region9: #{cnn_forward.4} parent=5 // pred_check
        _
      $region10: #{cnn_forward.4} parent=5 // pred_check_branch
        %175 = sbr.rel (%p172) target = $region12
      $region11: #{cnn_forward.4} parent=5 // pred_region
        %s176 = ssub.s32 %s20, 1
        // Predicated region
        $region13: #{cnn_forward.4} parent=11 // pred_check
          %p177 = pneg %p113
        $region14: #{cnn_forward.4} parent=11 // pred_check_branch
          %179 = sbr.rel (%p177) target = $region16
        $region15: #{cnn_forward.4} parent=11 // pred_region
          %s181 = ssub.s32 2304, 2304
          %182 = vsyncadd [#allocation9], %s181
          %s183 = sshll.u32 [#allocation10], 4
          %s184 = int_to_ptr.vmem [resolvable:$true] %s183
          %189 = dma.hbm_to_vmem [thread:$0]  %s2, 2304, %s184, [#allocation9], 128, 128, 8
        $region16: #{cnn_forward.4} parent=11 // pred_fallthru
          _
        // Predicated region
        $region17: #{cnn_forward.4} parent=11 // pred_check
          %p190 = pneg %p134
        $region18: #{cnn_forward.4} parent=11 // pred_check_branch
          %192 = sbr.rel (%p190) target = $region20
        $region19: #{cnn_forward.4} parent=11 // pred_region
          %s194 = ssub.s32 16, 16
          %195 = vsyncadd [#allocation12], %s194
          %s197 = sshll.u32 [#allocation11], 4
          %s198 = int_to_ptr.vmem [resolvable:$true] %s197
          %200 = dma.hbm_to_vmem [thread:$0]  %s3, 16, %s198, [#allocation12]
        $region20: #{cnn_forward.4} parent=11 // pred_fallthru
          _
      $region12: #{cnn_forward.4} parent=5 // pred_fallthru
        _
      %p201 = scmp.lt.s32.totalorder %s20, 2
      // Predicated region
      $region21: #{cnn_forward.4} parent=5 // pred_check
        %p202 = pneg %p201
      $region22: #{cnn_forward.4} parent=5 // pred_check_branch
        %204 = sbr.rel (%p202) target = $region24
      $region23: #{cnn_forward.4} parent=5 // pred_region
        // Predicated region
        $region25: #{cnn_forward.4} parent=23 // pred_check
          %p205 = pneg %p54
        $region26: #{cnn_forward.4} parent=23 // pred_check_branch
          %207 = sbr.rel (%p205) target = $region28
        $region27: #{cnn_forward.4} parent=23 // pred_region
          %s208 = sand.u32 %s44, 1
          %s209 = scalar_lea.sflag [#allocation6], %s208
          %s210 = sand.u32 %s44, 1
          %s211 = smul.addr %s210, 24
          %s212 = scalar_lea.vmem [#allocation5], %s211
          %s213 = smul.u32 6, %s28
          %s214 = ssub.s32 8, %s213
          %p215 = scmp.lt.s32.totalorder %s214, 6
          %s216 = scalar_select %p215, %s214, 6
          %s217 = smul.u32 64, %s216
          %s219 = ssub.s32 384, %s217
          %220 = vsyncadd %s209, %s219
          %p221 = scmp.ne.s32.totalorder 0, %s217
          %s222 = smul.addr %s27, 8
          %s223 = sadd.s32 %s213, %s222
          %s224 = smul.addr %s223, 64
          %s225 = scalar_lea.hbm %s0, %s224
          %s226 = smul.u32 4, %s216
          %s227 = sshll.u32 %s212, 4
          %s228 = int_to_ptr.vmem [resolvable:$true] %s227
          %s229 = sshll.u32 %s226, 4
          %233 = dma.hbm_to_vmem [thread:$0]  (%p221), %s225, %s229, %s228, %s209, 64, 64, 4
        $region28: #{cnn_forward.4} parent=23 // pred_fallthru
          _
        // Predicated region
        $region29: #{cnn_forward.4} parent=23 // pred_check
          %p234 = pneg %p86
        $region30: #{cnn_forward.4} parent=23 // pred_check_branch
          %236 = sbr.rel (%p234) target = $region32
        $region31: #{cnn_forward.4} parent=23 // pred_region
          %s237 = sand.u32 %s20, 1
          %s238 = scalar_lea.sflag [#allocation9], %s237
          %s239 = sand.u32 %s76, 1
          %s240 = smul.addr %s239, 8
          %s241 = scalar_lea.vmem [#allocation8], %s240
          %s242 = sadd.s32 %s28, 1
          %s243 = smul.u32 %s242, 3
          %s244 = smul.u32 2, %s243
          %s246 = ssub.s32 128, 128
          %247 = vsyncadd %s238, %s246
          %s248 = smul.addr %s27, 8
          %s249 = sadd.s32 %s244, %s248
          %s250 = smul.addr %s249, 64
          %s251 = scalar_lea.hbm %s1, %s250
          %s252 = sshll.u32 %s241, 4
          %s253 = int_to_ptr.vmem [resolvable:$true] %s252
          %258 = dma.hbm_to_vmem [thread:$0]  %s251, 128, %s253, %s238, 64, 64, 4
        $region32: #{cnn_forward.4} parent=23 // pred_fallthru
          _
      $region24: #{cnn_forward.4} parent=5 // pred_fallthru
        _
      %p259 = scmp.le.s32.totalorder 1, %s20
      %p260 = scmp.lt.s32.totalorder %s20, 3
      %p261 = pnand %p259, %p260
      %p262 = pneg %p261
      // Predicated region
      $region33: #{cnn_forward.4} parent=5 // pred_check
        _
      $region34: #{cnn_forward.4} parent=5 // pred_check_branch
        %264 = sbr.rel (%p261) target = $region36
      $region35: #{cnn_forward.4} parent=5 // pred_region
        %s265 = ssub.s32 %s20, 1
        %s266 = sand.u32 %s47, 1
        %s267 = scalar_lea.sflag [#allocation6], %s266
        %s268 = sand.u32 %s47, 1
        %s269 = smul.addr %s268, 24
        %s270 = scalar_lea.vmem [#allocation5], %s269
        // Predicated region
        $region37: #{cnn_forward.4} parent=35 // pred_check
          %p271 = pneg %p60
        $region38: #{cnn_forward.4} parent=35 // pred_check_branch
          %273 = sbr.rel (%p271) target = $region40
        $region39: #{cnn_forward.4} parent=35 // pred_region
          %274 = dma.done %s267, 384
        $region40: #{cnn_forward.4} parent=35 // pred_fallthru
          _
        %s275 = sand.u32 %s25, 1
        %s276 = scalar_lea.sflag [#allocation9], %s275
        %s277 = sand.u32 %s79, 1
        %s278 = smul.addr %s277, 8
        %s279 = scalar_lea.vmem [#allocation8], %s278
        // Predicated region
        $region41: #{cnn_forward.4} parent=35 // pred_check
          %p280 = pneg %p92
        $region42: #{cnn_forward.4} parent=35 // pred_check_branch
          %282 = sbr.rel (%p280) target = $region44
        $region43: #{cnn_forward.4} parent=35 // pred_region
          %283 = dma.done %s276, 128
        $region44: #{cnn_forward.4} parent=35 // pred_fallthru
          _
        // Predicated region
        $region45: #{cnn_forward.4} parent=35 // pred_check
          %p284 = pneg %p113
        $region46: #{cnn_forward.4} parent=35 // pred_check_branch
          %286 = sbr.rel (%p284) target = $region48
        $region47: #{cnn_forward.4} parent=35 // pred_region
          %287 = dma.done [#allocation9], 2304
        $region48: #{cnn_forward.4} parent=35 // pred_fallthru
          _
        // Predicated region
        $region49: #{cnn_forward.4} parent=35 // pred_check
          %p288 = pneg %p134
        $region50: #{cnn_forward.4} parent=35 // pred_check_branch
          %290 = sbr.rel (%p288) target = $region52
        $region51: #{cnn_forward.4} parent=35 // pred_region
          %291 = dma.done [#allocation12], 16
        $region52: #{cnn_forward.4} parent=35 // pred_fallthru
          _
        %s292 = sand.u32 %s47, 1
        %s293 = scalar_lea.sflag [#allocation6], %s292
        %s294 = sand.u32 %s47, 1
        %s295 = smul.addr %s294, 24
        %s296 = scalar_lea.vmem [#allocation5], %s295
        %p297 = pneg %p60
        %p298 = pneg %p57
        %s299 = sand.u32 %s25, 1
        %s300 = scalar_lea.sflag [#allocation9], %s299
        %s301 = sand.u32 %s79, 1
        %s302 = smul.addr %s301, 8
        %s303 = scalar_lea.vmem [#allocation8], %s302
        %p304 = pneg %p92
        %p305 = pneg %p89
        %p306 = pneg %p113
        %p307 = pneg %p110
        %p308 = pneg %p134
        %p309 = pneg %p131
        %p310 = pneg %p162
        %p311 = pneg %p159
        %s312 = sand.u32 %s149, 1
        %s313 = scalar_lea.sflag [#allocation7], %s312
        %s314 = sand.u32 %s149, 1
        %s315 = smul.addr %s314, 6
        %s316 = scalar_lea.vmem [#allocation13], %s315
        %s317 = smul.u32 6, %s30
        %s318 = ssub.s32 8, %s317
        %p319 = scmp.lt.s32.totalorder %s318, 6
        %s320 = scalar_select %p319, %s318, 6
        %s321 = smul.u32 64, %s320
        %s322 = sadd.s32 %s30, 1
        %s323 = smul.u32 %s322, 3
        %s324 = smul.u32 2, %s323
        %s325 = smul.u32 3, %s30
        %v326 = vld [vmem:[%s270] sm:$0xf]
        %v327 = vld [vmem:[%s270 + $0x4] sm:$0xf]
        %v328 = vld [vmem:[%s270 + $0x8] sm:$0xf]
        %v329 = vld [vmem:[%s270 + $0xc] sm:$0xf]
        %v330 = vld [vmem:[%s270 + $0x10] sm:$0xf]
        %v331 = vld [vmem:[%s270 + $0x14] sm:$0xf]
        %v338 = vunpack.c.l.b16 %v326
        %v339 = vunpack.c.l.b16 %v327
        %v340 = vunpack.c.l.b16 %v328
        %v341 = vunpack.c.l.b16 %v329
        %v342 = vunpack.c.l.b16 %v330
        %v343 = vunpack.c.l.b16 %v331
        %v344 = vpack.c.b16 %v339, %v338
        %v345 = vpack.c.b16 %v341, %v340
        %v346 = vpack.c.b16 %v343, %v342
        %vm350 = vcmask 130048
        %351 = vst.msk [vmem:[#allocation2] sm:$0xff] %vm350, %v344
        %352 = vst.msk [vmem:[#allocation2 + $0x8] sm:$0xff] %vm350, %v345
        %353 = vst.msk [vmem:[#allocation2 + $0x10] sm:$0xff] %vm350, %v346
        %v354 = vld [vmem:[%s279] sm:$0xf]
        %v355 = vld [vmem:[%s279 + $0x4] sm:$0xf]
        %v358 = vunpack.c.l.b16 %v354
        %v359 = vunpack.c.l.b16 %v355
        %v360 = vpack.c.b16 %v359, %v358
        %362 = vst.msk [vmem:[#allocation2 + $0x18] sm:$0xff] %vm350, %v360
        %v363 = vld [vmem:[#allocation2] sm:$0xff]
        %v364 = vld [vmem:[#allocation2 + $0x8] sm:$0xff]
        %v365 = vld [vmem:[#allocation2 + $0x10] sm:$0x7f]
        %v366 = vunpack.c.l.bf16 %v363
        %v367 = vunpack.c.h.bf16 %v363
        %v368 = vunpack.c.l.bf16 %v364
        %v369 = vunpack.c.h.bf16 %v364
        %v370 = vunpack.c.l.bf16 %v365
        %v371 = vunpack.c.h.bf16 %v365
        %372 = vst.msk [vmem:[#allocation3] sm:$0xff] %vm350, %v366
        %373 = vst.msk [vmem:[#allocation3 + $0x10] sm:$0xff] %vm350, %v367
        %374 = vst.msk [vmem:[#allocation3 + $0x20] sm:$0xff] %vm350, %v368
        %375 = vst.msk [vmem:[#allocation3 + $0x30] sm:$0xff] %vm350, %v369
        %376 = vst.msk [vmem:[#allocation3 + $0x40] sm:$0xff] %vm350, %v370
        %vm377 = vcmask 128000
        %378 = vst.msk [vmem:[#allocation3 + $0x50] sm:$0x3f] %vm377, %v371
        %v379 = vld [vmem:[#allocation2] sm:$0xff]
        %v380 = vld [vmem:[#allocation2 + $0x8] sm:$0xff]
        %v381 = vld [vmem:[#allocation2 + $0x10] sm:$0xff]
        %v382 = vunpack.c.l.bf16 %v379
        %v383 = vunpack.c.h.bf16 %v379
        %v384 = vunpack.c.l.bf16 %v380
        %v385 = vunpack.c.h.bf16 %v380
        %v386 = vunpack.c.l.bf16 %v381
        %v387 = vunpack.c.h.bf16 %v381
        %vm394 = vcmask 1046528
        %v395 = vrot.slane %v382, 1
        %v396 = vrot.slane %v383, 1
        %v397 = vsel %vm394, %v395, %v396
        %v398 = vrot.slane %v384, 1
        %v399 = vsel %vm394, %v396, %v398
        %v400 = vrot.slane %v385, 1
        %v401 = vsel %vm394, %v398, %v400
        %v402 = vrot.slane %v386, 1
        %v403 = vsel %vm394, %v400, %v402
        %v404 = vrot.slane %v387, 1
        %v405 = vsel %vm394, %v402, %v404
        %406 = vrot.lane.b32.xlu0 %v397, 16
        %v407 = vpop.permute.xlu0 %406
        %408 = vrot.lane.b32.xlu0 %v399, 16
        %v409 = vpop.permute.xlu0 %408
        %410 = vrot.lane.b32.xlu0 %v401, 16
        %v411 = vpop.permute.xlu0 %410
        %412 = vrot.lane.b32.xlu0 %v403, 16
        %v413 = vpop.permute.xlu0 %412
        %414 = vrot.lane.b32.xlu0 %v405, 16
        %v415 = vpop.permute.xlu0 %414
        %416 = vrot.lane.b32.xlu0 %v404, 16
        %v417 = vpop.permute.xlu0 %416
        %vm424 = vcmask 261248
        %425 = vst.msk [vmem:[#allocation3] sm:$0xff] %vm424, %v407
        %426 = vst.msk [vmem:[#allocation3 + $0x10] sm:$0xff] %vm424, %v409
        %427 = vst.msk [vmem:[#allocation3 + $0x20] sm:$0xff] %vm424, %v411
        %428 = vst.msk [vmem:[#allocation3 + $0x30] sm:$0xff] %vm424, %v413
        %429 = vst.msk [vmem:[#allocation3 + $0x40] sm:$0xff] %vm424, %v415
        %vm430 = vcmask 259200
        %431 = vst.msk [vmem:[#allocation3 + $0x50] sm:$0x3f] %vm430, %v417
        %v432 = vld [vmem:[#allocation2] sm:$0xfe]
        %v433 = vld [vmem:[#allocation2 + $0x8] sm:$0xff]
        %v434 = vld [vmem:[#allocation2 + $0x10] sm:$0xff]
        %v435 = vunpack.c.l.bf16 %v432
        %v436 = vunpack.c.h.bf16 %v432
        %v437 = vunpack.c.l.bf16 %v433
        %v438 = vunpack.c.h.bf16 %v433
        %v439 = vunpack.c.l.bf16 %v434
        %v440 = vunpack.c.h.bf16 %v434
        %vm447 = vcmask 1045504
        %v448 = vrot.slane %v435, 2
        %v449 = vrot.slane %v436, 2
        %v450 = vsel %vm447, %v448, %v449
        %v451 = vrot.slane %v437, 2
        %v452 = vsel %vm447, %v449, %v451
        %v453 = vrot.slane %v438, 2
        %v454 = vsel %vm447, %v451, %v453
        %v455 = vrot.slane %v439, 2
        %v456 = vsel %vm447, %v453, %v455
        %v457 = vrot.slane %v440, 2
        %v458 = vsel %vm447, %v455, %v457
        %459 = vrot.lane.b32.xlu0 %v450, 32
        %v460 = vpop.permute.xlu0 %459
        %461 = vrot.lane.b32.xlu0 %v452, 32
        %v462 = vpop.permute.xlu0 %461
        %463 = vrot.lane.b32.xlu0 %v454, 32
        %v464 = vpop.permute.xlu0 %463
        %465 = vrot.lane.b32.xlu0 %v456, 32
        %v466 = vpop.permute.xlu0 %465
        %467 = vrot.lane.b32.xlu0 %v458, 32
        %v468 = vpop.permute.xlu0 %467
        %469 = vrot.lane.b32.xlu0 %v457, 32
        %v470 = vpop.permute.xlu0 %469
        %vm477 = vcmask 392448
        %478 = vst.msk [vmem:[#allocation3] sm:$0xff] %vm477, %v460
        %479 = vst.msk [vmem:[#allocation3 + $0x10] sm:$0xff] %vm477, %v462
        %480 = vst.msk [vmem:[#allocation3 + $0x20] sm:$0xff] %vm477, %v464
        %481 = vst.msk [vmem:[#allocation3 + $0x30] sm:$0xff] %vm477, %v466
        %482 = vst.msk [vmem:[#allocation3 + $0x40] sm:$0xff] %vm477, %v468
        %vm483 = vcmask 390400
        %484 = vst.msk [vmem:[#allocation3 + $0x50] sm:$0x3f] %vm483, %v470
        %v485 = vld [vmem:[#allocation2] sm:$0xf0]
        %v486 = vld [vmem:[#allocation2 + $0x8] sm:$0xff]
        %v487 = vld [vmem:[#allocation2 + $0x10] sm:$0xff]
        %v488 = vld [vmem:[#allocation2 + $0x18] sm:$0x7]
        %vm493 = vcmask 1043456
        %v494 = vrot.slane %v485, 4
        %v495 = vrot.slane %v486, 4
        %v496 = vsel %vm493, %v494, %v495
        %v497 = vrot.slane %v487, 4
        %v498 = vsel %vm493, %v495, %v497
        %v499 = vrot.slane %v488, 4
        %v500 = vsel %vm493, %v497, %v499
        %v504 = vunpack.c.l.bf16 %v496
        %v505 = vunpack.c.h.bf16 %v496
        %v506 = vunpack.c.l.bf16 %v498
        %v507 = vunpack.c.h.bf16 %v498
        %v508 = vunpack.c.l.bf16 %v500
        %v509 = vunpack.c.h.bf16 %v500
        %516 = vrot.lane.b32.xlu0 %v504, 48
        %v517 = vpop.permute.xlu0 %516
        %518 = vrot.lane.b32.xlu0 %v505, 48
        %v519 = vpop.permute.xlu0 %518
        %520 = vrot.lane.b32.xlu0 %v506, 48
        %v521 = vpop.permute.xlu0 %520
        %522 = vrot.lane.b32.xlu0 %v507, 48
        %v523 = vpop.permute.xlu0 %522
        %524 = vrot.lane.b32.xlu0 %v508, 48
        %v525 = vpop.permute.xlu0 %524
        %526 = vrot.lane.b32.xlu0 %v509, 48
        %v527 = vpop.permute.xlu0 %526
        %vm534 = vcmask 523648
        %535 = vst.msk [vmem:[#allocation3] sm:$0xff] %vm534, %v517
        %536 = vst.msk [vmem:[#allocation3 + $0x10] sm:$0xff] %vm534, %v519
        %537 = vst.msk [vmem:[#allocation3 + $0x20] sm:$0xff] %vm534, %v521
        %538 = vst.msk [vmem:[#allocation3 + $0x30] sm:$0xff] %vm534, %v523
        %539 = vst.msk [vmem:[#allocation3 + $0x40] sm:$0xff] %vm534, %v525
        %vm540 = vcmask 521600
        %541 = vst.msk [vmem:[#allocation3 + $0x50] sm:$0x3f] %vm540, %v527
        %v542 = vld [vmem:[#allocation2] sm:$0xf0]
        %v543 = vld [vmem:[#allocation2 + $0x8] sm:$0xff]
        %v544 = vld [vmem:[#allocation2 + $0x10] sm:$0xff]
        %v545 = vld [vmem:[#allocation2 + $0x18] sm:$0xf]
        %v550 = vrot.slane %v542, 4
        %v551 = vrot.slane %v543, 4
        %v552 = vsel %vm493, %v550, %v551
        %v553 = vrot.slane %v544, 4
        %v554 = vsel %vm493, %v551, %v553
        %v555 = vrot.slane %v545, 4
        %v556 = vsel %vm493, %v553, %v555
        %v560 = vunpack.c.l.bf16 %v552
        %v561 = vunpack.c.h.bf16 %v552
        %v562 = vunpack.c.l.bf16 %v554
        %v563 = vunpack.c.h.bf16 %v554
        %v564 = vunpack.c.l.bf16 %v556
        %v565 = vunpack.c.h.bf16 %v556
        %v572 = vrot.slane %v560, 1
        %v573 = vrot.slane %v561, 1
        %v574 = vsel %vm394, %v572, %v573
        %v575 = vrot.slane %v562, 1
        %v576 = vsel %vm394, %v573, %v575
        %v577 = vrot.slane %v563, 1
        %v578 = vsel %vm394, %v575, %v577
        %v579 = vrot.slane %v564, 1
        %v580 = vsel %vm394, %v577, %v579
        %v581 = vrot.slane %v565, 1
        %v582 = vsel %vm394, %v579, %v581
        %583 = vrot.lane.b32.xlu0 %v574, 64
        %v584 = vpop.permute.xlu0 %583
        %585 = vrot.lane.b32.xlu0 %v576, 64
        %v586 = vpop.permute.xlu0 %585
        %587 = vrot.lane.b32.xlu0 %v578, 64
        %v588 = vpop.permute.xlu0 %587
        %589 = vrot.lane.b32.xlu0 %v580, 64
        %v590 = vpop.permute.xlu0 %589
        %591 = vrot.lane.b32.xlu0 %v582, 64
        %v592 = vpop.permute.xlu0 %591
        %593 = vrot.lane.b32.xlu0 %v581, 64
        %v594 = vpop.permute.xlu0 %593
        %vm601 = vcmask 654848
        %602 = vst.msk [vmem:[#allocation3] sm:$0xff] %vm601, %v584
        %603 = vst.msk [vmem:[#allocation3 + $0x10] sm:$0xff] %vm601, %v586
        %604 = vst.msk [vmem:[#allocation3 + $0x20] sm:$0xff] %vm601, %v588
        %605 = vst.msk [vmem:[#allocation3 + $0x30] sm:$0xff] %vm601, %v590
        %606 = vst.msk [vmem:[#allocation3 + $0x40] sm:$0xff] %vm601, %v592
        %vm607 = vcmask 652800
        %608 = vst.msk [vmem:[#allocation3 + $0x50] sm:$0x3f] %vm607, %v594
        %v609 = vld [vmem:[#allocation2] sm:$0xe0]
        %v610 = vld [vmem:[#allocation2 + $0x8] sm:$0xff]
        %v611 = vld [vmem:[#allocation2 + $0x10] sm:$0xff]
        %v612 = vld [vmem:[#allocation2 + $0x18] sm:$0xf]
        %v617 = vrot.slane %v609, 4
        %v618 = vrot.slane %v610, 4
        %v619 = vsel %vm493, %v617, %v618
        %v620 = vrot.slane %v611, 4
        %v621 = vsel %vm493, %v618, %v620
        %v622 = vrot.slane %v612, 4
        %v623 = vsel %vm493, %v620, %v622
        %v627 = vunpack.c.l.bf16 %v619
        %v628 = vunpack.c.h.bf16 %v619
        %v629 = vunpack.c.l.bf16 %v621
        %v630 = vunpack.c.h.bf16 %v621
        %v631 = vunpack.c.l.bf16 %v623
        %v632 = vunpack.c.h.bf16 %v623
        %v639 = vrot.slane %v627, 2
        %v640 = vrot.slane %v628, 2
        %v641 = vsel %vm447, %v639, %v640
        %v642 = vrot.slane %v629, 2
        %v643 = vsel %vm447, %v640, %v642
        %v644 = vrot.slane %v630, 2
        %v645 = vsel %vm447, %v642, %v644
        %v646 = vrot.slane %v631, 2
        %v647 = vsel %vm447, %v644, %v646
        %v648 = vrot.slane %v632, 2
        %v649 = vsel %vm447, %v646, %v648
        %650 = vrot.lane.b32.xlu0 %v641, 80
        %v651 = vpop.permute.xlu0 %650
        %652 = vrot.lane.b32.xlu0 %v643, 80
        %v653 = vpop.permute.xlu0 %652
        %654 = vrot.lane.b32.xlu0 %v645, 80
        %v655 = vpop.permute.xlu0 %654
        %656 = vrot.lane.b32.xlu0 %v647, 80
        %v657 = vpop.permute.xlu0 %656
        %658 = vrot.lane.b32.xlu0 %v649, 80
        %v659 = vpop.permute.xlu0 %658
        %660 = vrot.lane.b32.xlu0 %v648, 80
        %v661 = vpop.permute.xlu0 %660
        %vm668 = vcmask 786048
        %669 = vst.msk [vmem:[#allocation3] sm:$0xff] %vm668, %v651
        %670 = vst.msk [vmem:[#allocation3 + $0x10] sm:$0xff] %vm668, %v653
        %671 = vst.msk [vmem:[#allocation3 + $0x20] sm:$0xff] %vm668, %v655
        %672 = vst.msk [vmem:[#allocation3 + $0x30] sm:$0xff] %vm668, %v657
        %673 = vst.msk [vmem:[#allocation3 + $0x40] sm:$0xff] %vm668, %v659
        %vm674 = vcmask 784000
        %675 = vst.msk [vmem:[#allocation3 + $0x50] sm:$0x3f] %vm674, %v661
        %v676 = vld [vmem:[#allocation2 + $0x8] sm:$0xff]
        %v677 = vld [vmem:[#allocation2 + $0x10] sm:$0xff]
        %v678 = vld [vmem:[#allocation2 + $0x18] sm:$0x7f]
        %v679 = vunpack.c.l.bf16 %v676
        %v680 = vunpack.c.h.bf16 %v676
        %v681 = vunpack.c.l.bf16 %v677
        %v682 = vunpack.c.h.bf16 %v677
        %v683 = vunpack.c.l.bf16 %v678
        %v684 = vunpack.c.h.bf16 %v678
        %691 = vrot.lane.b32.xlu0 %v679, 96
        %v692 = vpop.permute.xlu0 %691
        %693 = vrot.lane.b32.xlu0 %v680, 96
        %v694 = vpop.permute.xlu0 %693
        %695 = vrot.lane.b32.xlu0 %v681, 96
        %v696 = vpop.permute.xlu0 %695
        %697 = vrot.lane.b32.xlu0 %v682, 96
        %v698 = vpop.permute.xlu0 %697
        %699 = vrot.lane.b32.xlu0 %v683, 96
        %v700 = vpop.permute.xlu0 %699
        %701 = vrot.lane.b32.xlu0 %v684, 96
        %v702 = vpop.permute.xlu0 %701
        %vm709 = vcmask 917248
        %710 = vst.msk [vmem:[#allocation3] sm:$0xff] %vm709, %v692
        %711 = vst.msk [vmem:[#allocation3 + $0x10] sm:$0xff] %vm709, %v694
        %712 = vst.msk [vmem:[#allocation3 + $0x20] sm:$0xff] %vm709, %v696
        %713 = vst.msk [vmem:[#allocation3 + $0x30] sm:$0xff] %vm709, %v698
        %714 = vst.msk [vmem:[#allocation3 + $0x40] sm:$0xff] %vm709, %v700
        %vm715 = vcmask 915200
        %716 = vst.msk [vmem:[#allocation3 + $0x50] sm:$0x3f] %vm715, %v702
        %v717 = vld [vmem:[#allocation2 + $0x8] sm:$0xff]
        %v718 = vld [vmem:[#allocation2 + $0x10] sm:$0xff]
        %v719 = vld [vmem:[#allocation2 + $0x18] sm:$0xff]
        %v720 = vunpack.c.l.bf16 %v717
        %v721 = vunpack.c.h.bf16 %v717
        %v722 = vunpack.c.l.bf16 %v718
        %v723 = vunpack.c.h.bf16 %v718
        %v724 = vunpack.c.l.bf16 %v719
        %v725 = vunpack.c.h.bf16 %v719
        %v732 = vrot.slane %v720, 1
        %v733 = vrot.slane %v721, 1
        %v734 = vsel %vm394, %v732, %v733
        %v735 = vrot.slane %v722, 1
        %v736 = vsel %vm394, %v733, %v735
        %v737 = vrot.slane %v723, 1
        %v738 = vsel %vm394, %v735, %v737
        %v739 = vrot.slane %v724, 1
        %v740 = vsel %vm394, %v737, %v739
        %v741 = vrot.slane %v725, 1
        %v742 = vsel %vm394, %v739, %v741
        %743 = vrot.lane.b32.xlu0 %v734, 112
        %v744 = vpop.permute.xlu0 %743
        %745 = vrot.lane.b32.xlu0 %v736, 112
        %v746 = vpop.permute.xlu0 %745
        %747 = vrot.lane.b32.xlu0 %v738, 112
        %v748 = vpop.permute.xlu0 %747
        %749 = vrot.lane.b32.xlu0 %v740, 112
        %v750 = vpop.permute.xlu0 %749
        %751 = vrot.lane.b32.xlu0 %v742, 112
        %v752 = vpop.permute.xlu0 %751
        %753 = vrot.lane.b32.xlu0 %v741, 112
        %v754 = vpop.permute.xlu0 %753
        %vm761 = vcmask 1048448
        %762 = vst.msk [vmem:[#allocation3] sm:$0xff] %vm761, %v744
        %763 = vst.msk [vmem:[#allocation3 + $0x10] sm:$0xff] %vm761, %v746
        %764 = vst.msk [vmem:[#allocation3 + $0x20] sm:$0xff] %vm761, %v748
        %765 = vst.msk [vmem:[#allocation3 + $0x30] sm:$0xff] %vm761, %v750
        %766 = vst.msk [vmem:[#allocation3 + $0x40] sm:$0xff] %vm761, %v752
        %vm767 = vcmask 1046400
        %768 = vst.msk [vmem:[#allocation3 + $0x50] sm:$0x3f] %vm767, %v754
        %v769 = vld [vmem:[#allocation2 + $0x8] sm:$0xfe]
        %v770 = vld [vmem:[#allocation2 + $0x10] sm:$0xff]
        %v771 = vld [vmem:[#allocation2 + $0x18] sm:$0xff]
        %v772 = vunpack.c.l.bf16 %v769
        %v773 = vunpack.c.h.bf16 %v769
        %v774 = vunpack.c.l.bf16 %v770
        %v775 = vunpack.c.h.bf16 %v770
        %v776 = vunpack.c.l.bf16 %v771
        %v777 = vunpack.c.h.bf16 %v771
        %v784 = vrot.slane %v772, 2
        %v785 = vrot.slane %v773, 2
        %v786 = vsel %vm447, %v784, %v785
        %v787 = vrot.slane %v774, 2
        %v788 = vsel %vm447, %v785, %v787
        %v789 = vrot.slane %v775, 2
        %v790 = vsel %vm447, %v787, %v789
        %v791 = vrot.slane %v776, 2
        %v792 = vsel %vm447, %v789, %v791
        %v793 = vrot.slane %v777, 2
        %v794 = vsel %vm447, %v791, %v793
        %801 = vst.msk [vmem:[#allocation3 + $0x8] sm:$0xff] %vm350, %v786
        %802 = vst.msk [vmem:[#allocation3 + $0x18] sm:$0xff] %vm350, %v788
        %803 = vst.msk [vmem:[#allocation3 + $0x28] sm:$0xff] %vm350, %v790
        %804 = vst.msk [vmem:[#allocation3 + $0x38] sm:$0xff] %vm350, %v792
        %805 = vst.msk [vmem:[#allocation3 + $0x48] sm:$0xff] %vm350, %v794
        %806 = vst.msk [vmem:[#allocation3 + $0x58] sm:$0x3f] %vm377, %v793
        %v807 = vld [vmem:[#allocation3] sm:$0xff]
        %v808 = vld [vmem:[#allocation3 + $0x8] sm:$0xff]
        %v809 = vld [vmem:[#allocation3 + $0x10] sm:$0xff]
        %v810 = vld [vmem:[#allocation3 + $0x18] sm:$0xff]
        %v811 = vld [vmem:[#allocation3 + $0x20] sm:$0xff]
        %v812 = vld [vmem:[#allocation3 + $0x28] sm:$0xff]
        %v813 = vld [vmem:[#allocation3 + $0x30] sm:$0xff]
        %v814 = vld [vmem:[#allocation3 + $0x38] sm:$0xff]
        %v815 = vld [vmem:[#allocation3 + $0x40] sm:$0xff]
        %v816 = vld [vmem:[#allocation3 + $0x48] sm:$0xff]
        %v817 = vld [vmem:[#allocation3 + $0x50] sm:$0x3f]
        %v818 = vld [vmem:[#allocation3 + $0x58] sm:$0x3f]
        %v819 = vld [vmem:[#allocation10] sm:$0xff]
        %v820 = vld [vmem:[#allocation10 + $0x8] sm:$0xff]
        %v821 = vld [vmem:[#allocation10 + $0x10] sm:$0xff]
        %v822 = vld [vmem:[#allocation10 + $0x18] sm:$0xff]
        %v823 = vld [vmem:[#allocation10 + $0x20] sm:$0xff]
        %v824 = vld [vmem:[#allocation10 + $0x28] sm:$0xff]
        %v825 = vld [vmem:[#allocation10 + $0x30] sm:$0xff]
        %v826 = vld [vmem:[#allocation10 + $0x38] sm:$0xff]
        %v827 = vld [vmem:[#allocation10 + $0x40] sm:$0xff]
        %v828 = vld [vmem:[#allocation10 + $0x48] sm:$0xff]
        %v829 = vld [vmem:[#allocation10 + $0x50] sm:$0xff]
        %v830 = vld [vmem:[#allocation10 + $0x58] sm:$0xff]
        %v831 = vld [vmem:[#allocation10 + $0x60] sm:$0xff]
        %v832 = vld [vmem:[#allocation10 + $0x68] sm:$0xff]
        %v833 = vld [vmem:[#allocation10 + $0x70] sm:$0xff]
        %v834 = vld [vmem:[#allocation10 + $0x78] sm:$0xff]
        %v835 = vld [vmem:[#allocation10 + $0x80] sm:$0xff]
        %v836 = vld [vmem:[#allocation10 + $0x88] sm:$0xff]
        %v837 = vld [vmem:[#allocation11] sm:$0x1]
        %v839 = vlaneseq
        %v840 = vshrl.u32 %v839, 7
        %v841 = vsub.s32 0, %v840
        %v842 = vrot.slane %v837, %v841
        %v845 = vsel %vm350, %v808, 0
        %v848 = vsel %vm350, %v810, 0
        %v851 = vsel %vm350, %v812, 0
        %v854 = vsel %vm350, %v814, 0
        %v857 = vsel %vm350, %v816, 0
        %v860 = vsel %vm350, %v818, 0
        %862 = vmatprep.subr.mxu0 0.0
        %863 = vmatpush1.msra.mxu0 %v819
        %864 = vmatprep.subr.mxu0 0.0
        %865 = vmatpush1.msra.mxu0 %v820
        %866 = vmatprep.subr.mxu0 0.0
        %867 = vmatpush1.msra.mxu0 %v821
        %868 = vmatprep.subr.mxu0 0.0
        %869 = vmatpush1.msra.mxu0 %v822
        %870 = vmatprep.subr.mxu0 0.0
        %871 = vmatpush1.msra.mxu0 %v823
        %872 = vmatprep.subr.mxu0 0.0
        %873 = vmatpush1.msra.mxu0 %v824
        %874 = vmatprep.subr.mxu0 0.0
        %875 = vmatpush1.msra.mxu0 %v825
        %876 = vmatprep.subr.mxu0 0.0
        %877 = vmatpush1.msra.mxu0 %v826
        %878 = vmatprep.subr.mxu0 0.0
        %879 = vmatpush1.msra.mxu0 %v827
        %880 = vmatprep.subr.mxu0 0.0
        %881 = vmatpush1.msra.mxu0 %v828
        %882 = vmatprep.subr.mxu0 0.0
        %883 = vmatpush1.msra.mxu0 %v829
        %884 = vmatprep.subr.mxu0 0.0
        %885 = vmatpush1.msra.mxu0 %v830
        %886 = vmatprep.subr.mxu0 0.0
        %887 = vmatpush1.msra.mxu0 %v831
        %888 = vmatprep.subr.mxu0 0.0
        %889 = vmatpush1.msra.mxu0 %v832
        %890 = vmatprep.subr.mxu0 0.0
        %891 = vmatpush1.msra.mxu0 %v833
        %892 = vmatprep.subr.mxu0 0.0
        %893 = vmatpush1.msra.mxu0 %v834
        %894 = vmatprep.subr.mxu0 0.0
        %895 = vmatpush1.msra.mxu0 %v835
        %896 = vmatprep.subr.mxu0 0.0
        %897 = vmatpush1.msra.mxu0 %v836
        %898 = vmatprep.subr.mxu0 0.0
        %899 = vmatpush1.msra.mxu0 0.0
        %900 = vmatprep.subr.mxu0 0.0
        %901 = vmatpush1.msra.mxu0 0.0
        %902 = vmatprep.subr.mxu0 0.0
        %903 = vmatpush1.msra.mxu0 0.0
        %904 = vmatprep.subr.mxu0 0.0
        %905 = vmatpush1.msra.mxu0 0.0
        %906 = vmatprep.subr.mxu0 0.0
        %907 = vmatpush1.msra.mxu0 0.0
        %908 = vmatprep.subr.mxu0 0.0
        %909 = vmatpush1.msra.mxu0 0.0
        %910 = vmatprep.subr.mxu0 0.0
        %911 = vmatpush1.msra.mxu0 0.0
        %912 = vmatprep.subr.mxu0 0.0
        %913 = vmatpush1.msra.mxu0 0.0
        %914 = vmatprep.subr.mxu0 0.0
        %915 = vmatpush1.msra.mxu0 0.0
        %916 = vmatprep.subr.mxu0 0.0
        %917 = vmatpush1.msra.mxu0 0.0
        %918 = vmatprep.subr.mxu0 0.0
        %919 = vmatpush1.msra.mxu0 0.0
        %920 = vmatprep.subr.mxu0 0.0
        %921 = vmatpush1.msra.mxu0 0.0
        %922 = vmatprep.subr.mxu0 0.0
        %923 = vmatpush1.msra.mxu0 0.0
        %924 = vmatprep.subr.mxu0 0.0
        %925 = vmatpush1.msra.mxu0 0.0
        %926 = vmatprep.mubr.f32.mxu0 %v845
        %927 = vmatmul.mubr.f32.gmra.mrb[0].mxu0 %v807
        %v928 = vpop.f32.mrb[0].mxu0
        %v929 = vadd.f32 %v842, %v928
        %v930 = vpop.f32.mrb[0].mxu0
        %931 = vmatprep.mubr.f32.mxu0 %v848
        %932 = vmatmul.mubr.f32.gmra.mrb[0].mxu0 %v809
        %v933 = vpop.f32.mrb[0].mxu0
        %v934 = vadd.f32 %v842, %v933
        %v935 = vpop.f32.mrb[0].mxu0
        %936 = vmatprep.mubr.f32.mxu0 %v851
        %937 = vmatmul.mubr.f32.gmra.mrb[0].mxu0 %v811
        %v938 = vpop.f32.mrb[0].mxu0
        %v939 = vadd.f32 %v842, %v938
        %v940 = vpop.f32.mrb[0].mxu0
        %941 = vmatprep.mubr.f32.mxu0 %v854
        %942 = vmatmul.mubr.f32.gmra.mrb[0].mxu0 %v813
        %v943 = vpop.f32.mrb[0].mxu0
        %v944 = vadd.f32 %v842, %v943
        %v945 = vpop.f32.mrb[0].mxu0
        %946 = vmatprep.mubr.f32.mxu0 %v857
        %947 = vmatmul.mubr.f32.gmra.mrb[0].mxu0 %v815
        %v948 = vpop.f32.mrb[0].mxu0
        %v949 = vadd.f32 %v842, %v948
        %v950 = vpop.f32.mrb[0].mxu0
        %951 = vmatprep.mubr.f32.mxu0 %v860
        %952 = vmatmul.mubr.f32.gmra.mrb[0].mxu0 %v817
        %v953 = vpop.f32.mrb[0].mxu0
        %v954 = vadd.f32 %v842, %v953
        %v955 = vpop.f32.mrb[0].mxu0
        %956 = vdwg.mxu0
        %v957 = vmax.f32 %v929, 0.0
        %v958 = vmax.f32 %v934, 0.0
        %v959 = vmax.f32 %v939, 0.0
        %v960 = vmax.f32 %v944, 0.0
        %v961 = vmax.f32 %v949, 0.0
        %v962 = vmax.f32 %v954, 0.0
        %vm963 = vcmask 261120
        %964 = vst.msk [vmem:[#allocation4] sm:$0xff] %vm963, %v957
        %965 = vst.msk [vmem:[#allocation4 + $0x8] sm:$0xff] %vm963, %v958
        %966 = vst.msk [vmem:[#allocation4 + $0x10] sm:$0xff] %vm963, %v959
        %967 = vst.msk [vmem:[#allocation4 + $0x18] sm:$0xff] %vm963, %v960
        %968 = vst.msk [vmem:[#allocation4 + $0x20] sm:$0xff] %vm963, %v961
        %vm969 = vcmask 259072
        %970 = vst.msk [vmem:[#allocation4 + $0x28] sm:$0x3f] %vm969, %v962
        %v971 = vld [vmem:[#allocation4] ss:$2 sm:$0x7]
        %s972 = scalar_lea.vmem [#allocation4], 1
        %v973 = vld [vmem:[%s972] ss:$2 sm:$0x7]
        %s974 = scalar_lea.vmem [#allocation4], 8
        %v975 = vld [vmem:[%s974] ss:$2 sm:$0x7]
        %s976 = scalar_lea.vmem [#allocation4], 9
        %v977 = vld [vmem:[%s976] ss:$2 sm:$0x7]
        %v978 = vmax.f32 %v971, %v973
        %v979 = vmax.f32 %v975, %v977
        %v980 = vmax.f32 %v978, %v979
        %v981 = vpack.c.bf16 %v980, %v980
        %vm982 = vcmask 254976
        %vm983 = vsmask.f32 1280
        %vm984 = vmand %vm982, %vm983
        %v985 = vld [vmem:[%s316] sm:$0x3]
        %v986 = vsel %vm984, %v981, %v985
        %987 = vst [vmem:[%s316] sm:$0x3] %v986
        %s988 = scalar_lea.vmem [#allocation4], 16
        %v989 = vld [vmem:[%s988] ss:$2 sm:$0x7]
        %s990 = scalar_lea.vmem [#allocation4], 17
        %v991 = vld [vmem:[%s990] ss:$2 sm:$0x7]
        %s992 = scalar_lea.vmem [#allocation4], 24
        %v993 = vld [vmem:[%s992] ss:$2 sm:$0x7]
        %s994 = scalar_lea.vmem [#allocation4], 25
        %v995 = vld [vmem:[%s994] ss:$2 sm:$0x7]
        %v996 = vmax.f32 %v989, %v991
        %v997 = vmax.f32 %v993, %v995
        %v998 = vmax.f32 %v996, %v997
        %v999 = vpack.c.bf16 %v998, %v998
        %s1000 = scalar_lea.vmem %s316, 2 [#allocation13]
        %v1001 = vld [vmem:[%s1000] sm:$0x3]
        %v1002 = vsel %vm984, %v999, %v1001
        %1003 = vst [vmem:[%s1000] sm:$0x3] %v1002
        %s1004 = scalar_lea.vmem [#allocation4], 32
        %v1005 = vld [vmem:[%s1004] ss:$2 sm:$0x7]
        %s1006 = scalar_lea.vmem [#allocation4], 33
        %v1007 = vld [vmem:[%s1006] ss:$2 sm:$0x7]
        %s1008 = scalar_lea.vmem [#allocation4], 40
        %v1009 = vld [vmem:[%s1008] ss:$2 sm:$0x7]
        %s1010 = scalar_lea.vmem [#allocation4], 41
        %v1011 = vld [vmem:[%s1010] ss:$2 sm:$0x7]
        %v1012 = vmax.f32 %v1005, %v1007
        %v1013 = vmax.f32 %v1009, %v1011
        %v1014 = vmax.f32 %v1012, %v1013
        %v1015 = vpack.c.bf16 %v1014, %v1014
        %s1016 = scalar_lea.vmem %s316, 4 [#allocation13]
        %v1017 = vld [vmem:[%s1016] sm:$0x3]
        %v1018 = vsel %vm984, %v1015, %v1017
        %1019 = vst [vmem:[%s1016] sm:$0x3] %v1018
        %s1020 = sand.u32 %s149, 1
        %s1021 = scalar_lea.sflag [#allocation7], %s1020
        %s1022 = sand.u32 %s149, 1
        %s1023 = smul.addr %s1022, 6
        %s1024 = scalar_lea.vmem [#allocation13], %s1023
        // Predicated region
        $region53: #{cnn_forward.4} parent=35 // pred_check
          %p1025 = pneg %p159
        $region54: #{cnn_forward.4} parent=35 // pred_check_branch
          %1027 = sbr.rel (%p1025) target = $region56
        $region55: #{cnn_forward.4} parent=35 // pred_region
          %s1028 = smul.u32 3, %s30
          %s1030 = ssub.s32 96, 96
          %1031 = vsyncadd %s1021, %s1030
          %s1032 = smul.addr %s29, 3
          %s1033 = sadd.s32 %s1028, %s1032
          %s1034 = smul.addr %s1033, 32
          %s1035 = scalar_lea.hbm %s4, %s1034
          %s1036 = sshll.u32 %s1024, 4
          %s1037 = int_to_ptr.vmem [resolvable:$true] %s1036
          %1042 = dma.vmem_to_hbm [thread:$0]  %s1037, 96, %s1035, %s1021, 32, 32, 2
        $region56: #{cnn_forward.4} parent=35 // pred_fallthru
          _
      $region36: #{cnn_forward.4} parent=5 // pred_fallthru
        _
      %p1043 = scmp.le.s32.totalorder 2, %s20
      // Predicated region
      $region57: #{cnn_forward.4} parent=5 // pred_check
        %p1044 = pneg %p1043
      $region58: #{cnn_forward.4} parent=5 // pred_check_branch
        %1046 = sbr.rel (%p1044) target = $region60
      $region59: #{cnn_forward.4} parent=5 // pred_region
        %s1047 = ssub.s32 %s20, 2
        // Predicated region
        $region61: #{cnn_forward.4} parent=59 // pred_check
          %p1048 = pneg %p165
        $region62: #{cnn_forward.4} parent=59 // pred_check_branch
          %1050 = sbr.rel (%p1048) target = $region64
        $region63: #{cnn_forward.4} parent=59 // pred_region
          %s1051 = sand.u32 %s150, 1
          %s1052 = scalar_lea.sflag [#allocation7], %s1051
          %s1053 = sand.u32 %s150, 1
          %s1054 = smul.addr %s1053, 6
          %s1055 = scalar_lea.vmem [#allocation13], %s1054
          %1056 = dma.done %s1052, 96
        $region64: #{cnn_forward.4} parent=59 // pred_fallthru
          _
      $region60: #{cnn_forward.4} parent=5 // pred_fallthru
        _
    $region6: #{cnn_forward.4} parent=1 // loop_footer
      %s24 = sadd.s32 1, %s20
    $region7: #{cnn_forward.4} parent=1 // loop_footer_branch
      %19 = sbr.rel target = $region3
    $region8: #{cnn_forward.4} parent=1 // loop_exit
      _
    %1057 = vsyncpa [#allocation6], 1
    %s1058 = scalar_lea.sflag [#allocation6], 1
    %1059 = vsyncpa %s1058, 1
    %1060 = vsyncpa [#allocation9], 1
    %s1061 = scalar_lea.sflag [#allocation9], 1
    %1062 = vsyncpa %s1061, 1
    %1063 = vsyncpa [#allocation12], 1
    %1064 = vsyncpa [#allocation7], 1
    %s1065 = scalar_lea.sflag [#allocation7], 1
    %1066 = vsyncpa %s1065, 1

// kernel: cnn_forward.3
$region0: #{cnn_forward.3}
  #allocation0 [shape = 'u32[]', space=smem, size = 0x4, offset = 0x4, fixed_abs, tag = 'smem constant byte address 0x4 - core index']
  #allocation1 [shape = 'u32[144,128]{1,0:T(1,128)}', space=vmem, size = 0x12000, scoped, tag = 'internal scratch']
  #allocation2 [shape = 'bf16[180,3]{1,0:T(8,128)(2,1)}', space=vmem, size = 0xb800, scoped, tag = 'scratch operand']
  #allocation3 [shape = 'f32[142,27]{1,0:T(8,128)}', space=vmem, size = 0x12000, scoped, tag = 'scratch operand']
  #allocation4 [shape = 'f32[142,16]{1,0:T(8,128)}', space=vmem, size = 0x12000, scoped, tag = 'scratch operand']
  %s0 = inlined_call_operand.hbm [shape: bf16[2,324,3], index: 0, kind: input, shape index: {}, may-alias: {0,1}]
  %s1 = inlined_call_operand.hbm [shape: bf16[2,324,3], index: 1, kind: input, shape index: {}, may-alias: {0,1}]
  %s2 = inlined_call_operand.hbm [shape: f32[27,16], index: 2, kind: input, shape index: {}]
  %s3 = inlined_call_operand.hbm [shape: f32[1,16], index: 3, kind: input, shape index: {}]
  %s4 = inlined_call_operand.hbm [shape: bf16[2,8,8,16], index: 4, kind: output, shape index: {}]
  %s5 = sld [smem:[#allocation0]]
  $region65: #{cnn_forward.3} parent=0
    _
  %s7 = ssub.s32 1, %s5
  %s8 = scalar_select 0, %s7, %s5
  $region1: #{cnn_forward.3} parent=0
    #allocation5 [shape = 'u8[73728]{0}', space=vmem, size = 0x12000, scoped, tag = 'input window, operand 0']
    #allocation6 [shape = 's32[2]{0}', space=sflag, size = 0x8, scoped, tag = 'scoped memory for cnn_forward.3']
    #allocation7 [shape = 's32[2]{0}', space=sflag, size = 0x8, scoped, tag = 'scoped memory for cnn_forward.3']
    #allocation8 [shape = 'u8[24576]{0}', space=vmem, size = 0x6000, scoped, tag = 'input window, operand 1']
    #allocation9 [shape = 's32[2]{0}', space=sflag, size = 0x8, scoped, tag = 'scoped memory for cnn_forward.3']
    #allocation10 [shape = 'u8[16384]{0}', space=vmem, size = 0x4000, scoped, tag = 'input window, operand 2, single buffered']
    #allocation11 [shape = 'u8[512]{0}', space=vmem, size = 0x400, scoped, tag = 'input window, operand 3, single buffered']
    #allocation12 [shape = 's32[1]{0}', space=sflag, size = 0x4, scoped, tag = 'scoped memory for cnn_forward.3']
    #allocation13 [shape = 'u8[16384]{0}', space=vmem, size = 0x4000, scoped, tag = 'output window, operand 0']
    %9 = vsyncpa [#allocation6], 0
    %s10 = scalar_lea.sflag [#allocation6], 1
    %11 = vsyncpa %s10, 0
    %12 = vsyncpa [#allocation9], 0
    %s13 = scalar_lea.sflag [#allocation9], 1
    %14 = vsyncpa %s13, 0
    %15 = vsyncpa [#allocation12], 0
    %16 = vsyncpa [#allocation7], 0
    %s17 = scalar_lea.sflag [#allocation7], 1
    %18 = vsyncpa %s17, 0
    loop: start=0, step=1, limit=6
    $region2: #{cnn_forward.3} parent=1 // loop_pre_header
      _
    $region3: #{cnn_forward.3} parent=1 // loop_header
      %s20 = sphi 0, %s24
      %p21 = scmp.ge.s32.totalorder %s20, 6
      %s27 = sphi 0, %s39
      %s28 = sphi 0, %s35
      %s29 = sphi 0, %s27
      %s30 = sphi 0, %s28
      %s31 = sphi 0, %s29
      %s32 = sphi 0, %s30
      %s44 = sphi 0, %s46
      %s47 = sphi 0, %s44
      %s48 = sphi 0, %s47
      %s64 = sphi 0, %s48
      %s76 = sphi 0, %s78
      %s79 = sphi 0, %s76
      %s80 = sphi 0, %s79
      %s96 = sphi 0, %s80
      %s100 = sphi 0, %s100
      %s102 = sphi 0, %s100
      %s103 = sphi 0, %s102
      %s117 = sphi 0, %s103
      %s121 = sphi 0, %s121
      %s123 = sphi 0, %s121
      %s124 = sphi 0, %s123
      %s138 = sphi 0, %s124
      %s146 = sphi 0, %s148
      %s149 = sphi 0, %s146
      %s150 = sphi 0, %s149
      %s166 = sphi 0, %s150
    $region4: #{cnn_forward.3} parent=1 // loop_header_branch
      %23 = sbr.rel (%p21) target = $region8
    $region5: #{cnn_forward.3} parent=1 // loop_body
      %s25 = ssub.s32 %s20, 1
      %s26 = ssub.s32 %s20, 2
      %s33 = sadd.s32 1, %s28
      %p34 = scmp.ge.s32.totalorder %s33, 2
      %s35 = scalar_select %p34, 0, %s33
      %s36 = sadd.s32 1, %s27
      %s37 = scalar_select %p34, %s36, %s27
      %p38 = scmp.ge.s32.totalorder %s37, 2
      %s39 = scalar_select %p38, 0, %s37
      %s40 = ssub.s32 %s27, %s39
      %s41 = ssub.s32 %s28, %s35
      %s42 = sor.u32 %s40, %s41
      %p43 = scmp.eq.s32.totalorder %s42, 0
      %s45 = sadd.s32 %s44, 1
      %s46 = scalar_select %p43, %s44, %s45
      %p49 = pneg %p43
      %p50 = scmp.eq.s32.totalorder %s20, 3
      %p51 = por %p49, %p50
      %p52 = scmp.ne.s32.totalorder %s44, %s47
      %p53 = scmp.eq.s32.totalorder %s20, 0
      %p54 = por %p52, %p53
      %p55 = scmp.ne.s32.totalorder %s44, %s47
      %p56 = scmp.eq.s32.totalorder %s25, 3
      %p57 = por %p55, %p56
      %p58 = scmp.ne.s32.totalorder %s47, %s48
      %p59 = scmp.eq.s32.totalorder %s25, 0
      %p60 = por %p58, %p59
      %p61 = scmp.ne.s32.totalorder %s47, %s48
      %p62 = scmp.eq.s32.totalorder %s26, 3
      %p63 = por %p61, %p62
      %p65 = scmp.ne.s32.totalorder %s48, %s64
      %p66 = scmp.eq.s32.totalorder %s26, 0
      %p67 = por %p65, %p66
      %s68 = sadd.s32 %s28, 1
      %s69 = smul.u32 %s68, 3
      %s70 = sadd.s32 %s35, 1
      %s71 = smul.u32 %s70, 3
      %s72 = ssub.s32 %s27, %s39
      %s73 = ssub.s32 %s69, %s71
      %s74 = sor.u32 %s72, %s73
      %p75 = scmp.eq.s32.totalorder %s74, 0
      %s77 = sadd.s32 %s76, 1
      %s78 = scalar_select %p75, %s76, %s77
      %p81 = pneg %p75
      %p82 = scmp.eq.s32.totalorder %s20, 3
      %p83 = por %p81, %p82
      %p84 = scmp.ne.s32.totalorder %s76, %s79
      %p85 = scmp.eq.s32.totalorder %s20, 0
      %p86 = por %p84, %p85
      %p87 = scmp.ne.s32.totalorder %s76, %s79
      %p88 = scmp.eq.s32.totalorder %s25, 3
      %p89 = por %p87, %p88
      %p90 = scmp.ne.s32.totalorder %s79, %s80
      %p91 = scmp.eq.s32.totalorder %s25, 0
      %p92 = por %p90, %p91
      %p93 = scmp.ne.s32.totalorder %s79, %s80
      %p94 = scmp.eq.s32.totalorder %s26, 3
      %p95 = por %p93, %p94
      %p97 = scmp.ne.s32.totalorder %s80, %s96
      %p98 = scmp.eq.s32.totalorder %s26, 0
      %p99 = por %p97, %p98
      %s101 = sadd.s32 %s100, 1
      %p104 = scmp.eq.s32.totalorder %s20, 3
      %p105 = scmp.ne.s32.totalorder %s100, %s102
      %p106 = scmp.eq.s32.totalorder %s20, 0
      %p107 = por %p105, %p106
      %p108 = scmp.ne.s32.totalorder %s100, %s102
      %p109 = scmp.eq.s32.totalorder %s25, 3
      %p110 = por %p108, %p109
      %p111 = scmp.ne.s32.totalorder %s102, %s103
      %p112 = scmp.eq.s32.totalorder %s25, 0
      %p113 = por %p111, %p112
      %p114 = scmp.ne.s32.totalorder %s102, %s103
      %p115 = scmp.eq.s32.totalorder %s26, 3
      %p116 = por %p114, %p115
      %p118 = scmp.ne.s32.totalorder %s103, %s117
      %p119 = scmp.eq.s32.totalorder %s26, 0
      %p120 = por %p118, %p119
      %s122 = sadd.s32 %s121, 1
      %p125 = scmp.eq.s32.totalorder %s20, 3
      %p126 = scmp.ne.s32.totalorder %s121, %s123
      %p127 = scmp.eq.s32.totalorder %s20, 0
      %p128 = por %p126, %p127
      %p129 = scmp.ne.s32.totalorder %s121, %s123
      %p130 = scmp.eq.s32.totalorder %s25, 3
      %p131 = por %p129, %p130
      %p132 = scmp.ne.s32.totalorder %s123, %s124
      %p133 = scmp.eq.s32.totalorder %s25, 0
      %p134 = por %p132, %p133
      %p135 = scmp.ne.s32.totalorder %s123, %s124
      %p136 = scmp.eq.s32.totalorder %s26, 3
      %p137 = por %p135, %p136
      %p139 = scmp.ne.s32.totalorder %s124, %s138
      %p140 = scmp.eq.s32.totalorder %s26, 0
      %p141 = por %p139, %p140
      %s142 = ssub.s32 %s27, %s39
      %s143 = ssub.s32 %s28, %s35
      %s144 = sor.u32 %s142, %s143
      %p145 = scmp.eq.s32.totalorder %s144, 0
      %s147 = sadd.s32 %s146, 1
      %s148 = scalar_select %p145, %s146, %s147
      %p151 = pneg %p145
      %p152 = scmp.eq.s32.totalorder %s20, 3
      %p153 = por %p151, %p152
      %p154 = scmp.ne.s32.totalorder %s146, %s149
      %p155 = scmp.eq.s32.totalorder %s20, 0
      %p156 = por %p154, %p155
      %p157 = scmp.ne.s32.totalorder %s146, %s149
      %p158 = scmp.eq.s32.totalorder %s25, 3
      %p159 = por %p157, %p158
      %p160 = scmp.ne.s32.totalorder %s149, %s150
      %p161 = scmp.eq.s32.totalorder %s25, 0
      %p162 = por %p160, %p161
      %p163 = scmp.ne.s32.totalorder %s149, %s150
      %p164 = scmp.eq.s32.totalorder %s26, 3
      %p165 = por %p163, %p164
      %p167 = scmp.ne.s32.totalorder %s150, %s166
      %p168 = scmp.eq.s32.totalorder %s26, 0
      %p169 = por %p167, %p168
      %p170 = scmp.le.s32.totalorder 1, %s20
      %p171 = scmp.lt.s32.totalorder %s20, 5
      %p172 = pnand %p170, %p171
      %p173 = pneg %p172
      // Predicated region
      $region9: #{cnn_forward.3} parent=5 // pred_check
        _
      $region10: #{cnn_forward.3} parent=5 // pred_check_branch
        %175 = sbr.rel (%p172) target = $region12
      $region11: #{cnn_forward.3} parent=5 // pred_region
        %s176 = ssub.s32 %s20, 1
        // Predicated region
        $region13: #{cnn_forward.3} parent=11 // pred_check
          %p177 = pneg %p113
        $region14: #{cnn_forward.3} parent=11 // pred_check_branch
          %179 = sbr.rel (%p177) target = $region16
        $region15: #{cnn_forward.3} parent=11 // pred_region
          %s181 = ssub.s32 512, 512
          %182 = vsyncadd [#allocation9], %s181
          %s183 = sshll.u32 [#allocation10], 4
          %s184 = int_to_ptr.vmem [resolvable:$true] %s183
          %189 = dma.hbm_to_vmem [thread:$0]  %s2, 512, %s184, [#allocation9], 128, 128, 8
        $region16: #{cnn_forward.3} parent=11 // pred_fallthru
          _
        // Predicated region
        $region17: #{cnn_forward.3} parent=11 // pred_check
          %p190 = pneg %p134
        $region18: #{cnn_forward.3} parent=11 // pred_check_branch
          %192 = sbr.rel (%p190) target = $region20
        $region19: #{cnn_forward.3} parent=11 // pred_region
          %s194 = ssub.s32 16, 16
          %195 = vsyncadd [#allocation12], %s194
          %s197 = sshll.u32 [#allocation11], 4
          %s198 = int_to_ptr.vmem [resolvable:$true] %s197
          %200 = dma.hbm_to_vmem [thread:$0]  %s3, 16, %s198, [#allocation12]
        $region20: #{cnn_forward.3} parent=11 // pred_fallthru
          _
      $region12: #{cnn_forward.3} parent=5 // pred_fallthru
        _
      %p201 = scmp.lt.s32.totalorder %s20, 4
      // Predicated region
      $region21: #{cnn_forward.3} parent=5 // pred_check
        %p202 = pneg %p201
      $region22: #{cnn_forward.3} parent=5 // pred_check_branch
        %204 = sbr.rel (%p202) target = $region24
      $region23: #{cnn_forward.3} parent=5 // pred_region
        // Predicated region
        $region25: #{cnn_forward.3} parent=23 // pred_check
          %p205 = pneg %p54
        $region26: #{cnn_forward.3} parent=23 // pred_check_branch
          %207 = sbr.rel (%p205) target = $region28
        $region27: #{cnn_forward.3} parent=23 // pred_region
          %s208 = sand.u32 %s44, 1
          %s209 = scalar_lea.sflag [#allocation6], %s208
          %s210 = sand.u32 %s44, 1
          %s211 = smul.addr %s210, 72
          %s212 = scalar_lea.vmem [#allocation5], %s211
          %s213 = smul.u32 18, %s28
          %s214 = ssub.s32 41, %s213
          %p215 = scmp.lt.s32.totalorder %s214, 18
          %s216 = scalar_select %p215, %s214, 18
          %s217 = smul.u32 64, %s216
          %s219 = ssub.s32 1152, %s217
          %220 = vsyncadd %s209, %s219
          %p221 = scmp.ne.s32.totalorder 0, %s217
          %s222 = smul.addr %s27, 41
          %s223 = sadd.s32 %s213, %s222
          %s224 = smul.addr %s223, 64
          %s225 = scalar_lea.hbm %s0, %s224
          %s226 = smul.u32 4, %s216
          %s227 = sshll.u32 %s212, 4
          %s228 = int_to_ptr.vmem [resolvable:$true] %s227
          %s229 = sshll.u32 %s226, 4
          %233 = dma.hbm_to_vmem [thread:$0]  (%p221), %s225, %s229, %s228, %s209, 64, 64, 4
        $region28: #{cnn_forward.3} parent=23 // pred_fallthru
          _
        // Predicated region
        $region29: #{cnn_forward.3} parent=23 // pred_check
          %p234 = pneg %p86
        $region30: #{cnn_forward.3} parent=23 // pred_check_branch
          %236 = sbr.rel (%p234) target = $region32
        $region31: #{cnn_forward.3} parent=23 // pred_region
          %s237 = sand.u32 %s20, 1
          %s238 = scalar_lea.sflag [#allocation9], %s237
          %s239 = sand.u32 %s76, 1
          %s240 = smul.addr %s239, 24
          %s241 = scalar_lea.vmem [#allocation8], %s240
          %s242 = sadd.s32 %s28, 1
          %s243 = smul.u32 %s242, 3
          %s244 = smul.u32 6, %s243
          %s245 = ssub.s32 41, %s244
          %p246 = scmp.lt.s32.totalorder %s245, 6
          %s247 = scalar_select %p246, %s245, 6
          %s248 = smul.u32 64, %s247
          %s250 = ssub.s32 384, %s248
          %251 = vsyncadd %s238, %s250
          %p252 = scmp.ne.s32.totalorder 0, %s248
          %s253 = smul.addr %s27, 41
          %s254 = sadd.s32 %s244, %s253
          %s255 = smul.addr %s254, 64
          %s256 = scalar_lea.hbm %s1, %s255
          %s257 = smul.u32 4, %s247
          %s258 = sshll.u32 %s241, 4
          %s259 = int_to_ptr.vmem [resolvable:$true] %s258
          %s260 = sshll.u32 %s257, 4
          %264 = dma.hbm_to_vmem [thread:$0]  (%p252), %s256, %s260, %s259, %s238, 64, 64, 4
        $region32: #{cnn_forward.3} parent=23 // pred_fallthru
          _
      $region24: #{cnn_forward.3} parent=5 // pred_fallthru
        _
      %p265 = scmp.le.s32.totalorder 1, %s20
      %p266 = scmp.lt.s32.totalorder %s20, 5
      %p267 = pnand %p265, %p266
      %p268 = pneg %p267
      // Predicated region
      $region33: #{cnn_forward.3} parent=5 // pred_check
        _
      $region34: #{cnn_forward.3} parent=5 // pred_check_branch
        %270 = sbr.rel (%p267) target = $region36
      $region35: #{cnn_forward.3} parent=5 // pred_region
        %s271 = ssub.s32 %s20, 1
        %s272 = sand.u32 %s47, 1
        %s273 = scalar_lea.sflag [#allocation6], %s272
        %s274 = sand.u32 %s47, 1
        %s275 = smul.addr %s274, 72
        %s276 = scalar_lea.vmem [#allocation5], %s275
        // Predicated region
        $region37: #{cnn_forward.3} parent=35 // pred_check
          %p277 = pneg %p60
        $region38: #{cnn_forward.3} parent=35 // pred_check_branch
          %279 = sbr.rel (%p277) target = $region40
        $region39: #{cnn_forward.3} parent=35 // pred_region
          %280 = dma.done %s273, 1152
        $region40: #{cnn_forward.3} parent=35 // pred_fallthru
          _
        %s281 = sand.u32 %s25, 1
        %s282 = scalar_lea.sflag [#allocation9], %s281
        %s283 = sand.u32 %s79, 1
        %s284 = smul.addr %s283, 24
        %s285 = scalar_lea.vmem [#allocation8], %s284
        // Predicated region
        $region41: #{cnn_forward.3} parent=35 // pred_check
          %p286 = pneg %p92
        $region42: #{cnn_forward.3} parent=35 // pred_check_branch
          %288 = sbr.rel (%p286) target = $region44
        $region43: #{cnn_forward.3} parent=35 // pred_region
          %289 = dma.done %s282, 384
        $region44: #{cnn_forward.3} parent=35 // pred_fallthru
          _
        // Predicated region
        $region45: #{cnn_forward.3} parent=35 // pred_check
          %p290 = pneg %p113
        $region46: #{cnn_forward.3} parent=35 // pred_check_branch
          %292 = sbr.rel (%p290) target = $region48
        $region47: #{cnn_forward.3} parent=35 // pred_region
          %293 = dma.done [#allocation9], 512
        $region48: #{cnn_forward.3} parent=35 // pred_fallthru
          _
        // Predicated region
        $region49: #{cnn_forward.3} parent=35 // pred_check
          %p294 = pneg %p134
        $region50: #{cnn_forward.3} parent=35 // pred_check_branch
          %296 = sbr.rel (%p294) target = $region52
        $region51: #{cnn_forward.3} parent=35 // pred_region
          %297 = dma.done [#allocation12], 16
        $region52: #{cnn_forward.3} parent=35 // pred_fallthru
          _
        %s298 = sand.u32 %s47, 1
        %s299 = scalar_lea.sflag [#allocation6], %s298
        %s300 = sand.u32 %s47, 1
        %s301 = smul.addr %s300, 72
        %s302 = scalar_lea.vmem [#allocation5], %s301
        %p303 = pneg %p60
        %p304 = pneg %p57
        %s305 = sand.u32 %s25, 1
        %s306 = scalar_lea.sflag [#allocation9], %s305
        %s307 = sand.u32 %s79, 1
        %s308 = smul.addr %s307, 24
        %s309 = scalar_lea.vmem [#allocation8], %s308
        %p310 = pneg %p92
        %p311 = pneg %p89
        %p312 = pneg %p113
        %p313 = pneg %p110
        %p314 = pneg %p134
        %p315 = pneg %p131
        %p316 = pneg %p162
        %p317 = pneg %p159
        %s318 = sand.u32 %s149, 1
        %s319 = scalar_lea.sflag [#allocation7], %s318
        %s320 = sand.u32 %s149, 1
        %s321 = smul.addr %s320, 16
        %s322 = scalar_lea.vmem [#allocation13], %s321
        %s323 = smul.u32 18, %s30
        %s324 = ssub.s32 41, %s323
        %p325 = scmp.lt.s32.totalorder %s324, 18
        %s326 = scalar_select %p325, %s324, 18
        %s327 = smul.u32 64, %s326
        %s328 = sadd.s32 %s30, 1
        %s329 = smul.u32 %s328, 3
        %s330 = smul.u32 6, %s329
        %s331 = ssub.s32 41, %s330
        %p332 = scmp.lt.s32.totalorder %s331, 6
        %s333 = scalar_select %p332, %s331, 6
        %s334 = smul.u32 64, %s333
        %s335 = smul.u32 4, %s30
        %v336 = vld [vmem:[%s276] sm:$0xf]
        %v337 = vld [vmem:[%s276 + $0x4] sm:$0xf]
        %v338 = vld [vmem:[%s276 + $0x8] sm:$0xf]
        %v339 = vld [vmem:[%s276 + $0xc] sm:$0xf]
        %v340 = vld [vmem:[%s276 + $0x10] sm:$0xf]
        %v341 = vld [vmem:[%s276 + $0x14] sm:$0xf]
        %v342 = vld [vmem:[%s276 + $0x18] sm:$0xf]
        %v343 = vld [vmem:[%s276 + $0x1c] sm:$0xf]
        %v344 = vld [vmem:[%s276 + $0x20] sm:$0xf]
        %v345 = vld [vmem:[%s276 + $0x24] sm:$0xf]
        %v346 = vld [vmem:[%s276 + $0x28] sm:$0xf]
        %v347 = vld [vmem:[%s276 + $0x2c] sm:$0xf]
        %v348 = vld [vmem:[%s276 + $0x30] sm:$0xf]
        %v349 = vld [vmem:[%s276 + $0x34] sm:$0xf]
        %v350 = vld [vmem:[%s276 + $0x38] sm:$0xf]
        %v351 = vld [vmem:[%s276 + $0x3c] sm:$0xf]
        %v352 = vld [vmem:[%s276 + $0x40] sm:$0xf]
        %v353 = vld [vmem:[%s276 + $0x44] sm:$0xf]
        %vm354 = vcmask 19456
        %355 = vst.msk [vmem:[#allocation2] sm:$0xf] %vm354, %v336
        %356 = vst.msk [vmem:[#allocation2 + $0x4] sm:$0xf] %vm354, %v337
        %357 = vst.msk [vmem:[#allocation2 + $0x8] sm:$0xf] %vm354, %v338
        %358 = vst.msk [vmem:[#allocation2 + $0xc] sm:$0xf] %vm354, %v339
        %359 = vst.msk [vmem:[#allocation2 + $0x10] sm:$0xf] %vm354, %v340
        %360 = vst.msk [vmem:[#allocation2 + $0x14] sm:$0xf] %vm354, %v341
        %361 = vst.msk [vmem:[#allocation2 + $0x18] sm:$0xf] %vm354, %v342
        %362 = vst.msk [vmem:[#allocation2 + $0x1c] sm:$0xf] %vm354, %v343
        %363 = vst.msk [vmem:[#allocation2 + $0x20] sm:$0xf] %vm354, %v344
        %364 = vst.msk [vmem:[#allocation2 + $0x24] sm:$0xf] %vm354, %v345
        %365 = vst.msk [vmem:[#allocation2 + $0x28] sm:$0xf] %vm354, %v346
        %366 = vst.msk [vmem:[#allocation2 + $0x2c] sm:$0xf] %vm354, %v347
        %367 = vst.msk [vmem:[#allocation2 + $0x30] sm:$0xf] %vm354, %v348
        %368 = vst.msk [vmem:[#allocation2 + $0x34] sm:$0xf] %vm354, %v349
        %369 = vst.msk [vmem:[#allocation2 + $0x38] sm:$0xf] %vm354, %v350
        %370 = vst.msk [vmem:[#allocation2 + $0x3c] sm:$0xf] %vm354, %v351
        %371 = vst.msk [vmem:[#allocation2 + $0x40] sm:$0xf] %vm354, %v352
        %372 = vst.msk [vmem:[#allocation2 + $0x44] sm:$0xf] %vm354, %v353
        %v373 = vld [vmem:[%s285] sm:$0xf]
        %v374 = vld [vmem:[%s285 + $0x4] sm:$0xf]
        %v375 = vld [vmem:[%s285 + $0x8] sm:$0xf]
        %v376 = vld [vmem:[%s285 + $0xc] sm:$0xf]
        %v377 = vld [vmem:[%s285 + $0x10] sm:$0x3]
        %378 = vst.msk [vmem:[#allocation2 + $0x48] sm:$0xf] %vm354, %v373
        %379 = vst.msk [vmem:[#allocation2 + $0x4c] sm:$0xf] %vm354, %v374
        %380 = vst.msk [vmem:[#allocation2 + $0x50] sm:$0xf] %vm354, %v375
        %381 = vst.msk [vmem:[#allocation2 + $0x54] sm:$0xf] %vm354, %v376
        %vm382 = vcmask 17408
        %383 = vst.msk [vmem:[#allocation2 + $0x58] sm:$0x3] %vm382, %v377
        %v384 = vld [vmem:[#allocation2] sm:$0xf]
        %v385 = vld [vmem:[#allocation2 + $0x4] sm:$0xf]
        %v386 = vld [vmem:[#allocation2 + $0x8] sm:$0xf]
        %v387 = vld [vmem:[#allocation2 + $0xc] sm:$0xf]
        %v388 = vld [vmem:[#allocation2 + $0x10] sm:$0xf]
        %v389 = vld [vmem:[#allocation2 + $0x14] sm:$0xf]
        %v390 = vld [vmem:[#allocation2 + $0x18] sm:$0xf]
        %v391 = vld [vmem:[#allocation2 + $0x1c] sm:$0xf]
        %v392 = vld [vmem:[#allocation2 + $0x20] sm:$0xf]
        %v393 = vld [vmem:[#allocation2 + $0x24] sm:$0xf]
        %v394 = vld [vmem:[#allocation2 + $0x28] sm:$0xf]
        %v395 = vld [vmem:[#allocation2 + $0x2c] sm:$0xf]
        %v396 = vld [vmem:[#allocation2 + $0x30] sm:$0xf]
        %v397 = vld [vmem:[#allocation2 + $0x34] sm:$0xf]
        %v398 = vld [vmem:[#allocation2 + $0x38] sm:$0xf]
        %v399 = vld [vmem:[#allocation2 + $0x3c] sm:$0xf]
        %v400 = vld [vmem:[#allocation2 + $0x40] sm:$0xf]
        %v401 = vld [vmem:[#allocation2 + $0x44] sm:$0x7]
        %v402 = vunpack.c.l.bf16 %v384
        %v403 = vunpack.c.l.bf16 %v385
        %v404 = vunpack.c.l.bf16 %v386
        %v405 = vunpack.c.l.bf16 %v387
        %v406 = vunpack.c.l.bf16 %v388
        %v407 = vunpack.c.l.bf16 %v389
        %v408 = vunpack.c.l.bf16 %v390
        %v409 = vunpack.c.l.bf16 %v391
        %v410 = vunpack.c.l.bf16 %v392
        %v411 = vunpack.c.l.bf16 %v393
        %v412 = vunpack.c.l.bf16 %v394
        %v413 = vunpack.c.l.bf16 %v395
        %v414 = vunpack.c.l.bf16 %v396
        %v415 = vunpack.c.l.bf16 %v397
        %v416 = vunpack.c.l.bf16 %v398
        %v417 = vunpack.c.l.bf16 %v399
        %v418 = vunpack.c.l.bf16 %v400
        %v419 = vunpack.c.l.bf16 %v401
        %vm420 = vcmask 23552
        %421 = vst.msk [vmem:[#allocation3] sm:$0xff] %vm420, %v402
        %422 = vst.msk [vmem:[#allocation3 + $0x8] sm:$0xff] %vm420, %v403
        %423 = vst.msk [vmem:[#allocation3 + $0x10] sm:$0xff] %vm420, %v404
        %424 = vst.msk [vmem:[#allocation3 + $0x18] sm:$0xff] %vm420, %v405
        %425 = vst.msk [vmem:[#allocation3 + $0x20] sm:$0xff] %vm420, %v406
        %426 = vst.msk [vmem:[#allocation3 + $0x28] sm:$0xff] %vm420, %v407
        %427 = vst.msk [vmem:[#allocation3 + $0x30] sm:$0xff] %vm420, %v408
        %428 = vst.msk [vmem:[#allocation3 + $0x38] sm:$0xff] %vm420, %v409
        %429 = vst.msk [vmem:[#allocation3 + $0x40] sm:$0xff] %vm420, %v410
        %430 = vst.msk [vmem:[#allocation3 + $0x48] sm:$0xff] %vm420, %v411
        %431 = vst.msk [vmem:[#allocation3 + $0x50] sm:$0xff] %vm420, %v412
        %432 = vst.msk [vmem:[#allocation3 + $0x58] sm:$0xff] %vm420, %v413
        %433 = vst.msk [vmem:[#allocation3 + $0x60] sm:$0xff] %vm420, %v414
        %434 = vst.msk [vmem:[#allocation3 + $0x68] sm:$0xff] %vm420, %v415
        %435 = vst.msk [vmem:[#allocation3 + $0x70] sm:$0xff] %vm420, %v416
        %436 = vst.msk [vmem:[#allocation3 + $0x78] sm:$0xff] %vm420, %v417
        %437 = vst.msk [vmem:[#allocation3 + $0x80] sm:$0xff] %vm420, %v418
        %vm438 = vcmask 21504
        %439 = vst.msk [vmem:[#allocation3 + $0x88] sm:$0x3f] %vm438, %v419
        %v440 = vld [vmem:[#allocation2] sm:$0xf]
        %v441 = vld [vmem:[#allocation2 + $0x4] sm:$0xf]
        %v442 = vld [vmem:[#allocation2 + $0x8] sm:$0xf]
        %v443 = vld [vmem:[#allocation2 + $0xc] sm:$0xf]
        %v444 = vld [vmem:[#allocation2 + $0x10] sm:$0xf]
        %v445 = vld [vmem:[#allocation2 + $0x14] sm:$0xf]
        %v446 = vld [vmem:[#allocation2 + $0x18] sm:$0xf]
        %v447 = vld [vmem:[#allocation2 + $0x1c] sm:$0xf]
        %v448 = vld [vmem:[#allocation2 + $0x20] sm:$0xf]
        %v449 = vld [vmem:[#allocation2 + $0x24] sm:$0xf]
        %v450 = vld [vmem:[#allocation2 + $0x28] sm:$0xf]
        %v451 = vld [vmem:[#allocation2 + $0x2c] sm:$0xf]
        %v452 = vld [vmem:[#allocation2 + $0x30] sm:$0xf]
        %v453 = vld [vmem:[#allocation2 + $0x34] sm:$0xf]
        %v454 = vld [vmem:[#allocation2 + $0x38] sm:$0xf]
        %v455 = vld [vmem:[#allocation2 + $0x3c] sm:$0xf]
        %v456 = vld [vmem:[#allocation2 + $0x40] sm:$0xf]
        %v457 = vld [vmem:[#allocation2 + $0x44] sm:$0xf]
        %v458 = vunpack.c.l.bf16 %v440
        %v459 = vunpack.c.l.bf16 %v441
        %v460 = vunpack.c.l.bf16 %v442
        %v461 = vunpack.c.l.bf16 %v443
        %v462 = vunpack.c.l.bf16 %v444
        %v463 = vunpack.c.l.bf16 %v445
        %v464 = vunpack.c.l.bf16 %v446
        %v465 = vunpack.c.l.bf16 %v447
        %v466 = vunpack.c.l.bf16 %v448
        %v467 = vunpack.c.l.bf16 %v449
        %v468 = vunpack.c.l.bf16 %v450
        %v469 = vunpack.c.l.bf16 %v451
        %v470 = vunpack.c.l.bf16 %v452
        %v471 = vunpack.c.l.bf16 %v453
        %v472 = vunpack.c.l.bf16 %v454
        %v473 = vunpack.c.l.bf16 %v455
        %v474 = vunpack.c.l.bf16 %v456
        %v475 = vunpack.c.l.bf16 %v457
        %494 = vrot.lane.b32.xlu0 %v458, 3
        %v495 = vpop.permute.xlu0 %494
        %496 = vrot.lane.b32.xlu0 %v459, 3
        %v497 = vpop.permute.xlu0 %496
        %498 = vrot.lane.b32.xlu0 %v460, 3
        %v499 = vpop.permute.xlu0 %498
        %500 = vrot.lane.b32.xlu0 %v461, 3
        %v501 = vpop.permute.xlu0 %500
        %502 = vrot.lane.b32.xlu0 %v462, 3
        %v503 = vpop.permute.xlu0 %502
        %504 = vrot.lane.b32.xlu0 %v463, 3
        %v505 = vpop.permute.xlu0 %504
        %506 = vrot.lane.b32.xlu0 %v464, 3
        %v507 = vpop.permute.xlu0 %506
        %508 = vrot.lane.b32.xlu0 %v465, 3
        %v509 = vpop.permute.xlu0 %508
        %510 = vrot.lane.b32.xlu0 %v466, 3
        %v511 = vpop.permute.xlu0 %510
        %512 = vrot.lane.b32.xlu0 %v467, 3
        %v513 = vpop.permute.xlu0 %512
        %514 = vrot.lane.b32.xlu0 %v468, 3
        %v515 = vpop.permute.xlu0 %514
        %516 = vrot.lane.b32.xlu0 %v469, 3
        %v517 = vpop.permute.xlu0 %516
        %518 = vrot.lane.b32.xlu0 %v470, 3
        %v519 = vpop.permute.xlu0 %518
        %520 = vrot.lane.b32.xlu0 %v471, 3
        %v521 = vpop.permute.xlu0 %520
        %522 = vrot.lane.b32.xlu0 %v472, 3
        %v523 = vpop.permute.xlu0 %522
        %524 = vrot.lane.b32.xlu0 %v473, 3
        %v525 = vpop.permute.xlu0 %524
        %526 = vrot.lane.b32.xlu0 %v474, 3
        %v527 = vpop.permute.xlu0 %526
        %528 = vrot.lane.b32.xlu0 %v475, 3
        %v529 = vpop.permute.xlu0 %528
        %vm548 = vcmask 48153
        %549 = vst.msk [vmem:[#allocation3 - $0x1] sm:$0xfe] %vm548, %v495
        %vm550 = vcmask 48152
        %551 = vst.msk [vmem:[#allocation3 + $0x7] sm:$0xff] %vm550, %v497
        %552 = vst.msk [vmem:[#allocation3 + $0xf] sm:$0xff] %vm550, %v499
        %553 = vst.msk [vmem:[#allocation3 + $0x17] sm:$0xff] %vm550, %v501
        %554 = vst.msk [vmem:[#allocation3 + $0x1f] sm:$0xff] %vm550, %v503
        %555 = vst.msk [vmem:[#allocation3 + $0x27] sm:$0xff] %vm550, %v505
        %556 = vst.msk [vmem:[#allocation3 + $0x2f] sm:$0xff] %vm550, %v507
        %557 = vst.msk [vmem:[#allocation3 + $0x37] sm:$0xff] %vm550, %v509
        %558 = vst.msk [vmem:[#allocation3 + $0x3f] sm:$0xff] %vm550, %v511
        %559 = vst.msk [vmem:[#allocation3 + $0x47] sm:$0xff] %vm550, %v513
        %560 = vst.msk [vmem:[#allocation3 + $0x4f] sm:$0xff] %vm550, %v515
        %561 = vst.msk [vmem:[#allocation3 + $0x57] sm:$0xff] %vm550, %v517
        %562 = vst.msk [vmem:[#allocation3 + $0x5f] sm:$0xff] %vm550, %v519
        %563 = vst.msk [vmem:[#allocation3 + $0x67] sm:$0xff] %vm550, %v521
        %564 = vst.msk [vmem:[#allocation3 + $0x6f] sm:$0xff] %vm550, %v523
        %565 = vst.msk [vmem:[#allocation3 + $0x77] sm:$0xff] %vm550, %v525
        %566 = vst.msk [vmem:[#allocation3 + $0x7f] sm:$0xff] %vm550, %v527
        %vm567 = vcmask 47128
        %568 = vst.msk [vmem:[#allocation3 + $0x87] sm:$0x7f] %vm567, %v529
        %v569 = vld [vmem:[#allocation2] sm:$0xe]
        %v570 = vld [vmem:[#allocation2 + $0x4] sm:$0xf]
        %v571 = vld [vmem:[#allocation2 + $0x8] sm:$0xf]
        %v572 = vld [vmem:[#allocation2 + $0xc] sm:$0xf]
        %v573 = vld [vmem:[#allocation2 + $0x10] sm:$0xf]
        %v574 = vld [vmem:[#allocation2 + $0x14] sm:$0xf]
        %v575 = vld [vmem:[#allocation2 + $0x18] sm:$0xf]
        %v576 = vld [vmem:[#allocation2 + $0x1c] sm:$0xf]
        %v577 = vld [vmem:[#allocation2 + $0x20] sm:$0xf]
        %v578 = vld [vmem:[#allocation2 + $0x24] sm:$0xf]
        %v579 = vld [vmem:[#allocation2 + $0x28] sm:$0xf]
        %v580 = vld [vmem:[#allocation2 + $0x2c] sm:$0xf]
        %v581 = vld [vmem:[#allocation2 + $0x30] sm:$0xf]
        %v582 = vld [vmem:[#allocation2 + $0x34] sm:$0xf]
        %v583 = vld [vmem:[#allocation2 + $0x38] sm:$0xf]
        %v584 = vld [vmem:[#allocation2 + $0x3c] sm:$0xf]
        %v585 = vld [vmem:[#allocation2 + $0x40] sm:$0xf]
        %v586 = vld [vmem:[#allocation2 + $0x44] sm:$0xf]
        %v587 = vunpack.c.l.bf16 %v569
        %v588 = vunpack.c.l.bf16 %v570
        %v589 = vunpack.c.l.bf16 %v571
        %v590 = vunpack.c.l.bf16 %v572
        %v591 = vunpack.c.l.bf16 %v573
        %v592 = vunpack.c.l.bf16 %v574
        %v593 = vunpack.c.l.bf16 %v575
        %v594 = vunpack.c.l.bf16 %v576
        %v595 = vunpack.c.l.bf16 %v577
        %v596 = vunpack.c.l.bf16 %v578
        %v597 = vunpack.c.l.bf16 %v579
        %v598 = vunpack.c.l.bf16 %v580
        %v599 = vunpack.c.l.bf16 %v581
        %v600 = vunpack.c.l.bf16 %v582
        %v601 = vunpack.c.l.bf16 %v583
        %v602 = vunpack.c.l.bf16 %v584
        %v603 = vunpack.c.l.bf16 %v585
        %v604 = vunpack.c.l.bf16 %v586
        %623 = vrot.lane.b32.xlu0 %v587, 6
        %v624 = vpop.permute.xlu0 %623
        %625 = vrot.lane.b32.xlu0 %v588, 6
        %v626 = vpop.permute.xlu0 %625
        %627 = vrot.lane.b32.xlu0 %v589, 6
        %v628 = vpop.permute.xlu0 %627
        %629 = vrot.lane.b32.xlu0 %v590, 6
        %v630 = vpop.permute.xlu0 %629
        %631 = vrot.lane.b32.xlu0 %v591, 6
        %v632 = vpop.permute.xlu0 %631
        %633 = vrot.lane.b32.xlu0 %v592, 6
        %v634 = vpop.permute.xlu0 %633
        %635 = vrot.lane.b32.xlu0 %v593, 6
        %v636 = vpop.permute.xlu0 %635
        %637 = vrot.lane.b32.xlu0 %v594, 6
        %v638 = vpop.permute.xlu0 %637
        %639 = vrot.lane.b32.xlu0 %v595, 6
        %v640 = vpop.permute.xlu0 %639
        %641 = vrot.lane.b32.xlu0 %v596, 6
        %v642 = vpop.permute.xlu0 %641
        %643 = vrot.lane.b32.xlu0 %v597, 6
        %v644 = vpop.permute.xlu0 %643
        %645 = vrot.lane.b32.xlu0 %v598, 6
        %v646 = vpop.permute.xlu0 %645
        %647 = vrot.lane.b32.xlu0 %v599, 6
        %v648 = vpop.permute.xlu0 %647
        %649 = vrot.lane.b32.xlu0 %v600, 6
        %v650 = vpop.permute.xlu0 %649
        %651 = vrot.lane.b32.xlu0 %v601, 6
        %v652 = vpop.permute.xlu0 %651
        %653 = vrot.lane.b32.xlu0 %v602, 6
        %v654 = vpop.permute.xlu0 %653
        %655 = vrot.lane.b32.xlu0 %v603, 6
        %v656 = vpop.permute.xlu0 %655
        %657 = vrot.lane.b32.xlu0 %v604, 6
        %v658 = vpop.permute.xlu0 %657
        %vm677 = vcmask 72754
        %678 = vst.msk [vmem:[#allocation3 - $0x2] sm:$0xfc] %vm677, %v624
        %vm679 = vcmask 72752
        %680 = vst.msk [vmem:[#allocation3 + $0x6] sm:$0xff] %vm679, %v626
        %681 = vst.msk [vmem:[#allocation3 + $0xe] sm:$0xff] %vm679, %v628
        %682 = vst.msk [vmem:[#allocation3 + $0x16] sm:$0xff] %vm679, %v630
        %683 = vst.msk [vmem:[#allocation3 + $0x1e] sm:$0xff] %vm679, %v632
        %684 = vst.msk [vmem:[#allocation3 + $0x26] sm:$0xff] %vm679, %v634
        %685 = vst.msk [vmem:[#allocation3 + $0x2e] sm:$0xff] %vm679, %v636
        %686 = vst.msk [vmem:[#allocation3 + $0x36] sm:$0xff] %vm679, %v638
        %687 = vst.msk [vmem:[#allocation3 + $0x3e] sm:$0xff] %vm679, %v640
        %688 = vst.msk [vmem:[#allocation3 + $0x46] sm:$0xff] %vm679, %v642
        %689 = vst.msk [vmem:[#allocation3 + $0x4e] sm:$0xff] %vm679, %v644
        %690 = vst.msk [vmem:[#allocation3 + $0x56] sm:$0xff] %vm679, %v646
        %691 = vst.msk [vmem:[#allocation3 + $0x5e] sm:$0xff] %vm679, %v648
        %692 = vst.msk [vmem:[#allocation3 + $0x66] sm:$0xff] %vm679, %v650
        %693 = vst.msk [vmem:[#allocation3 + $0x6e] sm:$0xff] %vm679, %v652
        %694 = vst.msk [vmem:[#allocation3 + $0x76] sm:$0xff] %vm679, %v654
        %695 = vst.msk [vmem:[#allocation3 + $0x7e] sm:$0xff] %vm679, %v656
        %696 = vst.msk [vmem:[#allocation3 + $0x86] sm:$0xff] %vm679, %v658
        %v697 = vld [vmem:[#allocation2 + $0x8] sm:$0xe]
        %v698 = vld [vmem:[#allocation2 + $0xc] sm:$0xf]
        %v699 = vld [vmem:[#allocation2 + $0x10] sm:$0xf]
        %v700 = vld [vmem:[#allocation2 + $0x14] sm:$0xf]
        %v701 = vld [vmem:[#allocation2 + $0x18] sm:$0xf]
        %v702 = vld [vmem:[#allocation2 + $0x1c] sm:$0xf]
        %v703 = vld [vmem:[#allocation2 + $0x20] sm:$0xf]
        %v704 = vld [vmem:[#allocation2 + $0x24] sm:$0xf]
        %v705 = vld [vmem:[#allocation2 + $0x28] sm:$0xf]
        %v706 = vld [vmem:[#allocation2 + $0x2c] sm:$0xf]
        %v707 = vld [vmem:[#allocation2 + $0x30] sm:$0xf]
        %v708 = vld [vmem:[#allocation2 + $0x34] sm:$0xf]
        %v709 = vld [vmem:[#allocation2 + $0x38] sm:$0xf]
        %v710 = vld [vmem:[#allocation2 + $0x3c] sm:$0xf]
        %v711 = vld [vmem:[#allocation2 + $0x40] sm:$0xf]
        %v712 = vld [vmem:[#allocation2 + $0x44] sm:$0xf]
        %v713 = vld [vmem:[#allocation2 + $0x48] sm:$0xf]
        %v714 = vld [vmem:[#allocation2 + $0x4c] sm:$0xf]
        %v715 = vunpack.c.l.bf16 %v697
        %v716 = vunpack.c.l.bf16 %v698
        %v717 = vunpack.c.l.bf16 %v699
        %v718 = vunpack.c.l.bf16 %v700
        %v719 = vunpack.c.l.bf16 %v701
        %v720 = vunpack.c.l.bf16 %v702
        %v721 = vunpack.c.l.bf16 %v703
        %v722 = vunpack.c.l.bf16 %v704
        %v723 = vunpack.c.l.bf16 %v705
        %v724 = vunpack.c.l.bf16 %v706
        %v725 = vunpack.c.l.bf16 %v707
        %v726 = vunpack.c.l.bf16 %v708
        %v727 = vunpack.c.l.bf16 %v709
        %v728 = vunpack.c.l.bf16 %v710
        %v729 = vunpack.c.l.bf16 %v711
        %v730 = vunpack.c.l.bf16 %v712
        %v731 = vunpack.c.l.bf16 %v713
        %v732 = vunpack.c.l.bf16 %v714
        %751 = vrot.lane.b32.xlu0 %v715, 9
        %v752 = vpop.permute.xlu0 %751
        %753 = vrot.lane.b32.xlu0 %v716, 9
        %v754 = vpop.permute.xlu0 %753
        %755 = vrot.lane.b32.xlu0 %v717, 9
        %v756 = vpop.permute.xlu0 %755
        %757 = vrot.lane.b32.xlu0 %v718, 9
        %v758 = vpop.permute.xlu0 %757
        %759 = vrot.lane.b32.xlu0 %v719, 9
        %v760 = vpop.permute.xlu0 %759
        %761 = vrot.lane.b32.xlu0 %v720, 9
        %v762 = vpop.permute.xlu0 %761
        %763 = vrot.lane.b32.xlu0 %v721, 9
        %v764 = vpop.permute.xlu0 %763
        %765 = vrot.lane.b32.xlu0 %v722, 9
        %v766 = vpop.permute.xlu0 %765
        %767 = vrot.lane.b32.xlu0 %v723, 9
        %v768 = vpop.permute.xlu0 %767
        %769 = vrot.lane.b32.xlu0 %v724, 9
        %v770 = vpop.permute.xlu0 %769
        %771 = vrot.lane.b32.xlu0 %v725, 9
        %v772 = vpop.permute.xlu0 %771
        %773 = vrot.lane.b32.xlu0 %v726, 9
        %v774 = vpop.permute.xlu0 %773
        %775 = vrot.lane.b32.xlu0 %v727, 9
        %v776 = vpop.permute.xlu0 %775
        %777 = vrot.lane.b32.xlu0 %v728, 9
        %v778 = vpop.permute.xlu0 %777
        %779 = vrot.lane.b32.xlu0 %v729, 9
        %v780 = vpop.permute.xlu0 %779
        %781 = vrot.lane.b32.xlu0 %v730, 9
        %v782 = vpop.permute.xlu0 %781
        %783 = vrot.lane.b32.xlu0 %v731, 9
        %v784 = vpop.permute.xlu0 %783
        %785 = vrot.lane.b32.xlu0 %v732, 9
        %v786 = vpop.permute.xlu0 %785
        %vm805 = vcmask 97354
        %806 = vst.msk [vmem:[#allocation3 - $0x2] sm:$0xfc] %vm805, %v752
        %vm807 = vcmask 97352
        %808 = vst.msk [vmem:[#allocation3 + $0x6] sm:$0xff] %vm807, %v754
        %809 = vst.msk [vmem:[#allocation3 + $0xe] sm:$0xff] %vm807, %v756
        %810 = vst.msk [vmem:[#allocation3 + $0x16] sm:$0xff] %vm807, %v758
        %811 = vst.msk [vmem:[#allocation3 + $0x1e] sm:$0xff] %vm807, %v760
        %812 = vst.msk [vmem:[#allocation3 + $0x26] sm:$0xff] %vm807, %v762
        %813 = vst.msk [vmem:[#allocation3 + $0x2e] sm:$0xff] %vm807, %v764
        %814 = vst.msk [vmem:[#allocation3 + $0x36] sm:$0xff] %vm807, %v766
        %815 = vst.msk [vmem:[#allocation3 + $0x3e] sm:$0xff] %vm807, %v768
        %816 = vst.msk [vmem:[#allocation3 + $0x46] sm:$0xff] %vm807, %v770
        %817 = vst.msk [vmem:[#allocation3 + $0x4e] sm:$0xff] %vm807, %v772
        %818 = vst.msk [vmem:[#allocation3 + $0x56] sm:$0xff] %vm807, %v774
        %819 = vst.msk [vmem:[#allocation3 + $0x5e] sm:$0xff] %vm807, %v776
        %820 = vst.msk [vmem:[#allocation3 + $0x66] sm:$0xff] %vm807, %v778
        %821 = vst.msk [vmem:[#allocation3 + $0x6e] sm:$0xff] %vm807, %v780
        %822 = vst.msk [vmem:[#allocation3 + $0x76] sm:$0xff] %vm807, %v782
        %823 = vst.msk [vmem:[#allocation3 + $0x7e] sm:$0xff] %vm807, %v784
        %824 = vst.msk [vmem:[#allocation3 + $0x86] sm:$0xff] %vm807, %v786
        %v825 = vld [vmem:[#allocation2 + $0x8] sm:$0xe]
        %v826 = vld [vmem:[#allocation2 + $0xc] sm:$0xf]
        %v827 = vld [vmem:[#allocation2 + $0x10] sm:$0xf]
        %v828 = vld [vmem:[#allocation2 + $0x14] sm:$0xf]
        %v829 = vld [vmem:[#allocation2 + $0x18] sm:$0xf]
        %v830 = vld [vmem:[#allocation2 + $0x1c] sm:$0xf]
        %v831 = vld [vmem:[#allocation2 + $0x20] sm:$0xf]
        %v832 = vld [vmem:[#allocation2 + $0x24] sm:$0xf]
        %v833 = vld [vmem:[#allocation2 + $0x28] sm:$0xf]
        %v834 = vld [vmem:[#allocation2 + $0x2c] sm:$0xf]
        %v835 = vld [vmem:[#allocation2 + $0x30] sm:$0xf]
        %v836 = vld [vmem:[#allocation2 + $0x34] sm:$0xf]
        %v837 = vld [vmem:[#allocation2 + $0x38] sm:$0xf]
        %v838 = vld [vmem:[#allocation2 + $0x3c] sm:$0xf]
        %v839 = vld [vmem:[#allocation2 + $0x40] sm:$0xf]
        %v840 = vld [vmem:[#allocation2 + $0x44] sm:$0xf]
        %v841 = vld [vmem:[#allocation2 + $0x48] sm:$0xf]
        %v842 = vld [vmem:[#allocation2 + $0x4c] sm:$0xf]
        %v843 = vld [vmem:[#allocation2 + $0x50] sm:$0x1]
        %v844 = vunpack.c.l.bf16 %v825
        %v845 = vunpack.c.l.bf16 %v826
        %v846 = vunpack.c.l.bf16 %v827
        %v847 = vunpack.c.l.bf16 %v828
        %v848 = vunpack.c.l.bf16 %v829
        %v849 = vunpack.c.l.bf16 %v830
        %v850 = vunpack.c.l.bf16 %v831
        %v851 = vunpack.c.l.bf16 %v832
        %v852 = vunpack.c.l.bf16 %v833
        %v853 = vunpack.c.l.bf16 %v834
        %v854 = vunpack.c.l.bf16 %v835
        %v855 = vunpack.c.l.bf16 %v836
        %v856 = vunpack.c.l.bf16 %v837
        %v857 = vunpack.c.l.bf16 %v838
        %v858 = vunpack.c.l.bf16 %v839
        %v859 = vunpack.c.l.bf16 %v840
        %v860 = vunpack.c.l.bf16 %v841
        %v861 = vunpack.c.l.bf16 %v842
        %v862 = vunpack.c.l.bf16 %v843
        %882 = vrot.lane.b32.xlu0 %v844, 12
        %v883 = vpop.permute.xlu0 %882
        %884 = vrot.lane.b32.xlu0 %v845, 12
        %v885 = vpop.permute.xlu0 %884
        %886 = vrot.lane.b32.xlu0 %v846, 12
        %v887 = vpop.permute.xlu0 %886
        %888 = vrot.lane.b32.xlu0 %v847, 12
        %v889 = vpop.permute.xlu0 %888
        %890 = vrot.lane.b32.xlu0 %v848, 12
        %v891 = vpop.permute.xlu0 %890
        %892 = vrot.lane.b32.xlu0 %v849, 12
        %v893 = vpop.permute.xlu0 %892
        %894 = vrot.lane.b32.xlu0 %v850, 12
        %v895 = vpop.permute.xlu0 %894
        %896 = vrot.lane.b32.xlu0 %v851, 12
        %v897 = vpop.permute.xlu0 %896
        %898 = vrot.lane.b32.xlu0 %v852, 12
        %v899 = vpop.permute.xlu0 %898
        %900 = vrot.lane.b32.xlu0 %v853, 12
        %v901 = vpop.permute.xlu0 %900
        %902 = vrot.lane.b32.xlu0 %v854, 12
        %v903 = vpop.permute.xlu0 %902
        %904 = vrot.lane.b32.xlu0 %v855, 12
        %v905 = vpop.permute.xlu0 %904
        %906 = vrot.lane.b32.xlu0 %v856, 12
        %v907 = vpop.permute.xlu0 %906
        %908 = vrot.lane.b32.xlu0 %v857, 12
        %v909 = vpop.permute.xlu0 %908
        %910 = vrot.lane.b32.xlu0 %v858, 12
        %v911 = vpop.permute.xlu0 %910
        %912 = vrot.lane.b32.xlu0 %v859, 12
        %v913 = vpop.permute.xlu0 %912
        %914 = vrot.lane.b32.xlu0 %v860, 12
        %v915 = vpop.permute.xlu0 %914
        %916 = vrot.lane.b32.xlu0 %v861, 12
        %v917 = vpop.permute.xlu0 %916
        %918 = vrot.lane.b32.xlu0 %v862, 12
        %v919 = vpop.permute.xlu0 %918
        %vm939 = vcmask 121955
        %940 = vst.msk [vmem:[#allocation3 - $0x3] sm:$0xf8] %vm939, %v883
        %vm941 = vcmask 121952
        %942 = vst.msk [vmem:[#allocation3 + $0x5] sm:$0xff] %vm941, %v885
        %943 = vst.msk [vmem:[#allocation3 + $0xd] sm:$0xff] %vm941, %v887
        %944 = vst.msk [vmem:[#allocation3 + $0x15] sm:$0xff] %vm941, %v889
        %945 = vst.msk [vmem:[#allocation3 + $0x1d] sm:$0xff] %vm941, %v891
        %946 = vst.msk [vmem:[#allocation3 + $0x25] sm:$0xff] %vm941, %v893
        %947 = vst.msk [vmem:[#allocation3 + $0x2d] sm:$0xff] %vm941, %v895
        %948 = vst.msk [vmem:[#allocation3 + $0x35] sm:$0xff] %vm941, %v897
        %949 = vst.msk [vmem:[#allocation3 + $0x3d] sm:$0xff] %vm941, %v899
        %950 = vst.msk [vmem:[#allocation3 + $0x45] sm:$0xff] %vm941, %v901
        %951 = vst.msk [vmem:[#allocation3 + $0x4d] sm:$0xff] %vm941, %v903
        %952 = vst.msk [vmem:[#allocation3 + $0x55] sm:$0xff] %vm941, %v905
        %953 = vst.msk [vmem:[#allocation3 + $0x5d] sm:$0xff] %vm941, %v907
        %954 = vst.msk [vmem:[#allocation3 + $0x65] sm:$0xff] %vm941, %v909
        %955 = vst.msk [vmem:[#allocation3 + $0x6d] sm:$0xff] %vm941, %v911
        %956 = vst.msk [vmem:[#allocation3 + $0x75] sm:$0xff] %vm941, %v913
        %957 = vst.msk [vmem:[#allocation3 + $0x7d] sm:$0xff] %vm941, %v915
        %958 = vst.msk [vmem:[#allocation3 + $0x85] sm:$0xff] %vm941, %v917
        %vm959 = vcmask 114784
        %960 = vst.msk [vmem:[#allocation3 + $0x8d] sm:$0x1] %vm959, %v919
        %v961 = vld [vmem:[#allocation2 + $0x8] sm:$0xc]
        %v962 = vld [vmem:[#allocation2 + $0xc] sm:$0xf]
        %v963 = vld [vmem:[#allocation2 + $0x10] sm:$0xf]
        %v964 = vld [vmem:[#allocation2 + $0x14] sm:$0xf]
        %v965 = vld [vmem:[#allocation2 + $0x18] sm:$0xf]
        %v966 = vld [vmem:[#allocation2 + $0x1c] sm:$0xf]
        %v967 = vld [vmem:[#allocation2 + $0x20] sm:$0xf]
        %v968 = vld [vmem:[#allocation2 + $0x24] sm:$0xf]
        %v969 = vld [vmem:[#allocation2 + $0x28] sm:$0xf]
        %v970 = vld [vmem:[#allocation2 + $0x2c] sm:$0xf]
        %v971 = vld [vmem:[#allocation2 + $0x30] sm:$0xf]
        %v972 = vld [vmem:[#allocation2 + $0x34] sm:$0xf]
        %v973 = vld [vmem:[#allocation2 + $0x38] sm:$0xf]
        %v974 = vld [vmem:[#allocation2 + $0x3c] sm:$0xf]
        %v975 = vld [vmem:[#allocation2 + $0x40] sm:$0xf]
        %v976 = vld [vmem:[#allocation2 + $0x44] sm:$0xf]
        %v977 = vld [vmem:[#allocation2 + $0x48] sm:$0xf]
        %v978 = vld [vmem:[#allocation2 + $0x4c] sm:$0xf]
        %v979 = vld [vmem:[#allocation2 + $0x50] sm:$0x1]
        %v980 = vunpack.c.l.bf16 %v961
        %v981 = vunpack.c.l.bf16 %v962
        %v982 = vunpack.c.l.bf16 %v963
        %v983 = vunpack.c.l.bf16 %v964
        %v984 = vunpack.c.l.bf16 %v965
        %v985 = vunpack.c.l.bf16 %v966
        %v986 = vunpack.c.l.bf16 %v967
        %v987 = vunpack.c.l.bf16 %v968
        %v988 = vunpack.c.l.bf16 %v969
        %v989 = vunpack.c.l.bf16 %v970
        %v990 = vunpack.c.l.bf16 %v971
        %v991 = vunpack.c.l.bf16 %v972
        %v992 = vunpack.c.l.bf16 %v973
        %v993 = vunpack.c.l.bf16 %v974
        %v994 = vunpack.c.l.bf16 %v975
        %v995 = vunpack.c.l.bf16 %v976
        %v996 = vunpack.c.l.bf16 %v977
        %v997 = vunpack.c.l.bf16 %v978
        %v998 = vunpack.c.l.bf16 %v979
        %1018 = vrot.lane.b32.xlu0 %v980, 15
        %v1019 = vpop.permute.xlu0 %1018
        %1020 = vrot.lane.b32.xlu0 %v981, 15
        %v1021 = vpop.permute.xlu0 %1020
        %1022 = vrot.lane.b32.xlu0 %v982, 15
        %v1023 = vpop.permute.xlu0 %1022
        %1024 = vrot.lane.b32.xlu0 %v983, 15
        %v1025 = vpop.permute.xlu0 %1024
        %1026 = vrot.lane.b32.xlu0 %v984, 15
        %v1027 = vpop.permute.xlu0 %1026
        %1028 = vrot.lane.b32.xlu0 %v985, 15
        %v1029 = vpop.permute.xlu0 %1028
        %1030 = vrot.lane.b32.xlu0 %v986, 15
        %v1031 = vpop.permute.xlu0 %1030
        %1032 = vrot.lane.b32.xlu0 %v987, 15
        %v1033 = vpop.permute.xlu0 %1032
        %1034 = vrot.lane.b32.xlu0 %v988, 15
        %v1035 = vpop.permute.xlu0 %1034
        %1036 = vrot.lane.b32.xlu0 %v989, 15
        %v1037 = vpop.permute.xlu0 %1036
        %1038 = vrot.lane.b32.xlu0 %v990, 15
        %v1039 = vpop.permute.xlu0 %1038
        %1040 = vrot.lane.b32.xlu0 %v991, 15
        %v1041 = vpop.permute.xlu0 %1040
        %1042 = vrot.lane.b32.xlu0 %v992, 15
        %v1043 = vpop.permute.xlu0 %1042
        %1044 = vrot.lane.b32.xlu0 %v993, 15
        %v1045 = vpop.permute.xlu0 %1044
        %1046 = vrot.lane.b32.xlu0 %v994, 15
        %v1047 = vpop.permute.xlu0 %1046
        %1048 = vrot.lane.b32.xlu0 %v995, 15
        %v1049 = vpop.permute.xlu0 %1048
        %1050 = vrot.lane.b32.xlu0 %v996, 15
        %v1051 = vpop.permute.xlu0 %1050
        %1052 = vrot.lane.b32.xlu0 %v997, 15
        %v1053 = vpop.permute.xlu0 %1052
        %1054 = vrot.lane.b32.xlu0 %v998, 15
        %v1055 = vpop.permute.xlu0 %1054
        %vm1075 = vcmask 146556
        %1076 = vst.msk [vmem:[#allocation3 - $0x4] sm:$0xf0] %vm1075, %v1019
        %vm1077 = vcmask 146552
        %1078 = vst.msk [vmem:[#allocation3 + $0x4] sm:$0xff] %vm1077, %v1021
        %1079 = vst.msk [vmem:[#allocation3 + $0xc] sm:$0xff] %vm1077, %v1023
        %1080 = vst.msk [vmem:[#allocation3 + $0x14] sm:$0xff] %vm1077, %v1025
        %1081 = vst.msk [vmem:[#allocation3 + $0x1c] sm:$0xff] %vm1077, %v1027
        %1082 = vst.msk [vmem:[#allocation3 + $0x24] sm:$0xff] %vm1077, %v1029
        %1083 = vst.msk [vmem:[#allocation3 + $0x2c] sm:$0xff] %vm1077, %v1031
        %1084 = vst.msk [vmem:[#allocation3 + $0x34] sm:$0xff] %vm1077, %v1033
        %1085 = vst.msk [vmem:[#allocation3 + $0x3c] sm:$0xff] %vm1077, %v1035
        %1086 = vst.msk [vmem:[#allocation3 + $0x44] sm:$0xff] %vm1077, %v1037
        %1087 = vst.msk [vmem:[#allocation3 + $0x4c] sm:$0xff] %vm1077, %v1039
        %1088 = vst.msk [vmem:[#allocation3 + $0x54] sm:$0xff] %vm1077, %v1041
        %1089 = vst.msk [vmem:[#allocation3 + $0x5c] sm:$0xff] %vm1077, %v1043
        %1090 = vst.msk [vmem:[#allocation3 + $0x64] sm:$0xff] %vm1077, %v1045
        %1091 = vst.msk [vmem:[#allocation3 + $0x6c] sm:$0xff] %vm1077, %v1047
        %1092 = vst.msk [vmem:[#allocation3 + $0x74] sm:$0xff] %vm1077, %v1049
        %1093 = vst.msk [vmem:[#allocation3 + $0x7c] sm:$0xff] %vm1077, %v1051
        %1094 = vst.msk [vmem:[#allocation3 + $0x84] sm:$0xff] %vm1077, %v1053
        %vm1095 = vcmask 140408
        %1096 = vst.msk [vmem:[#allocation3 + $0x8c] sm:$0x3] %vm1095, %v1055
        %v1097 = vld [vmem:[#allocation2 + $0x10] sm:$0xc]
        %v1098 = vld [vmem:[#allocation2 + $0x14] sm:$0xf]
        %v1099 = vld [vmem:[#allocation2 + $0x18] sm:$0xf]
        %v1100 = vld [vmem:[#allocation2 + $0x1c] sm:$0xf]
        %v1101 = vld [vmem:[#allocation2 + $0x20] sm:$0xf]
        %v1102 = vld [vmem:[#allocation2 + $0x24] sm:$0xf]
        %v1103 = vld [vmem:[#allocation2 + $0x28] sm:$0xf]
        %v1104 = vld [vmem:[#allocation2 + $0x2c] sm:$0xf]
        %v1105 = vld [vmem:[#allocation2 + $0x30] sm:$0xf]
        %v1106 = vld [vmem:[#allocation2 + $0x34] sm:$0xf]
        %v1107 = vld [vmem:[#allocation2 + $0x38] sm:$0xf]
        %v1108 = vld [vmem:[#allocation2 + $0x3c] sm:$0xf]
        %v1109 = vld [vmem:[#allocation2 + $0x40] sm:$0xf]
        %v1110 = vld [vmem:[#allocation2 + $0x44] sm:$0xf]
        %v1111 = vld [vmem:[#allocation2 + $0x48] sm:$0xf]
        %v1112 = vld [vmem:[#allocation2 + $0x4c] sm:$0xf]
        %v1113 = vld [vmem:[#allocation2 + $0x50] sm:$0xf]
        %v1114 = vld [vmem:[#allocation2 + $0x54] sm:$0xf]
        %v1115 = vld [vmem:[#allocation2 + $0x58] sm:$0x1]
        %v1116 = vunpack.c.l.bf16 %v1097
        %v1117 = vunpack.c.l.bf16 %v1098
        %v1118 = vunpack.c.l.bf16 %v1099
        %v1119 = vunpack.c.l.bf16 %v1100
        %v1120 = vunpack.c.l.bf16 %v1101
        %v1121 = vunpack.c.l.bf16 %v1102
        %v1122 = vunpack.c.l.bf16 %v1103
        %v1123 = vunpack.c.l.bf16 %v1104
        %v1124 = vunpack.c.l.bf16 %v1105
        %v1125 = vunpack.c.l.bf16 %v1106
        %v1126 = vunpack.c.l.bf16 %v1107
        %v1127 = vunpack.c.l.bf16 %v1108
        %v1128 = vunpack.c.l.bf16 %v1109
        %v1129 = vunpack.c.l.bf16 %v1110
        %v1130 = vunpack.c.l.bf16 %v1111
        %v1131 = vunpack.c.l.bf16 %v1112
        %v1132 = vunpack.c.l.bf16 %v1113
        %v1133 = vunpack.c.l.bf16 %v1114
        %v1134 = vunpack.c.l.bf16 %v1115
        %1154 = vrot.lane.b32.xlu0 %v1116, 18
        %v1155 = vpop.permute.xlu0 %1154
        %1156 = vrot.lane.b32.xlu0 %v1117, 18
        %v1157 = vpop.permute.xlu0 %1156
        %1158 = vrot.lane.b32.xlu0 %v1118, 18
        %v1159 = vpop.permute.xlu0 %1158
        %1160 = vrot.lane.b32.xlu0 %v1119, 18
        %v1161 = vpop.permute.xlu0 %1160
        %1162 = vrot.lane.b32.xlu0 %v1120, 18
        %v1163 = vpop.permute.xlu0 %1162
        %1164 = vrot.lane.b32.xlu0 %v1121, 18
        %v1165 = vpop.permute.xlu0 %1164
        %1166 = vrot.lane.b32.xlu0 %v1122, 18
        %v1167 = vpop.permute.xlu0 %1166
        %1168 = vrot.lane.b32.xlu0 %v1123, 18
        %v1169 = vpop.permute.xlu0 %1168
        %1170 = vrot.lane.b32.xlu0 %v1124, 18
        %v1171 = vpop.permute.xlu0 %1170
        %1172 = vrot.lane.b32.xlu0 %v1125, 18
        %v1173 = vpop.permute.xlu0 %1172
        %1174 = vrot.lane.b32.xlu0 %v1126, 18
        %v1175 = vpop.permute.xlu0 %1174
        %1176 = vrot.lane.b32.xlu0 %v1127, 18
        %v1177 = vpop.permute.xlu0 %1176
        %1178 = vrot.lane.b32.xlu0 %v1128, 18
        %v1179 = vpop.permute.xlu0 %1178
        %1180 = vrot.lane.b32.xlu0 %v1129, 18
        %v1181 = vpop.permute.xlu0 %1180
        %1182 = vrot.lane.b32.xlu0 %v1130, 18
        %v1183 = vpop.permute.xlu0 %1182
        %1184 = vrot.lane.b32.xlu0 %v1131, 18
        %v1185 = vpop.permute.xlu0 %1184
        %1186 = vrot.lane.b32.xlu0 %v1132, 18
        %v1187 = vpop.permute.xlu0 %1186
        %1188 = vrot.lane.b32.xlu0 %v1133, 18
        %v1189 = vpop.permute.xlu0 %1188
        %1190 = vrot.lane.b32.xlu0 %v1134, 18
        %v1191 = vpop.permute.xlu0 %1190
        %vm1211 = vcmask 171156
        %1212 = vst.msk [vmem:[#allocation3 - $0x4] sm:$0xf0] %vm1211, %v1155
        %vm1213 = vcmask 171152
        %1214 = vst.msk [vmem:[#allocation3 + $0x4] sm:$0xff] %vm1213, %v1157
        %1215 = vst.msk [vmem:[#allocation3 + $0xc] sm:$0xff] %vm1213, %v1159
        %1216 = vst.msk [vmem:[#allocation3 + $0x14] sm:$0xff] %vm1213, %v1161
        %1217 = vst.msk [vmem:[#allocation3 + $0x1c] sm:$0xff] %vm1213, %v1163
        %1218 = vst.msk [vmem:[#allocation3 + $0x24] sm:$0xff] %vm1213, %v1165
        %1219 = vst.msk [vmem:[#allocation3 + $0x2c] sm:$0xff] %vm1213, %v1167
        %1220 = vst.msk [vmem:[#allocation3 + $0x34] sm:$0xff] %vm1213, %v1169
        %1221 = vst.msk [vmem:[#allocation3 + $0x3c] sm:$0xff] %vm1213, %v1171
        %1222 = vst.msk [vmem:[#allocation3 + $0x44] sm:$0xff] %vm1213, %v1173
        %1223 = vst.msk [vmem:[#allocation3 + $0x4c] sm:$0xff] %vm1213, %v1175
        %1224 = vst.msk [vmem:[#allocation3 + $0x54] sm:$0xff] %vm1213, %v1177
        %1225 = vst.msk [vmem:[#allocation3 + $0x5c] sm:$0xff] %vm1213, %v1179
        %1226 = vst.msk [vmem:[#allocation3 + $0x64] sm:$0xff] %vm1213, %v1181
        %1227 = vst.msk [vmem:[#allocation3 + $0x6c] sm:$0xff] %vm1213, %v1183
        %1228 = vst.msk [vmem:[#allocation3 + $0x74] sm:$0xff] %vm1213, %v1185
        %1229 = vst.msk [vmem:[#allocation3 + $0x7c] sm:$0xff] %vm1213, %v1187
        %1230 = vst.msk [vmem:[#allocation3 + $0x84] sm:$0xff] %vm1213, %v1189
        %vm1231 = vcmask 165008
        %1232 = vst.msk [vmem:[#allocation3 + $0x8c] sm:$0x3] %vm1231, %v1191
        %v1233 = vld [vmem:[#allocation2 + $0x10] sm:$0xc]
        %v1234 = vld [vmem:[#allocation2 + $0x14] sm:$0xf]
        %v1235 = vld [vmem:[#allocation2 + $0x18] sm:$0xf]
        %v1236 = vld [vmem:[#allocation2 + $0x1c] sm:$0xf]
        %v1237 = vld [vmem:[#allocation2 + $0x20] sm:$0xf]
        %v1238 = vld [vmem:[#allocation2 + $0x24] sm:$0xf]
        %v1239 = vld [vmem:[#allocation2 + $0x28] sm:$0xf]
        %v1240 = vld [vmem:[#allocation2 + $0x2c] sm:$0xf]
        %v1241 = vld [vmem:[#allocation2 + $0x30] sm:$0xf]
        %v1242 = vld [vmem:[#allocation2 + $0x34] sm:$0xf]
        %v1243 = vld [vmem:[#allocation2 + $0x38] sm:$0xf]
        %v1244 = vld [vmem:[#allocation2 + $0x3c] sm:$0xf]
        %v1245 = vld [vmem:[#allocation2 + $0x40] sm:$0xf]
        %v1246 = vld [vmem:[#allocation2 + $0x44] sm:$0xf]
        %v1247 = vld [vmem:[#allocation2 + $0x48] sm:$0xf]
        %v1248 = vld [vmem:[#allocation2 + $0x4c] sm:$0xf]
        %v1249 = vld [vmem:[#allocation2 + $0x50] sm:$0xf]
        %v1250 = vld [vmem:[#allocation2 + $0x54] sm:$0xf]
        %v1251 = vld [vmem:[#allocation2 + $0x58] sm:$0x3]
        %v1252 = vunpack.c.l.bf16 %v1233
        %v1253 = vunpack.c.l.bf16 %v1234
        %v1254 = vunpack.c.l.bf16 %v1235
        %v1255 = vunpack.c.l.bf16 %v1236
        %v1256 = vunpack.c.l.bf16 %v1237
        %v1257 = vunpack.c.l.bf16 %v1238
        %v1258 = vunpack.c.l.bf16 %v1239
        %v1259 = vunpack.c.l.bf16 %v1240
        %v1260 = vunpack.c.l.bf16 %v1241
        %v1261 = vunpack.c.l.bf16 %v1242
        %v1262 = vunpack.c.l.bf16 %v1243
        %v1263 = vunpack.c.l.bf16 %v1244
        %v1264 = vunpack.c.l.bf16 %v1245
        %v1265 = vunpack.c.l.bf16 %v1246
        %v1266 = vunpack.c.l.bf16 %v1247
        %v1267 = vunpack.c.l.bf16 %v1248
        %v1268 = vunpack.c.l.bf16 %v1249
        %v1269 = vunpack.c.l.bf16 %v1250
        %v1270 = vunpack.c.l.bf16 %v1251
        %1290 = vrot.lane.b32.xlu0 %v1252, 21
        %v1291 = vpop.permute.xlu0 %1290
        %1292 = vrot.lane.b32.xlu0 %v1253, 21
        %v1293 = vpop.permute.xlu0 %1292
        %1294 = vrot.lane.b32.xlu0 %v1254, 21
        %v1295 = vpop.permute.xlu0 %1294
        %1296 = vrot.lane.b32.xlu0 %v1255, 21
        %v1297 = vpop.permute.xlu0 %1296
        %1298 = vrot.lane.b32.xlu0 %v1256, 21
        %v1299 = vpop.permute.xlu0 %1298
        %1300 = vrot.lane.b32.xlu0 %v1257, 21
        %v1301 = vpop.permute.xlu0 %1300
        %1302 = vrot.lane.b32.xlu0 %v1258, 21
        %v1303 = vpop.permute.xlu0 %1302
        %1304 = vrot.lane.b32.xlu0 %v1259, 21
        %v1305 = vpop.permute.xlu0 %1304
        %1306 = vrot.lane.b32.xlu0 %v1260, 21
        %v1307 = vpop.permute.xlu0 %1306
        %1308 = vrot.lane.b32.xlu0 %v1261, 21
        %v1309 = vpop.permute.xlu0 %1308
        %1310 = vrot.lane.b32.xlu0 %v1262, 21
        %v1311 = vpop.permute.xlu0 %1310
        %1312 = vrot.lane.b32.xlu0 %v1263, 21
        %v1313 = vpop.permute.xlu0 %1312
        %1314 = vrot.lane.b32.xlu0 %v1264, 21
        %v1315 = vpop.permute.xlu0 %1314
        %1316 = vrot.lane.b32.xlu0 %v1265, 21
        %v1317 = vpop.permute.xlu0 %1316
        %1318 = vrot.lane.b32.xlu0 %v1266, 21
        %v1319 = vpop.permute.xlu0 %1318
        %1320 = vrot.lane.b32.xlu0 %v1267, 21
        %v1321 = vpop.permute.xlu0 %1320
        %1322 = vrot.lane.b32.xlu0 %v1268, 21
        %v1323 = vpop.permute.xlu0 %1322
        %1324 = vrot.lane.b32.xlu0 %v1269, 21
        %v1325 = vpop.permute.xlu0 %1324
        %1326 = vrot.lane.b32.xlu0 %v1270, 21
        %v1327 = vpop.permute.xlu0 %1326
        %vm1347 = vcmask 195757
        %1348 = vst.msk [vmem:[#allocation3 - $0x5] sm:$0xe0] %vm1347, %v1291
        %vm1349 = vcmask 195752
        %1350 = vst.msk [vmem:[#allocation3 + $0x3] sm:$0xff] %vm1349, %v1293
        %1351 = vst.msk [vmem:[#allocation3 + $0xb] sm:$0xff] %vm1349, %v1295
        %1352 = vst.msk [vmem:[#allocation3 + $0x13] sm:$0xff] %vm1349, %v1297
        %1353 = vst.msk [vmem:[#allocation3 + $0x1b] sm:$0xff] %vm1349, %v1299
        %1354 = vst.msk [vmem:[#allocation3 + $0x23] sm:$0xff] %vm1349, %v1301
        %1355 = vst.msk [vmem:[#allocation3 + $0x2b] sm:$0xff] %vm1349, %v1303
        %1356 = vst.msk [vmem:[#allocation3 + $0x33] sm:$0xff] %vm1349, %v1305
        %1357 = vst.msk [vmem:[#allocation3 + $0x3b] sm:$0xff] %vm1349, %v1307
        %1358 = vst.msk [vmem:[#allocation3 + $0x43] sm:$0xff] %vm1349, %v1309
        %1359 = vst.msk [vmem:[#allocation3 + $0x4b] sm:$0xff] %vm1349, %v1311
        %1360 = vst.msk [vmem:[#allocation3 + $0x53] sm:$0xff] %vm1349, %v1313
        %1361 = vst.msk [vmem:[#allocation3 + $0x5b] sm:$0xff] %vm1349, %v1315
        %1362 = vst.msk [vmem:[#allocation3 + $0x63] sm:$0xff] %vm1349, %v1317
        %1363 = vst.msk [vmem:[#allocation3 + $0x6b] sm:$0xff] %vm1349, %v1319
        %1364 = vst.msk [vmem:[#allocation3 + $0x73] sm:$0xff] %vm1349, %v1321
        %1365 = vst.msk [vmem:[#allocation3 + $0x7b] sm:$0xff] %vm1349, %v1323
        %1366 = vst.msk [vmem:[#allocation3 + $0x83] sm:$0xff] %vm1349, %v1325
        %vm1367 = vcmask 190632
        %1368 = vst.msk [vmem:[#allocation3 + $0x8b] sm:$0x7] %vm1367, %v1327
        %v1369 = vld [vmem:[#allocation2 + $0x10] sm:$0x8]
        %v1370 = vld [vmem:[#allocation2 + $0x14] sm:$0xf]
        %v1371 = vld [vmem:[#allocation2 + $0x18] sm:$0xf]
        %v1372 = vld [vmem:[#allocation2 + $0x1c] sm:$0xf]
        %v1373 = vld [vmem:[#allocation2 + $0x20] sm:$0xf]
        %v1374 = vld [vmem:[#allocation2 + $0x24] sm:$0xf]
        %v1375 = vld [vmem:[#allocation2 + $0x28] sm:$0xf]
        %v1376 = vld [vmem:[#allocation2 + $0x2c] sm:$0xf]
        %v1377 = vld [vmem:[#allocation2 + $0x30] sm:$0xf]
        %v1378 = vld [vmem:[#allocation2 + $0x34] sm:$0xf]
        %v1379 = vld [vmem:[#allocation2 + $0x38] sm:$0xf]
        %v1380 = vld [vmem:[#allocation2 + $0x3c] sm:$0xf]
        %v1381 = vld [vmem:[#allocation2 + $0x40] sm:$0xf]
        %v1382 = vld [vmem:[#allocation2 + $0x44] sm:$0xf]
        %v1383 = vld [vmem:[#allocation2 + $0x48] sm:$0xf]
        %v1384 = vld [vmem:[#allocation2 + $0x4c] sm:$0xf]
        %v1385 = vld [vmem:[#allocation2 + $0x50] sm:$0xf]
        %v1386 = vld [vmem:[#allocation2 + $0x54] sm:$0xf]
        %v1387 = vld [vmem:[#allocation2 + $0x58] sm:$0x3]
        %v1388 = vunpack.c.l.bf16 %v1369
        %v1389 = vunpack.c.l.bf16 %v1370
        %v1390 = vunpack.c.l.bf16 %v1371
        %v1391 = vunpack.c.l.bf16 %v1372
        %v1392 = vunpack.c.l.bf16 %v1373
        %v1393 = vunpack.c.l.bf16 %v1374
        %v1394 = vunpack.c.l.bf16 %v1375
        %v1395 = vunpack.c.l.bf16 %v1376
        %v1396 = vunpack.c.l.bf16 %v1377
        %v1397 = vunpack.c.l.bf16 %v1378
        %v1398 = vunpack.c.l.bf16 %v1379
        %v1399 = vunpack.c.l.bf16 %v1380
        %v1400 = vunpack.c.l.bf16 %v1381
        %v1401 = vunpack.c.l.bf16 %v1382
        %v1402 = vunpack.c.l.bf16 %v1383
        %v1403 = vunpack.c.l.bf16 %v1384
        %v1404 = vunpack.c.l.bf16 %v1385
        %v1405 = vunpack.c.l.bf16 %v1386
        %v1406 = vunpack.c.l.bf16 %v1387
        %1426 = vrot.lane.b32.xlu0 %v1388, 24
        %v1427 = vpop.permute.xlu0 %1426
        %1428 = vrot.lane.b32.xlu0 %v1389, 24
        %v1429 = vpop.permute.xlu0 %1428
        %1430 = vrot.lane.b32.xlu0 %v1390, 24
        %v1431 = vpop.permute.xlu0 %1430
        %1432 = vrot.lane.b32.xlu0 %v1391, 24
        %v1433 = vpop.permute.xlu0 %1432
        %1434 = vrot.lane.b32.xlu0 %v1392, 24
        %v1435 = vpop.permute.xlu0 %1434
        %1436 = vrot.lane.b32.xlu0 %v1393, 24
        %v1437 = vpop.permute.xlu0 %1436
        %1438 = vrot.lane.b32.xlu0 %v1394, 24
        %v1439 = vpop.permute.xlu0 %1438
        %1440 = vrot.lane.b32.xlu0 %v1395, 24
        %v1441 = vpop.permute.xlu0 %1440
        %1442 = vrot.lane.b32.xlu0 %v1396, 24
        %v1443 = vpop.permute.xlu0 %1442
        %1444 = vrot.lane.b32.xlu0 %v1397, 24
        %v1445 = vpop.permute.xlu0 %1444
        %1446 = vrot.lane.b32.xlu0 %v1398, 24
        %v1447 = vpop.permute.xlu0 %1446
        %1448 = vrot.lane.b32.xlu0 %v1399, 24
        %v1449 = vpop.permute.xlu0 %1448
        %1450 = vrot.lane.b32.xlu0 %v1400, 24
        %v1451 = vpop.permute.xlu0 %1450
        %1452 = vrot.lane.b32.xlu0 %v1401, 24
        %v1453 = vpop.permute.xlu0 %1452
        %1454 = vrot.lane.b32.xlu0 %v1402, 24
        %v1455 = vpop.permute.xlu0 %1454
        %1456 = vrot.lane.b32.xlu0 %v1403, 24
        %v1457 = vpop.permute.xlu0 %1456
        %1458 = vrot.lane.b32.xlu0 %v1404, 24
        %v1459 = vpop.permute.xlu0 %1458
        %1460 = vrot.lane.b32.xlu0 %v1405, 24
        %v1461 = vpop.permute.xlu0 %1460
        %1462 = vrot.lane.b32.xlu0 %v1406, 24
        %v1463 = vpop.permute.xlu0 %1462
        %vm1483 = vcmask 220358
        %1484 = vst.msk [vmem:[#allocation3 - $0x6] sm:$0xc0] %vm1483, %v1427
        %vm1485 = vcmask 220352
        %1486 = vst.msk [vmem:[#allocation3 + $0x2] sm:$0xff] %vm1485, %v1429
        %1487 = vst.msk [vmem:[#allocation3 + $0xa] sm:$0xff] %vm1485, %v1431
        %1488 = vst.msk [vmem:[#allocation3 + $0x12] sm:$0xff] %vm1485, %v1433
        %1489 = vst.msk [vmem:[#allocation3 + $0x1a] sm:$0xff] %vm1485, %v1435
        %1490 = vst.msk [vmem:[#allocation3 + $0x22] sm:$0xff] %vm1485, %v1437
        %1491 = vst.msk [vmem:[#allocation3 + $0x2a] sm:$0xff] %vm1485, %v1439
        %1492 = vst.msk [vmem:[#allocation3 + $0x32] sm:$0xff] %vm1485, %v1441
        %1493 = vst.msk [vmem:[#allocation3 + $0x3a] sm:$0xff] %vm1485, %v1443
        %1494 = vst.msk [vmem:[#allocation3 + $0x42] sm:$0xff] %vm1485, %v1445
        %1495 = vst.msk [vmem:[#allocation3 + $0x4a] sm:$0xff] %vm1485, %v1447
        %1496 = vst.msk [vmem:[#allocation3 + $0x52] sm:$0xff] %vm1485, %v1449
        %1497 = vst.msk [vmem:[#allocation3 + $0x5a] sm:$0xff] %vm1485, %v1451
        %1498 = vst.msk [vmem:[#allocation3 + $0x62] sm:$0xff] %vm1485, %v1453
        %1499 = vst.msk [vmem:[#allocation3 + $0x6a] sm:$0xff] %vm1485, %v1455
        %1500 = vst.msk [vmem:[#allocation3 + $0x72] sm:$0xff] %vm1485, %v1457
        %1501 = vst.msk [vmem:[#allocation3 + $0x7a] sm:$0xff] %vm1485, %v1459
        %1502 = vst.msk [vmem:[#allocation3 + $0x82] sm:$0xff] %vm1485, %v1461
        %vm1503 = vcmask 216256
        %1504 = vst.msk [vmem:[#allocation3 + $0x8a] sm:$0xf] %vm1503, %v1463
        %v1505 = vld [vmem:[#allocation3] sm:$0xff]
        %v1506 = vld [vmem:[#allocation3 + $0x8] sm:$0xff]
        %v1507 = vld [vmem:[#allocation3 + $0x10] sm:$0xff]
        %v1508 = vld [vmem:[#allocation3 + $0x18] sm:$0xff]
        %v1509 = vld [vmem:[#allocation3 + $0x20] sm:$0xff]
        %v1510 = vld [vmem:[#allocation3 + $0x28] sm:$0xff]
        %v1511 = vld [vmem:[#allocation3 + $0x30] sm:$0xff]
        %v1512 = vld [vmem:[#allocation3 + $0x38] sm:$0xff]
        %v1513 = vld [vmem:[#allocation3 + $0x40] sm:$0xff]
        %v1514 = vld [vmem:[#allocation3 + $0x48] sm:$0xff]
        %v1515 = vld [vmem:[#allocation3 + $0x50] sm:$0xff]
        %v1516 = vld [vmem:[#allocation3 + $0x58] sm:$0xff]
        %v1517 = vld [vmem:[#allocation3 + $0x60] sm:$0xff]
        %v1518 = vld [vmem:[#allocation3 + $0x68] sm:$0xff]
        %v1519 = vld [vmem:[#allocation3 + $0x70] sm:$0xff]
        %v1520 = vld [vmem:[#allocation3 + $0x78] sm:$0xff]
        %v1521 = vld [vmem:[#allocation3 + $0x80] sm:$0xff]
        %v1522 = vld [vmem:[#allocation3 + $0x88] sm:$0x3f]
        %v1523 = vld [vmem:[#allocation10] sm:$0xff]
        %v1524 = vld [vmem:[#allocation10 + $0x8] sm:$0xff]
        %v1525 = vld [vmem:[#allocation10 + $0x10] sm:$0xff]
        %v1526 = vld [vmem:[#allocation10 + $0x18] sm:$0x7]
        %v1527 = vld [vmem:[#allocation11] sm:$0x1]
        %v1529 = vlaneseq
        %v1530 = vshrl.u32 %v1529, 7
        %v1531 = vsub.s32 0, %v1530
        %v1532 = vrot.slane %v1527, %v1531
        %vm1534 = vcmask 220160
        %v1536 = vsel %vm1534, %v1505, 0
        %v1539 = vsel %vm1534, %v1506, 0
        %v1542 = vsel %vm1534, %v1507, 0
        %v1545 = vsel %vm1534, %v1508, 0
        %v1548 = vsel %vm1534, %v1509, 0
        %v1551 = vsel %vm1534, %v1510, 0
        %v1554 = vsel %vm1534, %v1511, 0
        %v1557 = vsel %vm1534, %v1512, 0
        %v1560 = vsel %vm1534, %v1513, 0
        %v1563 = vsel %vm1534, %v1514, 0
        %v1566 = vsel %vm1534, %v1515, 0
        %v1569 = vsel %vm1534, %v1516, 0
        %v1572 = vsel %vm1534, %v1517, 0
        %v1575 = vsel %vm1534, %v1518, 0
        %v1578 = vsel %vm1534, %v1519, 0
        %v1581 = vsel %vm1534, %v1520, 0
        %v1584 = vsel %vm1534, %v1521, 0
        %v1587 = vsel %vm1534, %v1522, 0
        %vm1589 = vcmask 1042432
        %v1591 = vsel %vm1589, %v1526, 0
        %1593 = vmatprep.subr.mxu0 0.0
        %1594 = vmatpush1.msra.mxu0 %v1523
        %1595 = vmatprep.subr.mxu0 0.0
        %1596 = vmatpush1.msra.mxu0 %v1524
        %1597 = vmatprep.subr.mxu0 0.0
        %1598 = vmatpush1.msra.mxu0 %v1525
        %1599 = vmatprep.subr.mxu0 0.0
        %1600 = vmatpush1.msra.mxu0 %v1591
        %1601 = vmatprep.subr.mxu0 0.0
        %1602 = vmatpush1.msra.mxu0 0.0
        %1603 = vmatprep.subr.mxu0 0.0
        %1604 = vmatpush1.msra.mxu0 0.0
        %1605 = vmatprep.subr.mxu0 0.0
        %1606 = vmatpush1.msra.mxu0 0.0
        %1607 = vmatprep.subr.mxu0 0.0
        %1608 = vmatpush1.msra.mxu0 0.0
        %1609 = vmatprep.subr.mxu0 0.0
        %1610 = vmatpush1.msra.mxu0 0.0
        %1611 = vmatprep.subr.mxu0 0.0
        %1612 = vmatpush1.msra.mxu0 0.0
        %1613 = vmatprep.subr.mxu0 0.0
        %1614 = vmatpush1.msra.mxu0 0.0
        %1615 = vmatprep.subr.mxu0 0.0
        %1616 = vmatpush1.msra.mxu0 0.0
        %1617 = vmatprep.subr.mxu0 0.0
        %1618 = vmatpush1.msra.mxu0 0.0
        %1619 = vmatprep.subr.mxu0 0.0
        %1620 = vmatpush1.msra.mxu0 0.0
        %1621 = vmatprep.subr.mxu0 0.0
        %1622 = vmatpush1.msra.mxu0 0.0
        %1623 = vmatprep.subr.mxu0 0.0
        %1624 = vmatpush1.msra.mxu0 0.0
        %1625 = vmatprep.subr.mxu0 0.0
        %1626 = vmatpush1.msra.mxu0 0.0
        %1627 = vmatprep.subr.mxu0 0.0
        %1628 = vmatpush1.msra.mxu0 0.0
        %1629 = vmatprep.subr.mxu0 0.0
        %1630 = vmatpush1.msra.mxu0 0.0
        %1631 = vmatprep.subr.mxu0 0.0
        %1632 = vmatpush1.msra.mxu0 0.0
        %1633 = vmatprep.subr.mxu0 0.0
        %1634 = vmatpush1.msra.mxu0 0.0
        %1635 = vmatprep.subr.mxu0 0.0
        %1636 = vmatpush1.msra.mxu0 0.0
        %1637 = vmatprep.subr.mxu0 0.0
        %1638 = vmatpush1.msra.mxu0 0.0
        %1639 = vmatprep.subr.mxu0 0.0
        %1640 = vmatpush1.msra.mxu0 0.0
        %1641 = vmatprep.subr.mxu0 0.0
        %1642 = vmatpush1.msra.mxu0 0.0
        %1643 = vmatprep.subr.mxu0 0.0
        %1644 = vmatpush1.msra.mxu0 0.0
        %1645 = vmatprep.subr.mxu0 0.0
        %1646 = vmatpush1.msra.mxu0 0.0
        %1647 = vmatprep.subr.mxu0 0.0
        %1648 = vmatpush1.msra.mxu0 0.0
        %1649 = vmatprep.subr.mxu0 0.0
        %1650 = vmatpush1.msra.mxu0 0.0
        %1651 = vmatprep.subr.mxu0 0.0
        %1652 = vmatpush1.msra.mxu0 0.0
        %1653 = vmatprep.subr.mxu0 0.0
        %1654 = vmatpush1.msra.mxu0 0.0
        %1655 = vmatprep.subr.mxu0 0.0
        %1656 = vmatpush1.msra.mxu0 0.0
        %1657 = vmatprep.mubr.f32.mxu0 0.0
        %1658 = vmatmul.mubr.f32.gmra.mrb[0].mxu0 %v1536
        %v1659 = vpop.f32.mrb[0].mxu0
        %v1660 = vadd.f32 %v1532, %v1659
        %v1661 = vpop.f32.mrb[0].mxu0
        %1662 = vmatprep.mubr.f32.mxu0 0.0
        %1663 = vmatmul.mubr.f32.gmra.mrb[0].mxu0 %v1539
        %v1664 = vpop.f32.mrb[0].mxu0
        %v1665 = vadd.f32 %v1532, %v1664
        %v1666 = vpop.f32.mrb[0].mxu0
        %1667 = vmatprep.mubr.f32.mxu0 0.0
        %1668 = vmatmul.mubr.f32.gmra.mrb[0].mxu0 %v1542
        %v1669 = vpop.f32.mrb[0].mxu0
        %v1670 = vadd.f32 %v1532, %v1669
        %v1671 = vpop.f32.mrb[0].mxu0
        %1672 = vmatprep.mubr.f32.mxu0 0.0
        %1673 = vmatmul.mubr.f32.gmra.mrb[0].mxu0 %v1545
        %v1674 = vpop.f32.mrb[0].mxu0
        %v1675 = vadd.f32 %v1532, %v1674
        %v1676 = vpop.f32.mrb[0].mxu0
        %1677 = vmatprep.mubr.f32.mxu0 0.0
        %1678 = vmatmul.mubr.f32.gmra.mrb[0].mxu0 %v1548
        %v1679 = vpop.f32.mrb[0].mxu0
        %v1680 = vadd.f32 %v1532, %v1679
        %v1681 = vpop.f32.mrb[0].mxu0
        %1682 = vmatprep.mubr.f32.mxu0 0.0
        %1683 = vmatmul.mubr.f32.gmra.mrb[0].mxu0 %v1551
        %v1684 = vpop.f32.mrb[0].mxu0
        %v1685 = vadd.f32 %v1532, %v1684
        %v1686 = vpop.f32.mrb[0].mxu0
        %1687 = vmatprep.mubr.f32.mxu0 0.0
        %1688 = vmatmul.mubr.f32.gmra.mrb[0].mxu0 %v1554
        %v1689 = vpop.f32.mrb[0].mxu0
        %v1690 = vadd.f32 %v1532, %v1689
        %v1691 = vpop.f32.mrb[0].mxu0
        %1692 = vmatprep.mubr.f32.mxu0 0.0
        %1693 = vmatmul.mubr.f32.gmra.mrb[0].mxu0 %v1557
        %v1694 = vpop.f32.mrb[0].mxu0
        %v1695 = vadd.f32 %v1532, %v1694
        %v1696 = vpop.f32.mrb[0].mxu0
        %1697 = vmatprep.mubr.f32.mxu0 0.0
        %1698 = vmatmul.mubr.f32.gmra.mrb[0].mxu0 %v1560
        %v1699 = vpop.f32.mrb[0].mxu0
        %v1700 = vadd.f32 %v1532, %v1699
        %v1701 = vpop.f32.mrb[0].mxu0
        %1702 = vmatprep.mubr.f32.mxu0 0.0
        %1703 = vmatmul.mubr.f32.gmra.mrb[0].mxu0 %v1563
        %v1704 = vpop.f32.mrb[0].mxu0
        %v1705 = vadd.f32 %v1532, %v1704
        %v1706 = vpop.f32.mrb[0].mxu0
        %1707 = vmatprep.mubr.f32.mxu0 0.0
        %1708 = vmatmul.mubr.f32.gmra.mrb[0].mxu0 %v1566
        %v1709 = vpop.f32.mrb[0].mxu0
        %v1710 = vadd.f32 %v1532, %v1709
        %v1711 = vpop.f32.mrb[0].mxu0
        %1712 = vmatprep.mubr.f32.mxu0 0.0
        %1713 = vmatmul.mubr.f32.gmra.mrb[0].mxu0 %v1569
        %v1714 = vpop.f32.mrb[0].mxu0
        %v1715 = vadd.f32 %v1532, %v1714
        %v1716 = vpop.f32.mrb[0].mxu0
        %1717 = vmatprep.mubr.f32.mxu0 0.0
        %1718 = vmatmul.mubr.f32.gmra.mrb[0].mxu0 %v1572
        %v1719 = vpop.f32.mrb[0].mxu0
        %v1720 = vadd.f32 %v1532, %v1719
        %v1721 = vpop.f32.mrb[0].mxu0
        %1722 = vmatprep.mubr.f32.mxu0 0.0
        %1723 = vmatmul.mubr.f32.gmra.mrb[0].mxu0 %v1575
        %v1724 = vpop.f32.mrb[0].mxu0
        %v1725 = vadd.f32 %v1532, %v1724
        %v1726 = vpop.f32.mrb[0].mxu0
        %1727 = vmatprep.mubr.f32.mxu0 0.0
        %1728 = vmatmul.mubr.f32.gmra.mrb[0].mxu0 %v1578
        %v1729 = vpop.f32.mrb[0].mxu0
        %v1730 = vadd.f32 %v1532, %v1729
        %v1731 = vpop.f32.mrb[0].mxu0
        %1732 = vmatprep.mubr.f32.mxu0 0.0
        %1733 = vmatmul.mubr.f32.gmra.mrb[0].mxu0 %v1581
        %v1734 = vpop.f32.mrb[0].mxu0
        %v1735 = vadd.f32 %v1532, %v1734
        %v1736 = vpop.f32.mrb[0].mxu0
        %1737 = vmatprep.mubr.f32.mxu0 0.0
        %1738 = vmatmul.mubr.f32.gmra.mrb[0].mxu0 %v1584
        %v1739 = vpop.f32.mrb[0].mxu0
        %v1740 = vadd.f32 %v1532, %v1739
        %v1741 = vpop.f32.mrb[0].mxu0
        %1742 = vmatprep.mubr.f32.mxu0 0.0
        %1743 = vmatmul.mubr.f32.gmra.mrb[0].mxu0 %v1587
        %v1744 = vpop.f32.mrb[0].mxu0
        %v1745 = vadd.f32 %v1532, %v1744
        %v1746 = vpop.f32.mrb[0].mxu0
        %1747 = vdwg.mxu0
        %v1748 = vmax.f32 %v1660, 0.0
        %v1749 = vmax.f32 %v1665, 0.0
        %v1750 = vmax.f32 %v1670, 0.0
        %v1751 = vmax.f32 %v1675, 0.0
        %v1752 = vmax.f32 %v1680, 0.0
        %v1753 = vmax.f32 %v1685, 0.0
        %v1754 = vmax.f32 %v1690, 0.0
        %v1755 = vmax.f32 %v1695, 0.0
        %v1756 = vmax.f32 %v1700, 0.0
        %v1757 = vmax.f32 %v1705, 0.0
        %v1758 = vmax.f32 %v1710, 0.0
        %v1759 = vmax.f32 %v1715, 0.0
        %v1760 = vmax.f32 %v1720, 0.0
        %v1761 = vmax.f32 %v1725, 0.0
        %v1762 = vmax.f32 %v1730, 0.0
        %v1763 = vmax.f32 %v1735, 0.0
        %v1764 = vmax.f32 %v1740, 0.0
        %v1765 = vmax.f32 %v1745, 0.0
        %vm1766 = vcmask 130048
        %1767 = vst.msk [vmem:[#allocation4] sm:$0xff] %vm1766, %v1748
        %1768 = vst.msk [vmem:[#allocation4 + $0x8] sm:$0xff] %vm1766, %v1749
        %1769 = vst.msk [vmem:[#allocation4 + $0x10] sm:$0xff] %vm1766, %v1750
        %1770 = vst.msk [vmem:[#allocation4 + $0x18] sm:$0xff] %vm1766, %v1751
        %1771 = vst.msk [vmem:[#allocation4 + $0x20] sm:$0xff] %vm1766, %v1752
        %1772 = vst.msk [vmem:[#allocation4 + $0x28] sm:$0xff] %vm1766, %v1753
        %1773 = vst.msk [vmem:[#allocation4 + $0x30] sm:$0xff] %vm1766, %v1754
        %1774 = vst.msk [vmem:[#allocation4 + $0x38] sm:$0xff] %vm1766, %v1755
        %1775 = vst.msk [vmem:[#allocation4 + $0x40] sm:$0xff] %vm1766, %v1756
        %1776 = vst.msk [vmem:[#allocation4 + $0x48] sm:$0xff] %vm1766, %v1757
        %1777 = vst.msk [vmem:[#allocation4 + $0x50] sm:$0xff] %vm1766, %v1758
        %1778 = vst.msk [vmem:[#allocation4 + $0x58] sm:$0xff] %vm1766, %v1759
        %1779 = vst.msk [vmem:[#allocation4 + $0x60] sm:$0xff] %vm1766, %v1760
        %1780 = vst.msk [vmem:[#allocation4 + $0x68] sm:$0xff] %vm1766, %v1761
        %1781 = vst.msk [vmem:[#allocation4 + $0x70] sm:$0xff] %vm1766, %v1762
        %1782 = vst.msk [vmem:[#allocation4 + $0x78] sm:$0xff] %vm1766, %v1763
        %1783 = vst.msk [vmem:[#allocation4 + $0x80] sm:$0xff] %vm1766, %v1764
        %vm1784 = vcmask 128000
        %1785 = vst.msk [vmem:[#allocation4 + $0x88] sm:$0x3f] %vm1784, %v1765
        %v1786 = vld [vmem:[#allocation4] ss:$2 sm:$0xff]
        %s1787 = scalar_lea.vmem [#allocation4], 1
        %v1788 = vld [vmem:[%s1787] ss:$2 sm:$0xff]
        %s1789 = scalar_lea.vmem [#allocation4], 18
        %v1790 = vld [vmem:[%s1789] ss:$2 sm:$0xff]
        %s1791 = scalar_lea.vmem [#allocation4], 19
        %v1792 = vld [vmem:[%s1791] ss:$2 sm:$0xff]
        %v1793 = vmax.f32 %v1786, %v1788
        %v1794 = vmax.f32 %v1790, %v1792
        %v1795 = vmax.f32 %v1793, %v1794
        %v1796 = vpack.c.bf16 %v1795, %v1795
        %vm1797 = vcmask 125952
        %1798 = vst.msk [vmem:[%s322] sm:$0xf] %vm1797, %v1796
        %s1799 = scalar_lea.vmem [#allocation4], 36
        %v1800 = vld [vmem:[%s1799] ss:$2 sm:$0xff]
        %s1801 = scalar_lea.vmem [#allocation4], 37
        %v1802 = vld [vmem:[%s1801] ss:$2 sm:$0xff]
        %s1803 = scalar_lea.vmem [#allocation4], 54
        %v1804 = vld [vmem:[%s1803] ss:$2 sm:$0xff]
        %s1805 = scalar_lea.vmem [#allocation4], 55
        %v1806 = vld [vmem:[%s1805] ss:$2 sm:$0xff]
        %v1807 = vmax.f32 %v1800, %v1802
        %v1808 = vmax.f32 %v1804, %v1806
        %v1809 = vmax.f32 %v1807, %v1808
        %v1810 = vpack.c.bf16 %v1809, %v1809
        %s1811 = scalar_lea.vmem %s322, 4 [#allocation13]
        %1812 = vst.msk [vmem:[%s1811] sm:$0xf] %vm1797, %v1810
        %s1813 = scalar_lea.vmem [#allocation4], 72
        %v1814 = vld [vmem:[%s1813] ss:$2 sm:$0xff]
        %s1815 = scalar_lea.vmem [#allocation4], 73
        %v1816 = vld [vmem:[%s1815] ss:$2 sm:$0xff]
        %s1817 = scalar_lea.vmem [#allocation4], 90
        %v1818 = vld [vmem:[%s1817] ss:$2 sm:$0xff]
        %s1819 = scalar_lea.vmem [#allocation4], 91
        %v1820 = vld [vmem:[%s1819] ss:$2 sm:$0xff]
        %v1821 = vmax.f32 %v1814, %v1816
        %v1822 = vmax.f32 %v1818, %v1820
        %v1823 = vmax.f32 %v1821, %v1822
        %v1824 = vpack.c.bf16 %v1823, %v1823
        %s1825 = scalar_lea.vmem %s322, 8 [#allocation13]
        %1826 = vst.msk [vmem:[%s1825] sm:$0xf] %vm1797, %v1824
        %s1827 = scalar_lea.vmem [#allocation4], 108
        %v1828 = vld [vmem:[%s1827] ss:$2 sm:$0xff]
        %s1829 = scalar_lea.vmem [#allocation4], 109
        %v1830 = vld [vmem:[%s1829] ss:$2 sm:$0xff]
        %s1831 = scalar_lea.vmem [#allocation4], 126
        %v1832 = vld [vmem:[%s1831] ss:$2 sm:$0xff]
        %s1833 = scalar_lea.vmem [#allocation4], 127
        %v1834 = vld [vmem:[%s1833] ss:$2 sm:$0xff]
        %v1835 = vmax.f32 %v1828, %v1830
        %v1836 = vmax.f32 %v1832, %v1834
        %v1837 = vmax.f32 %v1835, %v1836
        %v1838 = vpack.c.bf16 %v1837, %v1837
        %s1839 = scalar_lea.vmem %s322, 12 [#allocation13]
        %1840 = vst.msk [vmem:[%s1839] sm:$0xf] %vm1797, %v1838
        %s1841 = sand.u32 %s149, 1
        %s1842 = scalar_lea.sflag [#allocation7], %s1841
        %s1843 = sand.u32 %s149, 1
        %s1844 = smul.addr %s1843, 16
        %s1845 = scalar_lea.vmem [#allocation13], %s1844
        // Predicated region
        $region53: #{cnn_forward.3} parent=35 // pred_check
          %p1846 = pneg %p159
        $region54: #{cnn_forward.3} parent=35 // pred_check_branch
          %1848 = sbr.rel (%p1846) target = $region56
        $region55: #{cnn_forward.3} parent=35 // pred_region
          %s1849 = smul.u32 4, %s30
          %s1851 = ssub.s32 256, 256
          %1852 = vsyncadd %s1842, %s1851
          %s1853 = smul.addr %s29, 8
          %s1854 = sadd.s32 %s1849, %s1853
          %s1855 = smul.addr %s1854, 64
          %s1856 = scalar_lea.hbm %s4, %s1855
          %s1857 = sshll.u32 %s1845, 4
          %s1858 = int_to_ptr.vmem [resolvable:$true] %s1857
          %1863 = dma.vmem_to_hbm [thread:$0]  %s1858, 256, %s1856, %s1842, 64, 64, 4
        $region56: #{cnn_forward.3} parent=35 // pred_fallthru
          _
      $region36: #{cnn_forward.3} parent=5 // pred_fallthru
        _
      %p1864 = scmp.le.s32.totalorder 2, %s20
      // Predicated region
      $region57: #{cnn_forward.3} parent=5 // pred_check
        %p1865 = pneg %p1864
      $region58: #{cnn_forward.3} parent=5 // pred_check_branch
        %1867 = sbr.rel (%p1865) target = $region60
      $region59: #{cnn_forward.3} parent=5 // pred_region
        %s1868 = ssub.s32 %s20, 2
        // Predicated region
        $region61: #{cnn_forward.3} parent=59 // pred_check
          %p1869 = pneg %p165
        $region62: #{cnn_forward.3} parent=59 // pred_check_branch
          %1871 = sbr.rel (%p1869) target = $region64
        $region63: #{cnn_forward.3} parent=59 // pred_region
          %s1872 = sand.u32 %s150, 1
          %s1873 = scalar_lea.sflag [#allocation7], %s1872
          %s1874 = sand.u32 %s150, 1
          %s1875 = smul.addr %s1874, 16
          %s1876 = scalar_lea.vmem [#allocation13], %s1875
          %1877 = dma.done %s1873, 256
        $region64: #{cnn_forward.3} parent=59 // pred_fallthru
          _
      $region60: #{cnn_forward.3} parent=5 // pred_fallthru
        _
    $region6: #{cnn_forward.3} parent=1 // loop_footer
      %s24 = sadd.s32 1, %s20
    $region7: #{cnn_forward.3} parent=1 // loop_footer_branch
      %19 = sbr.rel target = $region3
    $region8: #{cnn_forward.3} parent=1 // loop_exit
      _
    %1878 = vsyncpa [#allocation6], 1
    %s1879 = scalar_lea.sflag [#allocation6], 1
    %1880 = vsyncpa %s1879, 1
    %1881 = vsyncpa [#allocation9], 1
    %s1882 = scalar_lea.sflag [#allocation9], 1
    %1883 = vsyncpa %s1882, 1
    %1884 = vsyncpa [#allocation12], 1
    %1885 = vsyncpa [#allocation7], 1
    %s1886 = scalar_lea.sflag [#allocation7], 1
    %1887 = vsyncpa %s1886, 1

</llo_original>
